<compile_context>
chip_gen: v7x
topology: tpu7x:2x2x1
jax: 0.10.0
libtpu: 0.0.40
codegen_flags: <defaults>
</compile_context>

<pallas_src>
import jax
import jax.numpy as jnp
from jax.experimental import pallas as pl
from jax.experimental.pallas import tpu as pltpu

LANE = 128
SUBLANE = 8


def _round_up(n, m):
    return ((n + m - 1) // m) * m


def _pick_time_chunk(T, cap=16):
    for c in range(min(T, cap), 0, -1):
        if T % c == 0:
            return c
    return 1


# ----------------------------- Pallas kernels -----------------------------

def _gru_chunk_body(x_ref, w_ih_ref, w_hh_ref, b_x_ref, b_hn_ref,
                    h_scratch, gx_scratch, emit):
    """Run the GRU recurrence over one time chunk held in VMEM.

    x_ref:     (tt, Bp, Dp)   time-major input chunk
    w_ih_ref:  (Dp, 3Hp)      gate order [r, z, n], each gate lane-aligned
    w_hh_ref:  (Hp, 3Hp)
    b_x_ref:   (1, 3Hp)       b_ih (all gates) + b_hh (r,z gates) folded
    b_hn_ref:  (1, Hp)        b_hh n-gate (must stay inside r * (...))
    h_scratch: (Bp, Hp)       recurrent carry, persists across grid steps
    gx_scratch:(tt, Bp, 3Hp)  hoisted input projection for this chunk
    emit(t, h_new):           per-step sink (write sequence or no-op)
    """
    tt, bp, dp = x_ref.shape
    hp = w_hh_ref.shape[0]

    # Hoisted input projection: one big MXU matmul for the whole chunk,
    # biases folded in (no per-step broadcast_in_dim in the serial loop).
    x_flat = x_ref[...].reshape(tt * bp, dp)
    gx = jnp.dot(x_flat, w_ih_ref[...], preferred_element_type=jnp.float32)
    gx_scratch[...] = (gx + b_x_ref[...]).reshape(tt, bp, 3 * hp)

    # Serial recurrence: only the recurrent matmul + gate math remain.
    # All gate slices are 128-lane aligned (hp % 128 == 0).
    def step(t, carry):
        h_prev = h_scratch[...]
        gh = jnp.dot(h_prev, w_hh_ref[...],
                     preferred_element_type=jnp.float32)
        gx_t = gx_scratch[t]
        r = jax.nn.sigmoid(gx_t[:, 0 * hp:1 * hp] + gh[:, 0 * hp:1 * hp])
        z = jax.nn.sigmoid(gx_t[:, 1 * hp:2 * hp] + gh[:, 1 * hp:2 * hp])
        n = jnp.tanh(gx_t[:, 2 * hp:3 * hp]
                     + r * (gh[:, 2 * hp:3 * hp] + b_hn_ref[...]))
        h_new = (1.0 - z) * n + z * h_prev
        h_scratch[...] = h_new
        emit(t, h_new)
        return carry

    jax.lax.fori_loop(0, tt, step, 0, unroll=True)


def gru_seq_kernel(x_ref, w_ih_ref, w_hh_ref, b_x_ref, b_hn_ref,
                   out_ref, h_scratch, gx_scratch):
    """Non-final GRU layer: emits the full (lane-dense) hidden sequence."""
    @pl.when(pl.program_id(0) == 0)
    def _():
        h_scratch[...] = jnp.zeros_like(h_scratch)

    def emit(t, h_new):
        out_ref[t] = h_new

    _gru_chunk_body(x_ref, w_ih_ref, w_hh_ref, b_x_ref, b_hn_ref,
                    h_scratch, gx_scratch, emit)


def gru_final_fc_kernel(x_ref, w_ih_ref, w_hh_ref, b_x_ref, b_hn_ref,
                        fc_w_ref, fc_b_ref, out_ref, h_scratch, gx_scratch):
    """Final GRU layer fused with the FC head: emits only (Bp, Cp) logits."""
    @pl.when(pl.program_id(0) == 0)
    def _():
        h_scratch[...] = jnp.zeros_like(h_scratch)

    _gru_chunk_body(x_ref, w_ih_ref, w_hh_ref, b_x_ref, b_hn_ref,
                    h_scratch, gx_scratch, lambda t, h_new: None)

    @pl.when(pl.program_id(0) == pl.num_programs(0) - 1)
    def _():
        out_ref[...] = (jnp.dot(h_scratch[...], fc_w_ref[...],
                                preferred_element_type=jnp.float32)
                        + fc_b_ref[...])


# ------------------------------ JAX wrappers -------------------------------

def _gru_seq_layer(x_tbd, w_ih, w_hh, b_x, b_hn, time_chunk):
    T, Bp, Dp = x_tbd.shape
    Hp = w_hh.shape[0]
    return pl.pallas_call(
        gru_seq_kernel,
        out_shape=jax.ShapeDtypeStruct((T, Bp, Hp), jnp.float32),
        grid_spec=pltpu.PrefetchScalarGridSpec(
            num_scalar_prefetch=0,
            grid=(T // time_chunk,),
            in_specs=[
                pl.BlockSpec((time_chunk, Bp, Dp), lambda t: (t, 0, 0)),
                pl.BlockSpec((Dp, 3 * Hp), lambda t: (0, 0)),
                pl.BlockSpec((Hp, 3 * Hp), lambda t: (0, 0)),
                pl.BlockSpec((1, 3 * Hp), lambda t: (0, 0)),
                pl.BlockSpec((1, Hp), lambda t: (0, 0)),
            ],
            out_specs=pl.BlockSpec((time_chunk, Bp, Hp), lambda t: (t, 0, 0)),
            scratch_shapes=[
                pltpu.VMEM((Bp, Hp), jnp.float32),
                pltpu.VMEM((time_chunk, Bp, 3 * Hp), jnp.float32),
            ],
        ),
        compiler_params=pltpu.CompilerParams(
            dimension_semantics=("arbitrary",)),
    )(x_tbd, w_ih, w_hh, b_x, b_hn)


def _gru_final_fc_layer(x_tbd, w_ih, w_hh, b_x, b_hn, fc_w, fc_b, time_chunk):
    T, Bp, Dp = x_tbd.shape
    Hp = w_hh.shape[0]
    Cp = fc_w.shape[1]
    return pl.pallas_call(
        gru_final_fc_kernel,
        out_shape=jax.ShapeDtypeStruct((Bp, Cp), jnp.float32),
        grid_spec=pltpu.PrefetchScalarGridSpec(
            num_scalar_prefetch=0,
            grid=(T // time_chunk,),
            in_specs=[
                pl.BlockSpec((time_chunk, Bp, Dp), lambda t: (t, 0, 0)),
                pl.BlockSpec((Dp, 3 * Hp), lambda t: (0, 0)),
                pl.BlockSpec((Hp, 3 * Hp), lambda t: (0, 0)),
                pl.BlockSpec((1, 3 * Hp), lambda t: (0, 0)),
                pl.BlockSpec((1, Hp), lambda t: (0, 0)),
                pl.BlockSpec((Hp, Cp), lambda t: (0, 0)),
                pl.BlockSpec((1, Cp), lambda t: (0, 0)),
            ],
            out_specs=pl.BlockSpec((Bp, Cp), lambda t: (0, 0)),
            scratch_shapes=[
                pltpu.VMEM((Bp, Hp), jnp.float32),
                pltpu.VMEM((time_chunk, Bp, 3 * Hp), jnp.float32),
            ],
        ),
        compiler_params=pltpu.CompilerParams(
            dimension_semantics=("arbitrary",)),
    )(x_tbd, w_ih, w_hh, b_x, b_hn, fc_w, fc_b)


def gru_model_forward(x_btd, pp, time_chunk=None):
    """Equivalent of GRUModel.forward: _, h_n = rnn(x); logits = fc(h_n[-1])."""
    B, T, D = x_btd.shape
    Dp0 = pp["Dp0"]
    Bp = _round_up(max(B, SUBLANE), SUBLANE)
    if time_chunk is None:
        time_chunk = _pick_time_chunk(T)
    # batch-first (B, T, D) -> time-major, batch/feature zero-padded (T, Bp, Dp0)
    x = jnp.transpose(x_btd.astype(jnp.float32), (1, 0, 2))
    x = jnp.pad(x, ((0, 0), (0, Bp - B), (0, Dp0 - D)))
    layers = pp["gru"]
    for lyr in layers[:-1]:
        x = _gru_seq_layer(x, lyr["w_ih"], lyr["w_hh"], lyr["b_x"],
                           lyr["b_hn"], time_chunk)
    last = layers[-1]
    logits_p = _gru_final_fc_layer(x, last["w_ih"], last["w_hh"], last["b_x"],
                                   last["b_hn"], pp["fc_w"], pp["fc_b"],
                                   time_chunk)
    return logits_p[:B, :pp["num_classes"]]


# ---------------------- parameter init & preparation -----------------------

def init_torch_params(key, input_size, hidden_size, num_layers, num_classes):
    """Raw parameters in PyTorch layout: w_ih (3H, D), w_hh (3H, H), gate
    order [r, z, n]; fc_w (C, H)."""
    k = 1.0 / jnp.sqrt(hidden_size)
    raw = {"gru": []}
    for l in range(num_layers):
        d_in = input_size if l == 0 else hidden_size
        key, k1, k2, k3, k4 = jax.random.split(key, 5)
        raw["gru"].append({
            "w_ih": jax.random.uniform(k1, (3 * hidden_size, d_in),
                                       jnp.float32, -k, k),
            "w_hh": jax.random.uniform(k2, (3 * hidden_size, hidden_size),
                                       jnp.float32, -k, k),
            "b_ih": jax.random.uniform(k3, (3 * hidden_size,),
                                       jnp.float32, -k, k),
            "b_hh": jax.random.uniform(k4, (3 * hidden_size,),
                                       jnp.float32, -k, k),
        })
    key, k5, k6 = jax.random.split(key, 3)
    raw["fc_w"] = jax.random.uniform(k5, (num_classes, hidden_size),
                                     jnp.float32, -k, k)
    raw["fc_b"] = jax.random.uniform(k6, (num_classes,), jnp.float32, -k, k)
    return raw


def _pad_gate_cols(m_t, H, Hp):
    """(rows, 3H) with gate order [r, z, n] -> (rows, 3Hp); each gate block is
    placed at a 128-lane-aligned offset, padding is zero."""
    rows = m_t.shape[0]
    out = jnp.zeros((rows, 3 * Hp), jnp.float32)
    for g in range(3):
        out = out.at[:, g * Hp:g * Hp + H].set(m_t[:, g * H:(g + 1) * H])
    return out


def prepare_pallas_params(raw, input_size, hidden_size, num_classes):
    H = hidden_size
    Hp = _round_up(H, LANE)
    Cp = _round_up(num_classes, LANE)
    Dp0 = _round_up(input_size, LANE)
    pp = {"gru": [], "Hp": Hp, "Cp": Cp, "Dp0": Dp0,
          "num_classes": num_classes}
    for li, lyr in enumerate(raw["gru"]):
        d_in = input_size if li == 0 else H
        Dp = Dp0 if li == 0 else Hp
        w_ih_t = _pad_gate_cols(lyr["w_ih"].T, H, Hp)        # (d_in, 3Hp)
        w_ih_t = jnp.pad(w_ih_t, ((0, Dp - d_in), (0, 0)))   # (Dp,  3Hp)
        w_hh_t = _pad_gate_cols(lyr["w_hh"].T, H, Hp)        # (H,   3Hp)
        w_hh_t = jnp.pad(w_hh_t, ((0, Hp - H), (0, 0)))      # (Hp,  3Hp)
        b_ih, b_hh = lyr["b_ih"], lyr["b_hh"]
        # Fold b_ih (all gates) + b_hh (r, z gates) into the hoisted input
        # projection bias; only b_hh's n-gate component stays in the loop.
        b_x = jnp.concatenate([b_ih[0:H] + b_hh[0:H],
                               b_ih[H:2 * H] + b_hh[H:2 * H],
                               b_ih[2 * H:3 * H]])
        b_x = _pad_gate_cols(b_x.reshape(1, 3 * H), H, Hp)   # (1, 3Hp)
        b_hn = jnp.zeros((1, Hp), jnp.float32).at[0, :H].set(b_hh[2 * H:3 * H])
        pp["gru"].append({"w_ih": w_ih_t, "w_hh": w_hh_t,
                          "b_x": b_x, "b_hn": b_hn})
    pp["fc_w"] = jnp.pad(raw["fc_w"].T,
                         ((0, Hp - H), (0, Cp - num_classes)))  # (Hp, Cp)
    pp["fc_b"] = jnp.pad(raw["fc_b"], (0, Cp - num_classes)).reshape(1, Cp)
    return pp


# -------------------------- pure-JAX reference -----------------------------

def gru_model_ref(x_btd, raw, hidden_size):
    B, T, _ = x_btd.shape
    H = hidden_size
    h_in = x_btd
    for lyr in raw["gru"]:
        h = jnp.zeros((B, H), jnp.float32)
        outs = []
        for t in range(T):
            gx = h_in[:, t] @ lyr["w_ih"].T + lyr["b_ih"]
            gh = h @ lyr["w_hh"].T + lyr["b_hh"]
            r = jax.nn.sigmoid(gx[:, :H] + gh[:, :H])
            z = jax.nn.sigmoid(gx[:, H:2 * H] + gh[:, H:2 * H])
            n = jnp.tanh(gx[:, 2 * H:] + r * gh[:, 2 * H:])
            h = (1.0 - z) * n + z * h
            outs.append(h)
        h_in = jnp.stack(outs, axis=1)
    return h_in[:, -1] @ raw["fc_w"].T + raw["fc_b"]


# ----------------------------------- main -----------------------------------

if __name__ == "__main__":
    B, T = 2, 8
    input_size, hidden_size, num_layers, num_classes = 16, 32, 2, 4

    key = jax.random.PRNGKey(0)
    key, xkey = jax.random.split(key)
    x = jax.random.normal(xkey, (B, T, input_size), jnp.float32)

    raw = init_torch_params(key, input_size, hidden_size, num_layers,
                            num_classes)
    pp = prepare_pallas_params(raw, input_size, hidden_size, num_classes)

    # time_chunk=4 -> grid=(2,): exercises the persistent-carry-across-grid path.
    fwd = jax.jit(lambda xx: gru_model_forward(xx, pp, time_chunk=4))
    logits = jax.block_until_ready(fwd(x))

    ref = gru_model_ref(x, raw, hidden_size)
    assert logits.shape == (B, num_classes)
    assert jnp.allclose(logits, ref, atol=1e-4, rtol=1e-4), "mismatch vs reference"

    print("KERNEL_OK")
</pallas_src>

<mosaic_0001>
module attributes {stable_mosaic.version = 11 : i64} {
  func.func @gru_seq_kernel(%arg0: i32, %arg1: memref<4x8x128xf32, #tpu.memory_space<vmem>>, %arg2: memref<128x384xf32, #tpu.memory_space<vmem>>, %arg3: memref<128x384xf32, #tpu.memory_space<vmem>>, %arg4: memref<1x384xf32, #tpu.memory_space<vmem>>, %arg5: memref<1x128xf32, #tpu.memory_space<vmem>>, %arg6: memref<4x8x128xf32, #tpu.memory_space<vmem>>, %arg7: memref<8x128xf32, #tpu.memory_space<vmem>>, %arg8: memref<4x8x384xf32, #tpu.memory_space<vmem>>) attributes {dimension_semantics = [#tpu.dimension_semantics<arbitrary>], iteration_bounds = array<i64: 2>, scalar_prefetch = 0 : i64, scratch_operands = 2 : i64, tpu.core_type = #tpu.core_type<tc>, window_params = [{transform_indices = @transform_0, window_bounds = array<i64: 4, 8, 128>}, {pipeline_mode = #tpu.pipeline_mode<synchronous>, transform_indices = @transform_1, window_bounds = array<i64: 128, 384>}, {pipeline_mode = #tpu.pipeline_mode<synchronous>, transform_indices = @transform_2, window_bounds = array<i64: 128, 384>}, {pipeline_mode = #tpu.pipeline_mode<synchronous>, transform_indices = @transform_3, window_bounds = array<i64: 1, 384>}, {pipeline_mode = #tpu.pipeline_mode<synchronous>, transform_indices = @transform_4, window_bounds = array<i64: 1, 128>}, {transform_indices = @transform_5, window_bounds = array<i64: 4, 8, 128>}]} {
    %c0_i32 = arith.constant 0 : i32
    %0 = arith.cmpi eq, %arg0, %c0_i32 : i32
    %1 = arith.extui %0 : i1 to i32
    %c0_i32_0 = arith.constant 0 : i32
    %2 = arith.cmpi ne, %1, %c0_i32_0 : i32
    scf.if %2 {
      %cst_75 = arith.constant 0.000000e+00 : f32
      %172 = vector.broadcast %cst_75 : f32 to vector<8x128xf32>
      %c0_76 = arith.constant 0 : index
      %c0_77 = arith.constant 0 : index
      %173 = vector.load %arg7[%c0_76, %c0_77] : memref<8x128xf32, #tpu.memory_space<vmem>>, vector<8x128xf32>
      tpu.vector_store %arg7[%c0_76, %c0_77], %172 {strides = array<i32>} : memref<8x128xf32, #tpu.memory_space<vmem>>, vector<8x128xf32>,
    } else {
    }
    %c0 = arith.constant 0 : index
    %c0_1 = arith.constant 0 : index
    %c0_2 = arith.constant 0 : index
    %3 = vector.load %arg1[%c0, %c0_1, %c0_2] : memref<4x8x128xf32, #tpu.memory_space<vmem>>, vector<4x8x128xf32>
    %4 = vector.shape_cast %3 : vector<4x8x128xf32> to vector<32x128xf32>
    %c0_3 = arith.constant 0 : index
    %c0_4 = arith.constant 0 : index
    %5 = vector.load %arg2[%c0_3, %c0_4] : memref<128x384xf32, #tpu.memory_space<vmem>>, vector<128x384xf32>
    %cst = arith.constant dense<0.000000e+00> : vector<32x384xf32>
    %6 = tpu.matmul %4, %5, %cst {dimension_numbers = #tpu.dot_dimension_numbers<[1], [0], [0], [1], [0, 0, 1, 1], [], []>} : vector<32x128xf32>, vector<128x384xf32>, vector<32x384xf32> -> vector<32x384xf32>
    %c0_5 = arith.constant 0 : index
    %c0_6 = arith.constant 0 : index
    %7 = vector.load %arg4[%c0_5, %c0_6] : memref<1x384xf32, #tpu.memory_space<vmem>>, vector<1x384xf32>
    %8 = vector.broadcast %7 : vector<1x384xf32> to vector<32x384xf32>
    %9 = arith.addf %6, %8 : vector<32x384xf32>
    %10 = vector.shape_cast %9 : vector<32x384xf32> to vector<4x8x384xf32>
    %c0_7 = arith.constant 0 : index
    %c0_8 = arith.constant 0 : index
    %c0_9 = arith.constant 0 : index
    %11 = vector.load %arg8[%c0_7, %c0_8, %c0_9] : memref<4x8x384xf32, #tpu.memory_space<vmem>>, vector<4x8x384xf32>
    tpu.vector_store %arg8[%c0_7, %c0_8, %c0_9], %10 {strides = array<i32>} : memref<4x8x384xf32, #tpu.memory_space<vmem>>, vector<4x8x384xf32>,
    %c0_i32_10 = arith.constant 0 : i32
    %c0_11 = arith.constant 0 : index
    %c0_12 = arith.constant 0 : index
    %12 = vector.load %arg7[%c0_11, %c0_12] : memref<8x128xf32, #tpu.memory_space<vmem>>, vector<8x128xf32>
    %c0_13 = arith.constant 0 : index
    %c0_14 = arith.constant 0 : index
    %13 = vector.load %arg3[%c0_13, %c0_14] : memref<128x384xf32, #tpu.memory_space<vmem>>, vector<128x384xf32>
    %cst_15 = arith.constant dense<0.000000e+00> : vector<8x384xf32>
    %14 = tpu.matmul %12, %13, %cst_15 {dimension_numbers = #tpu.dot_dimension_numbers<[1], [0], [0], [1], [0, 0, 1, 1], [], []>} : vector<8x128xf32>, vector<128x384xf32>, vector<8x384xf32> -> vector<8x384xf32>
    %15 = arith.index_cast %c0_i32_10 : i32 to index
    %c0_16 = arith.constant 0 : index
    %c0_17 = arith.constant 0 : index
    %16 = vector.load %arg8[%15, %c0_16, %c0_17] : memref<4x8x384xf32, #tpu.memory_space<vmem>>, vector<1x8x384xf32>
    %17 = vector.shape_cast %16 : vector<1x8x384xf32> to vector<8x384xf32>
    %18 = vector.extract_strided_slice %17 {offsets = [0, 0], sizes = [8, 128], strides = [1, 1]} : vector<8x384xf32> to vector<8x128xf32>
    %19 = vector.extract_strided_slice %14 {offsets = [0, 0], sizes = [8, 128], strides = [1, 1]} : vector<8x384xf32> to vector<8x128xf32>
    %20 = arith.addf %18, %19 : vector<8x128xf32>
    %21 = arith.negf %20 : vector<8x128xf32>
    %22 = math.exp %21 : vector<8x128xf32>
    %cst_18 = arith.constant 1.000000e+00 : f32
    %23 = vector.broadcast %cst_18 : f32 to vector<8x128xf32>
    %24 = arith.addf %23, %22 : vector<8x128xf32>
    %25 = arith.divf %23, %24 : vector<8x128xf32>
    %26 = vector.extract_strided_slice %17 {offsets = [0, 128], sizes = [8, 128], strides = [1, 1]} : vector<8x384xf32> to vector<8x128xf32>
    %27 = vector.extract_strided_slice %14 {offsets = [0, 128], sizes = [8, 128], strides = [1, 1]} : vector<8x384xf32> to vector<8x128xf32>
    %28 = arith.addf %26, %27 : vector<8x128xf32>
    %29 = arith.negf %28 : vector<8x128xf32>
    %30 = math.exp %29 : vector<8x128xf32>
    %cst_19 = arith.constant 1.000000e+00 : f32
    %31 = vector.broadcast %cst_19 : f32 to vector<8x128xf32>
    %32 = arith.addf %31, %30 : vector<8x128xf32>
    %33 = arith.divf %31, %32 : vector<8x128xf32>
    %34 = vector.extract_strided_slice %17 {offsets = [0, 256], sizes = [8, 128], strides = [1, 1]} : vector<8x384xf32> to vector<8x128xf32>
    %35 = vector.extract_strided_slice %14 {offsets = [0, 256], sizes = [8, 128], strides = [1, 1]} : vector<8x384xf32> to vector<8x128xf32>
    %c0_20 = arith.constant 0 : index
    %c0_21 = arith.constant 0 : index
    %36 = vector.load %arg5[%c0_20, %c0_21] : memref<1x128xf32, #tpu.memory_space<vmem>>, vector<1x128xf32>
    %37 = vector.broadcast %36 : vector<1x128xf32> to vector<8x128xf32>
    %38 = arith.addf %35, %37 : vector<8x128xf32>
    %39 = arith.mulf %25, %38 : vector<8x128xf32>
    %40 = arith.addf %34, %39 : vector<8x128xf32>
    %41 = math.tanh %40 : vector<8x128xf32>
    %cst_22 = arith.constant 1.000000e+00 : f32
    %42 = vector.broadcast %cst_22 : f32 to vector<8x128xf32>
    %43 = arith.subf %42, %33 : vector<8x128xf32>
    %44 = arith.mulf %43, %41 : vector<8x128xf32>
    %45 = arith.mulf %33, %12 : vector<8x128xf32>
    %46 = arith.addf %44, %45 : vector<8x128xf32>
    %c0_23 = arith.constant 0 : index
    %c0_24 = arith.constant 0 : index
    %47 = vector.load %arg7[%c0_23, %c0_24] : memref<8x128xf32, #tpu.memory_space<vmem>>, vector<8x128xf32>
    tpu.vector_store %arg7[%c0_23, %c0_24], %46 {strides = array<i32>} : memref<8x128xf32, #tpu.memory_space<vmem>>, vector<8x128xf32>,
    %48 = arith.index_cast %c0_i32_10 : i32 to index
    %c0_25 = arith.constant 0 : index
    %c0_26 = arith.constant 0 : index
    %49 = vector.load %arg6[%48, %c0_25, %c0_26] : memref<4x8x128xf32, #tpu.memory_space<vmem>>, vector<1x8x128xf32>
    %50 = vector.shape_cast %49 : vector<1x8x128xf32> to vector<8x128xf32>
    %51 = vector.shape_cast %46 : vector<8x128xf32> to vector<1x8x128xf32>
    tpu.vector_store %arg6[%48, %c0_25, %c0_26], %51 {strides = array<i32>} : memref<4x8x128xf32, #tpu.memory_space<vmem>>, vector<1x8x128xf32>,
    %c1_i32 = arith.constant 1 : i32
    %c0_27 = arith.constant 0 : index
    %c0_28 = arith.constant 0 : index
    %52 = vector.load %arg7[%c0_27, %c0_28] : memref<8x128xf32, #tpu.memory_space<vmem>>, vector<8x128xf32>
    %c0_29 = arith.constant 0 : index
    %c0_30 = arith.constant 0 : index
    %53 = vector.load %arg3[%c0_29, %c0_30] : memref<128x384xf32, #tpu.memory_space<vmem>>, vector<128x384xf32>
    %cst_31 = arith.constant dense<0.000000e+00> : vector<8x384xf32>
    %54 = tpu.matmul %52, %53, %cst_31 {dimension_numbers = #tpu.dot_dimension_numbers<[1], [0], [0], [1], [0, 0, 1, 1], [], []>} : vector<8x128xf32>, vector<128x384xf32>, vector<8x384xf32> -> vector<8x384xf32>
    %55 = arith.index_cast %c1_i32 : i32 to index
    %c0_32 = arith.constant 0 : index
    %c0_33 = arith.constant 0 : index
    %56 = vector.load %arg8[%55, %c0_32, %c0_33] : memref<4x8x384xf32, #tpu.memory_space<vmem>>, vector<1x8x384xf32>
    %57 = vector.shape_cast %56 : vector<1x8x384xf32> to vector<8x384xf32>
    %58 = vector.extract_strided_slice %57 {offsets = [0, 0], sizes = [8, 128], strides = [1, 1]} : vector<8x384xf32> to vector<8x128xf32>
    %59 = vector.extract_strided_slice %54 {offsets = [0, 0], sizes = [8, 128], strides = [1, 1]} : vector<8x384xf32> to vector<8x128xf32>
    %60 = arith.addf %58, %59 : vector<8x128xf32>
    %61 = arith.negf %60 : vector<8x128xf32>
    %62 = math.exp %61 : vector<8x128xf32>
    %cst_34 = arith.constant 1.000000e+00 : f32
    %63 = vector.broadcast %cst_34 : f32 to vector<8x128xf32>
    %64 = arith.addf %63, %62 : vector<8x128xf32>
    %65 = arith.divf %63, %64 : vector<8x128xf32>
    %66 = vector.extract_strided_slice %57 {offsets = [0, 128], sizes = [8, 128], strides = [1, 1]} : vector<8x384xf32> to vector<8x128xf32>
    %67 = vector.extract_strided_slice %54 {offsets = [0, 128], sizes = [8, 128], strides = [1, 1]} : vector<8x384xf32> to vector<8x128xf32>
    %68 = arith.addf %66, %67 : vector<8x128xf32>
    %69 = arith.negf %68 : vector<8x128xf32>
    %70 = math.exp %69 : vector<8x128xf32>
    %cst_35 = arith.constant 1.000000e+00 : f32
    %71 = vector.broadcast %cst_35 : f32 to vector<8x128xf32>
    %72 = arith.addf %71, %70 : vector<8x128xf32>
    %73 = arith.divf %71, %72 : vector<8x128xf32>
    %74 = vector.extract_strided_slice %57 {offsets = [0, 256], sizes = [8, 128], strides = [1, 1]} : vector<8x384xf32> to vector<8x128xf32>
    %75 = vector.extract_strided_slice %54 {offsets = [0, 256], sizes = [8, 128], strides = [1, 1]} : vector<8x384xf32> to vector<8x128xf32>
    %c0_36 = arith.constant 0 : index
    %c0_37 = arith.constant 0 : index
    %76 = vector.load %arg5[%c0_36, %c0_37] : memref<1x128xf32, #tpu.memory_space<vmem>>, vector<1x128xf32>
    %77 = vector.broadcast %76 : vector<1x128xf32> to vector<8x128xf32>
    %78 = arith.addf %75, %77 : vector<8x128xf32>
    %79 = arith.mulf %65, %78 : vector<8x128xf32>
    %80 = arith.addf %74, %79 : vector<8x128xf32>
    %81 = math.tanh %80 : vector<8x128xf32>
    %cst_38 = arith.constant 1.000000e+00 : f32
    %82 = vector.broadcast %cst_38 : f32 to vector<8x128xf32>
    %83 = arith.subf %82, %73 : vector<8x128xf32>
    %84 = arith.mulf %83, %81 : vector<8x128xf32>
    %85 = arith.mulf %73, %52 : vector<8x128xf32>
    %86 = arith.addf %84, %85 : vector<8x128xf32>
    %c0_39 = arith.constant 0 : index
    %c0_40 = arith.constant 0 : index
    %87 = vector.load %arg7[%c0_39, %c0_40] : memref<8x128xf32, #tpu.memory_space<vmem>>, vector<8x128xf32>
    tpu.vector_store %arg7[%c0_39, %c0_40], %86 {strides = array<i32>} : memref<8x128xf32, #tpu.memory_space<vmem>>, vector<8x128xf32>,
    %88 = arith.index_cast %c1_i32 : i32 to index
    %c0_41 = arith.constant 0 : index
    %c0_42 = arith.constant 0 : index
    %89 = vector.load %arg6[%88, %c0_41, %c0_42] : memref<4x8x128xf32, #tpu.memory_space<vmem>>, vector<1x8x128xf32>
    %90 = vector.shape_cast %89 : vector<1x8x128xf32> to vector<8x128xf32>
    %91 = vector.shape_cast %86 : vector<8x128xf32> to vector<1x8x128xf32>
    tpu.vector_store %arg6[%88, %c0_41, %c0_42], %91 {strides = array<i32>} : memref<4x8x128xf32, #tpu.memory_space<vmem>>, vector<1x8x128xf32>,
    %c2_i32 = arith.constant 2 : i32
    %c0_43 = arith.constant 0 : index
    %c0_44 = arith.constant 0 : index
    %92 = vector.load %arg7[%c0_43, %c0_44] : memref<8x128xf32, #tpu.memory_space<vmem>>, vector<8x128xf32>
    %c0_45 = arith.constant 0 : index
    %c0_46 = arith.constant 0 : index
    %93 = vector.load %arg3[%c0_45, %c0_46] : memref<128x384xf32, #tpu.memory_space<vmem>>, vector<128x384xf32>
    %cst_47 = arith.constant dense<0.000000e+00> : vector<8x384xf32>
    %94 = tpu.matmul %92, %93, %cst_47 {dimension_numbers = #tpu.dot_dimension_numbers<[1], [0], [0], [1], [0, 0, 1, 1], [], []>} : vector<8x128xf32>, vector<128x384xf32>, vector<8x384xf32> -> vector<8x384xf32>
    %95 = arith.index_cast %c2_i32 : i32 to index
    %c0_48 = arith.constant 0 : index
    %c0_49 = arith.constant 0 : index
    %96 = vector.load %arg8[%95, %c0_48, %c0_49] : memref<4x8x384xf32, #tpu.memory_space<vmem>>, vector<1x8x384xf32>
    %97 = vector.shape_cast %96 : vector<1x8x384xf32> to vector<8x384xf32>
    %98 = vector.extract_strided_slice %97 {offsets = [0, 0], sizes = [8, 128], strides = [1, 1]} : vector<8x384xf32> to vector<8x128xf32>
    %99 = vector.extract_strided_slice %94 {offsets = [0, 0], sizes = [8, 128], strides = [1, 1]} : vector<8x384xf32> to vector<8x128xf32>
    %100 = arith.addf %98, %99 : vector<8x128xf32>
    %101 = arith.negf %100 : vector<8x128xf32>
    %102 = math.exp %101 : vector<8x128xf32>
    %cst_50 = arith.constant 1.000000e+00 : f32
    %103 = vector.broadcast %cst_50 : f32 to vector<8x128xf32>
    %104 = arith.addf %103, %102 : vector<8x128xf32>
    %105 = arith.divf %103, %104 : vector<8x128xf32>
    %106 = vector.extract_strided_slice %97 {offsets = [0, 128], sizes = [8, 128], strides = [1, 1]} : vector<8x384xf32> to vector<8x128xf32>
    %107 = vector.extract_strided_slice %94 {offsets = [0, 128], sizes = [8, 128], strides = [1, 1]} : vector<8x384xf32> to vector<8x128xf32>
    %108 = arith.addf %106, %107 : vector<8x128xf32>
    %109 = arith.negf %108 : vector<8x128xf32>
    %110 = math.exp %109 : vector<8x128xf32>
    %cst_51 = arith.constant 1.000000e+00 : f32
    %111 = vector.broadcast %cst_51 : f32 to vector<8x128xf32>
    %112 = arith.addf %111, %110 : vector<8x128xf32>
    %113 = arith.divf %111, %112 : vector<8x128xf32>
    %114 = vector.extract_strided_slice %97 {offsets = [0, 256], sizes = [8, 128], strides = [1, 1]} : vector<8x384xf32> to vector<8x128xf32>
    %115 = vector.extract_strided_slice %94 {offsets = [0, 256], sizes = [8, 128], strides = [1, 1]} : vector<8x384xf32> to vector<8x128xf32>
    %c0_52 = arith.constant 0 : index
    %c0_53 = arith.constant 0 : index
    %116 = vector.load %arg5[%c0_52, %c0_53] : memref<1x128xf32, #tpu.memory_space<vmem>>, vector<1x128xf32>
    %117 = vector.broadcast %116 : vector<1x128xf32> to vector<8x128xf32>
    %118 = arith.addf %115, %117 : vector<8x128xf32>
    %119 = arith.mulf %105, %118 : vector<8x128xf32>
    %120 = arith.addf %114, %119 : vector<8x128xf32>
    %121 = math.tanh %120 : vector<8x128xf32>
    %cst_54 = arith.constant 1.000000e+00 : f32
    %122 = vector.broadcast %cst_54 : f32 to vector<8x128xf32>
    %123 = arith.subf %122, %113 : vector<8x128xf32>
    %124 = arith.mulf %123, %121 : vector<8x128xf32>
    %125 = arith.mulf %113, %92 : vector<8x128xf32>
    %126 = arith.addf %124, %125 : vector<8x128xf32>
    %c0_55 = arith.constant 0 : index
    %c0_56 = arith.constant 0 : index
    %127 = vector.load %arg7[%c0_55, %c0_56] : memref<8x128xf32, #tpu.memory_space<vmem>>, vector<8x128xf32>
    tpu.vector_store %arg7[%c0_55, %c0_56], %126 {strides = array<i32>} : memref<8x128xf32, #tpu.memory_space<vmem>>, vector<8x128xf32>,
    %128 = arith.index_cast %c2_i32 : i32 to index
    %c0_57 = arith.constant 0 : index
    %c0_58 = arith.constant 0 : index
    %129 = vector.load %arg6[%128, %c0_57, %c0_58] : memref<4x8x128xf32, #tpu.memory_space<vmem>>, vector<1x8x128xf32>
    %130 = vector.shape_cast %129 : vector<1x8x128xf32> to vector<8x128xf32>
    %131 = vector.shape_cast %126 : vector<8x128xf32> to vector<1x8x128xf32>
    tpu.vector_store %arg6[%128, %c0_57, %c0_58], %131 {strides = array<i32>} : memref<4x8x128xf32, #tpu.memory_space<vmem>>, vector<1x8x128xf32>,
    %c3_i32 = arith.constant 3 : i32
    %c0_59 = arith.constant 0 : index
    %c0_60 = arith.constant 0 : index
    %132 = vector.load %arg7[%c0_59, %c0_60] : memref<8x128xf32, #tpu.memory_space<vmem>>, vector<8x128xf32>
    %c0_61 = arith.constant 0 : index
    %c0_62 = arith.constant 0 : index
    %133 = vector.load %arg3[%c0_61, %c0_62] : memref<128x384xf32, #tpu.memory_space<vmem>>, vector<128x384xf32>
    %cst_63 = arith.constant dense<0.000000e+00> : vector<8x384xf32>
    %134 = tpu.matmul %132, %133, %cst_63 {dimension_numbers = #tpu.dot_dimension_numbers<[1], [0], [0], [1], [0, 0, 1, 1], [], []>} : vector<8x128xf32>, vector<128x384xf32>, vector<8x384xf32> -> vector<8x384xf32>
    %135 = arith.index_cast %c3_i32 : i32 to index
    %c0_64 = arith.constant 0 : index
    %c0_65 = arith.constant 0 : index
    %136 = vector.load %arg8[%135, %c0_64, %c0_65] : memref<4x8x384xf32, #tpu.memory_space<vmem>>, vector<1x8x384xf32>
    %137 = vector.shape_cast %136 : vector<1x8x384xf32> to vector<8x384xf32>
    %138 = vector.extract_strided_slice %137 {offsets = [0, 0], sizes = [8, 128], strides = [1, 1]} : vector<8x384xf32> to vector<8x128xf32>
    %139 = vector.extract_strided_slice %134 {offsets = [0, 0], sizes = [8, 128], strides = [1, 1]} : vector<8x384xf32> to vector<8x128xf32>
    %140 = arith.addf %138, %139 : vector<8x128xf32>
    %141 = arith.negf %140 : vector<8x128xf32>
    %142 = math.exp %141 : vector<8x128xf32>
    %cst_66 = arith.constant 1.000000e+00 : f32
    %143 = vector.broadcast %cst_66 : f32 to vector<8x128xf32>
    %144 = arith.addf %143, %142 : vector<8x128xf32>
    %145 = arith.divf %143, %144 : vector<8x128xf32>
    %146 = vector.extract_strided_slice %137 {offsets = [0, 128], sizes = [8, 128], strides = [1, 1]} : vector<8x384xf32> to vector<8x128xf32>
    %147 = vector.extract_strided_slice %134 {offsets = [0, 128], sizes = [8, 128], strides = [1, 1]} : vector<8x384xf32> to vector<8x128xf32>
    %148 = arith.addf %146, %147 : vector<8x128xf32>
    %149 = arith.negf %148 : vector<8x128xf32>
    %150 = math.exp %149 : vector<8x128xf32>
    %cst_67 = arith.constant 1.000000e+00 : f32
    %151 = vector.broadcast %cst_67 : f32 to vector<8x128xf32>
    %152 = arith.addf %151, %150 : vector<8x128xf32>
    %153 = arith.divf %151, %152 : vector<8x128xf32>
    %154 = vector.extract_strided_slice %137 {offsets = [0, 256], sizes = [8, 128], strides = [1, 1]} : vector<8x384xf32> to vector<8x128xf32>
    %155 = vector.extract_strided_slice %134 {offsets = [0, 256], sizes = [8, 128], strides = [1, 1]} : vector<8x384xf32> to vector<8x128xf32>
    %c0_68 = arith.constant 0 : index
    %c0_69 = arith.constant 0 : index
    %156 = vector.load %arg5[%c0_68, %c0_69] : memref<1x128xf32, #tpu.memory_space<vmem>>, vector<1x128xf32>
    %157 = vector.broadcast %156 : vector<1x128xf32> to vector<8x128xf32>
    %158 = arith.addf %155, %157 : vector<8x128xf32>
    %159 = arith.mulf %145, %158 : vector<8x128xf32>
    %160 = arith.addf %154, %159 : vector<8x128xf32>
    %161 = math.tanh %160 : vector<8x128xf32>
    %cst_70 = arith.constant 1.000000e+00 : f32
    %162 = vector.broadcast %cst_70 : f32 to vector<8x128xf32>
    %163 = arith.subf %162, %153 : vector<8x128xf32>
    %164 = arith.mulf %163, %161 : vector<8x128xf32>
    %165 = arith.mulf %153, %132 : vector<8x128xf32>
    %166 = arith.addf %164, %165 : vector<8x128xf32>
    %c0_71 = arith.constant 0 : index
    %c0_72 = arith.constant 0 : index
    %167 = vector.load %arg7[%c0_71, %c0_72] : memref<8x128xf32, #tpu.memory_space<vmem>>, vector<8x128xf32>
    tpu.vector_store %arg7[%c0_71, %c0_72], %166 {strides = array<i32>} : memref<8x128xf32, #tpu.memory_space<vmem>>, vector<8x128xf32>,
    %168 = arith.index_cast %c3_i32 : i32 to index
    %c0_73 = arith.constant 0 : index
    %c0_74 = arith.constant 0 : index
    %169 = vector.load %arg6[%168, %c0_73, %c0_74] : memref<4x8x128xf32, #tpu.memory_space<vmem>>, vector<1x8x128xf32>
    %170 = vector.shape_cast %169 : vector<1x8x128xf32> to vector<8x128xf32>
    %171 = vector.shape_cast %166 : vector<8x128xf32> to vector<1x8x128xf32>
    tpu.vector_store %arg6[%168, %c0_73, %c0_74], %171 {strides = array<i32>} : memref<4x8x128xf32, #tpu.memory_space<vmem>>, vector<1x8x128xf32>,
    %c4_i32 = arith.constant 4 : i32
    return
  }
  func.func @transform_0(%arg0: i32) -> (i32, i32, i32) {
    %c0_i32 = arith.constant 0 : i32
    %c0_i32_0 = arith.constant 0 : i32
    %c0_i32_1 = arith.constant 0 : i32
    return %arg0, %c0_i32, %c0_i32_0 : i32, i32, i32
  }
  func.func @transform_1(%arg0: i32) -> (i32, i32) {
    %c0_i32 = arith.constant 0 : i32
    %c0_i32_0 = arith.constant 0 : i32
    %c0_i32_1 = arith.constant 0 : i32
    return %c0_i32, %c0_i32_0 : i32, i32
  }
  func.func @transform_2(%arg0: i32) -> (i32, i32) {
    %c0_i32 = arith.constant 0 : i32
    %c0_i32_0 = arith.constant 0 : i32
    %c0_i32_1 = arith.constant 0 : i32
    return %c0_i32, %c0_i32_0 : i32, i32
  }
  func.func @transform_3(%arg0: i32) -> (i32, i32) {
    %c0_i32 = arith.constant 0 : i32
    %c0_i32_0 = arith.constant 0 : i32
    %c0_i32_1 = arith.constant 0 : i32
    return %c0_i32, %c0_i32_0 : i32, i32
  }
  func.func @transform_4(%arg0: i32) -> (i32, i32) {
    %c0_i32 = arith.constant 0 : i32
    %c0_i32_0 = arith.constant 0 : i32
    %c0_i32_1 = arith.constant 0 : i32
    return %c0_i32, %c0_i32_0 : i32, i32
  }
  func.func @transform_5(%arg0: i32) -> (i32, i32, i32) {
    %c0_i32 = arith.constant 0 : i32
    %c0_i32_0 = arith.constant 0 : i32
    %c0_i32_1 = arith.constant 0 : i32
    return %arg0, %c0_i32, %c0_i32_0 : i32, i32, i32
  }
}

module attributes {stable_mosaic.version = 11 : i64} {
  func.func @gru_final_fc_kernel(%arg0: i32, %arg1: memref<4x8x128xf32, #tpu.memory_space<vmem>>, %arg2: memref<128x384xf32, #tpu.memory_space<vmem>>, %arg3: memref<128x384xf32, #tpu.memory_space<vmem>>, %arg4: memref<1x384xf32, #tpu.memory_space<vmem>>, %arg5: memref<1x128xf32, #tpu.memory_space<vmem>>, %arg6: memref<128x128xf32, #tpu.memory_space<vmem>>, %arg7: memref<1x128xf32, #tpu.memory_space<vmem>>, %arg8: memref<8x128xf32, #tpu.memory_space<vmem>>, %arg9: memref<8x128xf32, #tpu.memory_space<vmem>>, %arg10: memref<4x8x384xf32, #tpu.memory_space<vmem>>) attributes {dimension_semantics = [#tpu.dimension_semantics<arbitrary>], iteration_bounds = array<i64: 2>, scalar_prefetch = 0 : i64, scratch_operands = 2 : i64, tpu.core_type = #tpu.core_type<tc>, window_params = [{transform_indices = @transform_0, window_bounds = array<i64: 4, 8, 128>}, {pipeline_mode = #tpu.pipeline_mode<synchronous>, transform_indices = @transform_1, window_bounds = array<i64: 128, 384>}, {pipeline_mode = #tpu.pipeline_mode<synchronous>, transform_indices = @transform_2, window_bounds = array<i64: 128, 384>}, {pipeline_mode = #tpu.pipeline_mode<synchronous>, transform_indices = @transform_3, window_bounds = array<i64: 1, 384>}, {pipeline_mode = #tpu.pipeline_mode<synchronous>, transform_indices = @transform_4, window_bounds = array<i64: 1, 128>}, {pipeline_mode = #tpu.pipeline_mode<synchronous>, transform_indices = @transform_5, window_bounds = array<i64: 128, 128>}, {pipeline_mode = #tpu.pipeline_mode<synchronous>, transform_indices = @transform_6, window_bounds = array<i64: 1, 128>}, {pipeline_mode = #tpu.pipeline_mode<synchronous>, transform_indices = @transform_7, window_bounds = array<i64: 8, 128>}]} {
    %c0_i32 = arith.constant 0 : i32
    %0 = arith.cmpi eq, %arg0, %c0_i32 : i32
    %1 = arith.extui %0 : i1 to i32
    %c0_i32_0 = arith.constant 0 : i32
    %2 = arith.cmpi ne, %1, %c0_i32_0 : i32
    scf.if %2 {
      %cst_69 = arith.constant 0.000000e+00 : f32
      %159 = vector.broadcast %cst_69 : f32 to vector<8x128xf32>
      %c0_70 = arith.constant 0 : index
      %c0_71 = arith.constant 0 : index
      %160 = vector.load %arg9[%c0_70, %c0_71] : memref<8x128xf32, #tpu.memory_space<vmem>>, vector<8x128xf32>
      tpu.vector_store %arg9[%c0_70, %c0_71], %159 {strides = array<i32>} : memref<8x128xf32, #tpu.memory_space<vmem>>, vector<8x128xf32>,
    } else {
    }
    %c0 = arith.constant 0 : index
    %c0_1 = arith.constant 0 : index
    %c0_2 = arith.constant 0 : index
    %3 = vector.load %arg1[%c0, %c0_1, %c0_2] : memref<4x8x128xf32, #tpu.memory_space<vmem>>, vector<4x8x128xf32>
    %4 = vector.shape_cast %3 : vector<4x8x128xf32> to vector<32x128xf32>
    %c0_3 = arith.constant 0 : index
    %c0_4 = arith.constant 0 : index
    %5 = vector.load %arg2[%c0_3, %c0_4] : memref<128x384xf32, #tpu.memory_space<vmem>>, vector<128x384xf32>
    %cst = arith.constant dense<0.000000e+00> : vector<32x384xf32>
    %6 = tpu.matmul %4, %5, %cst {dimension_numbers = #tpu.dot_dimension_numbers<[1], [0], [0], [1], [0, 0, 1, 1], [], []>} : vector<32x128xf32>, vector<128x384xf32>, vector<32x384xf32> -> vector<32x384xf32>
    %c0_5 = arith.constant 0 : index
    %c0_6 = arith.constant 0 : index
    %7 = vector.load %arg4[%c0_5, %c0_6] : memref<1x384xf32, #tpu.memory_space<vmem>>, vector<1x384xf32>
    %8 = vector.broadcast %7 : vector<1x384xf32> to vector<32x384xf32>
    %9 = arith.addf %6, %8 : vector<32x384xf32>
    %10 = vector.shape_cast %9 : vector<32x384xf32> to vector<4x8x384xf32>
    %c0_7 = arith.constant 0 : index
    %c0_8 = arith.constant 0 : index
    %c0_9 = arith.constant 0 : index
    %11 = vector.load %arg10[%c0_7, %c0_8, %c0_9] : memref<4x8x384xf32, #tpu.memory_space<vmem>>, vector<4x8x384xf32>
    tpu.vector_store %arg10[%c0_7, %c0_8, %c0_9], %10 {strides = array<i32>} : memref<4x8x384xf32, #tpu.memory_space<vmem>>, vector<4x8x384xf32>,
    %c0_i32_10 = arith.constant 0 : i32
    %c0_11 = arith.constant 0 : index
    %c0_12 = arith.constant 0 : index
    %12 = vector.load %arg9[%c0_11, %c0_12] : memref<8x128xf32, #tpu.memory_space<vmem>>, vector<8x128xf32>
    %c0_13 = arith.constant 0 : index
    %c0_14 = arith.constant 0 : index
    %13 = vector.load %arg3[%c0_13, %c0_14] : memref<128x384xf32, #tpu.memory_space<vmem>>, vector<128x384xf32>
    %cst_15 = arith.constant dense<0.000000e+00> : vector<8x384xf32>
    %14 = tpu.matmul %12, %13, %cst_15 {dimension_numbers = #tpu.dot_dimension_numbers<[1], [0], [0], [1], [0, 0, 1, 1], [], []>} : vector<8x128xf32>, vector<128x384xf32>, vector<8x384xf32> -> vector<8x384xf32>
    %15 = arith.index_cast %c0_i32_10 : i32 to index
    %c0_16 = arith.constant 0 : index
    %c0_17 = arith.constant 0 : index
    %16 = vector.load %arg10[%15, %c0_16, %c0_17] : memref<4x8x384xf32, #tpu.memory_space<vmem>>, vector<1x8x384xf32>
    %17 = vector.shape_cast %16 : vector<1x8x384xf32> to vector<8x384xf32>
    %18 = vector.extract_strided_slice %17 {offsets = [0, 0], sizes = [8, 128], strides = [1, 1]} : vector<8x384xf32> to vector<8x128xf32>
    %19 = vector.extract_strided_slice %14 {offsets = [0, 0], sizes = [8, 128], strides = [1, 1]} : vector<8x384xf32> to vector<8x128xf32>
    %20 = arith.addf %18, %19 : vector<8x128xf32>
    %21 = arith.negf %20 : vector<8x128xf32>
    %22 = math.exp %21 : vector<8x128xf32>
    %cst_18 = arith.constant 1.000000e+00 : f32
    %23 = vector.broadcast %cst_18 : f32 to vector<8x128xf32>
    %24 = arith.addf %23, %22 : vector<8x128xf32>
    %25 = arith.divf %23, %24 : vector<8x128xf32>
    %26 = vector.extract_strided_slice %17 {offsets = [0, 128], sizes = [8, 128], strides = [1, 1]} : vector<8x384xf32> to vector<8x128xf32>
    %27 = vector.extract_strided_slice %14 {offsets = [0, 128], sizes = [8, 128], strides = [1, 1]} : vector<8x384xf32> to vector<8x128xf32>
    %28 = arith.addf %26, %27 : vector<8x128xf32>
    %29 = arith.negf %28 : vector<8x128xf32>
    %30 = math.exp %29 : vector<8x128xf32>
    %cst_19 = arith.constant 1.000000e+00 : f32
    %31 = vector.broadcast %cst_19 : f32 to vector<8x128xf32>
    %32 = arith.addf %31, %30 : vector<8x128xf32>
    %33 = arith.divf %31, %32 : vector<8x128xf32>
    %34 = vector.extract_strided_slice %17 {offsets = [0, 256], sizes = [8, 128], strides = [1, 1]} : vector<8x384xf32> to vector<8x128xf32>
    %35 = vector.extract_strided_slice %14 {offsets = [0, 256], sizes = [8, 128], strides = [1, 1]} : vector<8x384xf32> to vector<8x128xf32>
    %c0_20 = arith.constant 0 : index
    %c0_21 = arith.constant 0 : index
    %36 = vector.load %arg5[%c0_20, %c0_21] : memref<1x128xf32, #tpu.memory_space<vmem>>, vector<1x128xf32>
    %37 = vector.broadcast %36 : vector<1x128xf32> to vector<8x128xf32>
    %38 = arith.addf %35, %37 : vector<8x128xf32>
    %39 = arith.mulf %25, %38 : vector<8x128xf32>
    %40 = arith.addf %34, %39 : vector<8x128xf32>
    %41 = math.tanh %40 : vector<8x128xf32>
    %cst_22 = arith.constant 1.000000e+00 : f32
    %42 = vector.broadcast %cst_22 : f32 to vector<8x128xf32>
    %43 = arith.subf %42, %33 : vector<8x128xf32>
    %44 = arith.mulf %43, %41 : vector<8x128xf32>
    %45 = arith.mulf %33, %12 : vector<8x128xf32>
    %46 = arith.addf %44, %45 : vector<8x128xf32>
    %c0_23 = arith.constant 0 : index
    %c0_24 = arith.constant 0 : index
    %47 = vector.load %arg9[%c0_23, %c0_24] : memref<8x128xf32, #tpu.memory_space<vmem>>, vector<8x128xf32>
    tpu.vector_store %arg9[%c0_23, %c0_24], %46 {strides = array<i32>} : memref<8x128xf32, #tpu.memory_space<vmem>>, vector<8x128xf32>,
    %c1_i32 = arith.constant 1 : i32
    %c0_25 = arith.constant 0 : index
    %c0_26 = arith.constant 0 : index
    %48 = vector.load %arg9[%c0_25, %c0_26] : memref<8x128xf32, #tpu.memory_space<vmem>>, vector<8x128xf32>
    %c0_27 = arith.constant 0 : index
    %c0_28 = arith.constant 0 : index
    %49 = vector.load %arg3[%c0_27, %c0_28] : memref<128x384xf32, #tpu.memory_space<vmem>>, vector<128x384xf32>
    %cst_29 = arith.constant dense<0.000000e+00> : vector<8x384xf32>
    %50 = tpu.matmul %48, %49, %cst_29 {dimension_numbers = #tpu.dot_dimension_numbers<[1], [0], [0], [1], [0, 0, 1, 1], [], []>} : vector<8x128xf32>, vector<128x384xf32>, vector<8x384xf32> -> vector<8x384xf32>
    %51 = arith.index_cast %c1_i32 : i32 to index
    %c0_30 = arith.constant 0 : index
    %c0_31 = arith.constant 0 : index
    %52 = vector.load %arg10[%51, %c0_30, %c0_31] : memref<4x8x384xf32, #tpu.memory_space<vmem>>, vector<1x8x384xf32>
    %53 = vector.shape_cast %52 : vector<1x8x384xf32> to vector<8x384xf32>
    %54 = vector.extract_strided_slice %53 {offsets = [0, 0], sizes = [8, 128], strides = [1, 1]} : vector<8x384xf32> to vector<8x128xf32>
    %55 = vector.extract_strided_slice %50 {offsets = [0, 0], sizes = [8, 128], strides = [1, 1]} : vector<8x384xf32> to vector<8x128xf32>
    %56 = arith.addf %54, %55 : vector<8x128xf32>
    %57 = arith.negf %56 : vector<8x128xf32>
    %58 = math.exp %57 : vector<8x128xf32>
    %cst_32 = arith.constant 1.000000e+00 : f32
    %59 = vector.broadcast %cst_32 : f32 to vector<8x128xf32>
    %60 = arith.addf %59, %58 : vector<8x128xf32>
    %61 = arith.divf %59, %60 : vector<8x128xf32>
    %62 = vector.extract_strided_slice %53 {offsets = [0, 128], sizes = [8, 128], strides = [1, 1]} : vector<8x384xf32> to vector<8x128xf32>
    %63 = vector.extract_strided_slice %50 {offsets = [0, 128], sizes = [8, 128], strides = [1, 1]} : vector<8x384xf32> to vector<8x128xf32>
    %64 = arith.addf %62, %63 : vector<8x128xf32>
    %65 = arith.negf %64 : vector<8x128xf32>
    %66 = math.exp %65 : vector<8x128xf32>
    %cst_33 = arith.constant 1.000000e+00 : f32
    %67 = vector.broadcast %cst_33 : f32 to vector<8x128xf32>
    %68 = arith.addf %67, %66 : vector<8x128xf32>
    %69 = arith.divf %67, %68 : vector<8x128xf32>
    %70 = vector.extract_strided_slice %53 {offsets = [0, 256], sizes = [8, 128], strides = [1, 1]} : vector<8x384xf32> to vector<8x128xf32>
    %71 = vector.extract_strided_slice %50 {offsets = [0, 256], sizes = [8, 128], strides = [1, 1]} : vector<8x384xf32> to vector<8x128xf32>
    %c0_34 = arith.constant 0 : index
    %c0_35 = arith.constant 0 : index
    %72 = vector.load %arg5[%c0_34, %c0_35] : memref<1x128xf32, #tpu.memory_space<vmem>>, vector<1x128xf32>
    %73 = vector.broadcast %72 : vector<1x128xf32> to vector<8x128xf32>
    %74 = arith.addf %71, %73 : vector<8x128xf32>
    %75 = arith.mulf %61, %74 : vector<8x128xf32>
    %76 = arith.addf %70, %75 : vector<8x128xf32>
    %77 = math.tanh %76 : vector<8x128xf32>
    %cst_36 = arith.constant 1.000000e+00 : f32
    %78 = vector.broadcast %cst_36 : f32 to vector<8x128xf32>
    %79 = arith.subf %78, %69 : vector<8x128xf32>
    %80 = arith.mulf %79, %77 : vector<8x128xf32>
    %81 = arith.mulf %69, %48 : vector<8x128xf32>
    %82 = arith.addf %80, %81 : vector<8x128xf32>
    %c0_37 = arith.constant 0 : index
    %c0_38 = arith.constant 0 : index
    %83 = vector.load %arg9[%c0_37, %c0_38] : memref<8x128xf32, #tpu.memory_space<vmem>>, vector<8x128xf32>
    tpu.vector_store %arg9[%c0_37, %c0_38], %82 {strides = array<i32>} : memref<8x128xf32, #tpu.memory_space<vmem>>, vector<8x128xf32>,
    %c2_i32 = arith.constant 2 : i32
    %c0_39 = arith.constant 0 : index
    %c0_40 = arith.constant 0 : index
    %84 = vector.load %arg9[%c0_39, %c0_40] : memref<8x128xf32, #tpu.memory_space<vmem>>, vector<8x128xf32>
    %c0_41 = arith.constant 0 : index
    %c0_42 = arith.constant 0 : index
    %85 = vector.load %arg3[%c0_41, %c0_42] : memref<128x384xf32, #tpu.memory_space<vmem>>, vector<128x384xf32>
    %cst_43 = arith.constant dense<0.000000e+00> : vector<8x384xf32>
    %86 = tpu.matmul %84, %85, %cst_43 {dimension_numbers = #tpu.dot_dimension_numbers<[1], [0], [0], [1], [0, 0, 1, 1], [], []>} : vector<8x128xf32>, vector<128x384xf32>, vector<8x384xf32> -> vector<8x384xf32>
    %87 = arith.index_cast %c2_i32 : i32 to index
    %c0_44 = arith.constant 0 : index
    %c0_45 = arith.constant 0 : index
    %88 = vector.load %arg10[%87, %c0_44, %c0_45] : memref<4x8x384xf32, #tpu.memory_space<vmem>>, vector<1x8x384xf32>
    %89 = vector.shape_cast %88 : vector<1x8x384xf32> to vector<8x384xf32>
    %90 = vector.extract_strided_slice %89 {offsets = [0, 0], sizes = [8, 128], strides = [1, 1]} : vector<8x384xf32> to vector<8x128xf32>
    %91 = vector.extract_strided_slice %86 {offsets = [0, 0], sizes = [8, 128], strides = [1, 1]} : vector<8x384xf32> to vector<8x128xf32>
    %92 = arith.addf %90, %91 : vector<8x128xf32>
    %93 = arith.negf %92 : vector<8x128xf32>
    %94 = math.exp %93 : vector<8x128xf32>
    %cst_46 = arith.constant 1.000000e+00 : f32
    %95 = vector.broadcast %cst_46 : f32 to vector<8x128xf32>
    %96 = arith.addf %95, %94 : vector<8x128xf32>
    %97 = arith.divf %95, %96 : vector<8x128xf32>
    %98 = vector.extract_strided_slice %89 {offsets = [0, 128], sizes = [8, 128], strides = [1, 1]} : vector<8x384xf32> to vector<8x128xf32>
    %99 = vector.extract_strided_slice %86 {offsets = [0, 128], sizes = [8, 128], strides = [1, 1]} : vector<8x384xf32> to vector<8x128xf32>
    %100 = arith.addf %98, %99 : vector<8x128xf32>
    %101 = arith.negf %100 : vector<8x128xf32>
    %102 = math.exp %101 : vector<8x128xf32>
    %cst_47 = arith.constant 1.000000e+00 : f32
    %103 = vector.broadcast %cst_47 : f32 to vector<8x128xf32>
    %104 = arith.addf %103, %102 : vector<8x128xf32>
    %105 = arith.divf %103, %104 : vector<8x128xf32>
    %106 = vector.extract_strided_slice %89 {offsets = [0, 256], sizes = [8, 128], strides = [1, 1]} : vector<8x384xf32> to vector<8x128xf32>
    %107 = vector.extract_strided_slice %86 {offsets = [0, 256], sizes = [8, 128], strides = [1, 1]} : vector<8x384xf32> to vector<8x128xf32>
    %c0_48 = arith.constant 0 : index
    %c0_49 = arith.constant 0 : index
    %108 = vector.load %arg5[%c0_48, %c0_49] : memref<1x128xf32, #tpu.memory_space<vmem>>, vector<1x128xf32>
    %109 = vector.broadcast %108 : vector<1x128xf32> to vector<8x128xf32>
    %110 = arith.addf %107, %109 : vector<8x128xf32>
    %111 = arith.mulf %97, %110 : vector<8x128xf32>
    %112 = arith.addf %106, %111 : vector<8x128xf32>
    %113 = math.tanh %112 : vector<8x128xf32>
    %cst_50 = arith.constant 1.000000e+00 : f32
    %114 = vector.broadcast %cst_50 : f32 to vector<8x128xf32>
    %115 = arith.subf %114, %105 : vector<8x128xf32>
    %116 = arith.mulf %115, %113 : vector<8x128xf32>
    %117 = arith.mulf %105, %84 : vector<8x128xf32>
    %118 = arith.addf %116, %117 : vector<8x128xf32>
    %c0_51 = arith.constant 0 : index
    %c0_52 = arith.constant 0 : index
    %119 = vector.load %arg9[%c0_51, %c0_52] : memref<8x128xf32, #tpu.memory_space<vmem>>, vector<8x128xf32>
    tpu.vector_store %arg9[%c0_51, %c0_52], %118 {strides = array<i32>} : memref<8x128xf32, #tpu.memory_space<vmem>>, vector<8x128xf32>,
    %c3_i32 = arith.constant 3 : i32
    %c0_53 = arith.constant 0 : index
    %c0_54 = arith.constant 0 : index
    %120 = vector.load %arg9[%c0_53, %c0_54] : memref<8x128xf32, #tpu.memory_space<vmem>>, vector<8x128xf32>
    %c0_55 = arith.constant 0 : index
    %c0_56 = arith.constant 0 : index
    %121 = vector.load %arg3[%c0_55, %c0_56] : memref<128x384xf32, #tpu.memory_space<vmem>>, vector<128x384xf32>
    %cst_57 = arith.constant dense<0.000000e+00> : vector<8x384xf32>
    %122 = tpu.matmul %120, %121, %cst_57 {dimension_numbers = #tpu.dot_dimension_numbers<[1], [0], [0], [1], [0, 0, 1, 1], [], []>} : vector<8x128xf32>, vector<128x384xf32>, vector<8x384xf32> -> vector<8x384xf32>
    %123 = arith.index_cast %c3_i32 : i32 to index
    %c0_58 = arith.constant 0 : index
    %c0_59 = arith.constant 0 : index
    %124 = vector.load %arg10[%123, %c0_58, %c0_59] : memref<4x8x384xf32, #tpu.memory_space<vmem>>, vector<1x8x384xf32>
    %125 = vector.shape_cast %124 : vector<1x8x384xf32> to vector<8x384xf32>
    %126 = vector.extract_strided_slice %125 {offsets = [0, 0], sizes = [8, 128], strides = [1, 1]} : vector<8x384xf32> to vector<8x128xf32>
    %127 = vector.extract_strided_slice %122 {offsets = [0, 0], sizes = [8, 128], strides = [1, 1]} : vector<8x384xf32> to vector<8x128xf32>
    %128 = arith.addf %126, %127 : vector<8x128xf32>
    %129 = arith.negf %128 : vector<8x128xf32>
    %130 = math.exp %129 : vector<8x128xf32>
    %cst_60 = arith.constant 1.000000e+00 : f32
    %131 = vector.broadcast %cst_60 : f32 to vector<8x128xf32>
    %132 = arith.addf %131, %130 : vector<8x128xf32>
    %133 = arith.divf %131, %132 : vector<8x128xf32>
    %134 = vector.extract_strided_slice %125 {offsets = [0, 128], sizes = [8, 128], strides = [1, 1]} : vector<8x384xf32> to vector<8x128xf32>
    %135 = vector.extract_strided_slice %122 {offsets = [0, 128], sizes = [8, 128], strides = [1, 1]} : vector<8x384xf32> to vector<8x128xf32>
    %136 = arith.addf %134, %135 : vector<8x128xf32>
    %137 = arith.negf %136 : vector<8x128xf32>
    %138 = math.exp %137 : vector<8x128xf32>
    %cst_61 = arith.constant 1.000000e+00 : f32
    %139 = vector.broadcast %cst_61 : f32 to vector<8x128xf32>
    %140 = arith.addf %139, %138 : vector<8x128xf32>
    %141 = arith.divf %139, %140 : vector<8x128xf32>
    %142 = vector.extract_strided_slice %125 {offsets = [0, 256], sizes = [8, 128], strides = [1, 1]} : vector<8x384xf32> to vector<8x128xf32>
    %143 = vector.extract_strided_slice %122 {offsets = [0, 256], sizes = [8, 128], strides = [1, 1]} : vector<8x384xf32> to vector<8x128xf32>
    %c0_62 = arith.constant 0 : index
    %c0_63 = arith.constant 0 : index
    %144 = vector.load %arg5[%c0_62, %c0_63] : memref<1x128xf32, #tpu.memory_space<vmem>>, vector<1x128xf32>
    %145 = vector.broadcast %144 : vector<1x128xf32> to vector<8x128xf32>
    %146 = arith.addf %143, %145 : vector<8x128xf32>
    %147 = arith.mulf %133, %146 : vector<8x128xf32>
    %148 = arith.addf %142, %147 : vector<8x128xf32>
    %149 = math.tanh %148 : vector<8x128xf32>
    %cst_64 = arith.constant 1.000000e+00 : f32
    %150 = vector.broadcast %cst_64 : f32 to vector<8x128xf32>
    %151 = arith.subf %150, %141 : vector<8x128xf32>
    %152 = arith.mulf %151, %149 : vector<8x128xf32>
    %153 = arith.mulf %141, %120 : vector<8x128xf32>
    %154 = arith.addf %152, %153 : vector<8x128xf32>
    %c0_65 = arith.constant 0 : index
    %c0_66 = arith.constant 0 : index
    %155 = vector.load %arg9[%c0_65, %c0_66] : memref<8x128xf32, #tpu.memory_space<vmem>>, vector<8x128xf32>
    tpu.vector_store %arg9[%c0_65, %c0_66], %154 {strides = array<i32>} : memref<8x128xf32, #tpu.memory_space<vmem>>, vector<8x128xf32>,
    %c4_i32 = arith.constant 4 : i32
    %c1_i32_67 = arith.constant 1 : i32
    %156 = arith.cmpi eq, %arg0, %c1_i32_67 : i32
    %157 = arith.extui %156 : i1 to i32
    %c0_i32_68 = arith.constant 0 : i32
    %158 = arith.cmpi ne, %157, %c0_i32_68 : i32
    scf.if %158 {
      %c0_69 = arith.constant 0 : index
      %c0_70 = arith.constant 0 : index
      %159 = vector.load %arg9[%c0_69, %c0_70] : memref<8x128xf32, #tpu.memory_space<vmem>>, vector<8x128xf32>
      %c0_71 = arith.constant 0 : index
      %c0_72 = arith.constant 0 : index
      %160 = vector.load %arg6[%c0_71, %c0_72] : memref<128x128xf32, #tpu.memory_space<vmem>>, vector<128x128xf32>
      %cst_73 = arith.constant dense<0.000000e+00> : vector<8x128xf32>
      %161 = tpu.matmul %159, %160, %cst_73 {dimension_numbers = #tpu.dot_dimension_numbers<[1], [0], [0], [1], [0, 0, 1, 1], [], []>} : vector<8x128xf32>, vector<128x128xf32>, vector<8x128xf32> -> vector<8x128xf32>
      %c0_74 = arith.constant 0 : index
      %c0_75 = arith.constant 0 : index
      %162 = vector.load %arg7[%c0_74, %c0_75] : memref<1x128xf32, #tpu.memory_space<vmem>>, vector<1x128xf32>
      %163 = vector.broadcast %162 : vector<1x128xf32> to vector<8x128xf32>
      %164 = arith.addf %161, %163 : vector<8x128xf32>
      %c0_76 = arith.constant 0 : index
      %c0_77 = arith.constant 0 : index
      %165 = vector.load %arg8[%c0_76, %c0_77] : memref<8x128xf32, #tpu.memory_space<vmem>>, vector<8x128xf32>
      tpu.vector_store %arg8[%c0_76, %c0_77], %164 {strides = array<i32>} : memref<8x128xf32, #tpu.memory_space<vmem>>, vector<8x128xf32>,
    } else {
    }
    return
  }
  func.func @transform_0(%arg0: i32) -> (i32, i32, i32) {
    %c0_i32 = arith.constant 0 : i32
    %c0_i32_0 = arith.constant 0 : i32
    %c0_i32_1 = arith.constant 0 : i32
    return %arg0, %c0_i32, %c0_i32_0 : i32, i32, i32
  }
  func.func @transform_1(%arg0: i32) -> (i32, i32) {
    %c0_i32 = arith.constant 0 : i32
    %c0_i32_0 = arith.constant 0 : i32
    %c0_i32_1 = arith.constant 0 : i32
    return %c0_i32, %c0_i32_0 : i32, i32
  }
  func.func @transform_2(%arg0: i32) -> (i32, i32) {
    %c0_i32 = arith.constant 0 : i32
    %c0_i32_0 = arith.constant 0 : i32
    %c0_i32_1 = arith.constant 0 : i32
    return %c0_i32, %c0_i32_0 : i32, i32
  }
  func.func @transform_3(%arg0: i32) -> (i32, i32) {
    %c0_i32 = arith.constant 0 : i32
    %c0_i32_0 = arith.constant 0 : i32
    %c0_i32_1 = arith.constant 0 : i32
    return %c0_i32, %c0_i32_0 : i32, i32
  }
  func.func @transform_4(%arg0: i32) -> (i32, i32) {
    %c0_i32 = arith.constant 0 : i32
    %c0_i32_0 = arith.constant 0 : i32
    %c0_i32_1 = arith.constant 0 : i32
    return %c0_i32, %c0_i32_0 : i32, i32
  }
  func.func @transform_5(%arg0: i32) -> (i32, i32) {
    %c0_i32 = arith.constant 0 : i32
    %c0_i32_0 = arith.constant 0 : i32
    %c0_i32_1 = arith.constant 0 : i32
    return %c0_i32, %c0_i32_0 : i32, i32
  }
  func.func @transform_6(%arg0: i32) -> (i32, i32) {
    %c0_i32 = arith.constant 0 : i32
    %c0_i32_0 = arith.constant 0 : i32
    %c0_i32_1 = arith.constant 0 : i32
    return %c0_i32, %c0_i32_0 : i32, i32
  }
  func.func @transform_7(%arg0: i32) -> (i32, i32) {
    %c0_i32 = arith.constant 0 : i32
    %c0_i32_0 = arith.constant 0 : i32
    %c0_i32_1 = arith.constant 0 : i32
    return %c0_i32, %c0_i32_0 : i32, i32
  }
}

</mosaic_0001>

<llo_original>
// kernel: _lambda_.2
$region0: #{_lambda_.2}
  #allocation0 [shape = 'u32[]', space=smem, size = 0x4, offset = 0x4, fixed_abs, tag = 'smem constant byte address 0x4 - core index']
  #allocation1 [shape = 'u32[144,128]{1,0:T(1,128)}', space=vmem, size = 0x12000, scoped, tag = 'internal scratch']
  #allocation2 [shape = 'f32[8,128]{1,0:T(8,128)}', space=vmem, size = 0x1000, scoped, tag = 'scratch operand']
  #allocation3 [shape = 'f32[4,8,384]{2,1,0:T(8,128)}', space=vmem, size = 0xc000, scoped, tag = 'scratch operand']
  %s0 = inlined_call_operand.vmem [shape: f32[8,8,128], index: 0, kind: input, shape index: {}]
  %s1 = inlined_call_operand.hbm [shape: f32[128,384], index: 1, kind: input, shape index: {}]
  %s2 = inlined_call_operand.hbm [shape: f32[128,384], index: 2, kind: input, shape index: {}]
  %s3 = inlined_call_operand.vmem [shape: f32[1,384], index: 3, kind: input, shape index: {}]
  %s4 = inlined_call_operand.vmem [shape: f32[1,128], index: 4, kind: input, shape index: {}]
  %s5 = inlined_call_operand.vmem [shape: f32[8,8,128], index: 5, kind: output, shape index: {}]
  %s6 = sld [smem:[#allocation0]]
  $region65: #{_lambda_.2} parent=0
    _
  %s8 = ssub.s32 1, %s6
  %s9 = scalar_select 0, %s8, %s6
  $region1: #{_lambda_.2} parent=0
    #allocation4 [shape = 'u8[196608]{0}', space=vmem, size = 0x30000, scoped, tag = 'input window, operand 1, single buffered']
    #allocation5 [shape = 's32[2]{0}', space=sflag, size = 0x8, scoped, tag = 'scoped memory for _lambda_.2']
    #allocation6 [shape = 'u8[196608]{0}', space=vmem, size = 0x30000, scoped, tag = 'input window, operand 2, single buffered']
    #allocation7 [shape = 's32[1]{0}', space=sflag, size = 0x4, scoped, tag = 'scoped memory for _lambda_.2']
    %10 = vsyncpa [#allocation5], 0
    %11 = vsyncpa [#allocation7], 0
    loop: start=0, step=1, limit=4
    $region2: #{_lambda_.2} parent=1 // loop_pre_header
      _
    $region3: #{_lambda_.2} parent=1 // loop_header
      %s13 = sphi 0, %s17
      %p14 = scmp.ge.s32.totalorder %s13, 4
      %s23 = sphi 0, %s25
      %s26 = sphi 0, %s23
      %s27 = sphi 0, %s26
      %s43 = sphi 0, %s27
      %s47 = sphi 0, %s47
      %s49 = sphi 0, %s47
      %s50 = sphi 0, %s49
      %s64 = sphi 0, %s50
      %s68 = sphi 0, %s68
      %s70 = sphi 0, %s68
      %s71 = sphi 0, %s70
      %s85 = sphi 0, %s71
      %s89 = sphi 0, %s89
      %s91 = sphi 0, %s89
      %s92 = sphi 0, %s91
      %s106 = sphi 0, %s92
      %s110 = sphi 0, %s110
      %s112 = sphi 0, %s110
      %s113 = sphi 0, %s112
      %s127 = sphi 0, %s113
      %s133 = sphi 0, %s135
      %s136 = sphi 0, %s133
      %s137 = sphi 0, %s136
      %s153 = sphi 0, %s137
    $region4: #{_lambda_.2} parent=1 // loop_header_branch
      %16 = sbr.rel (%p14) target = $region8
    $region5: #{_lambda_.2} parent=1 // loop_body
      %s18 = ssub.s32 %s13, 1
      %s19 = ssub.s32 %s13, 2
      %s20 = sadd.s32 %s13, 1
      %s21 = ssub.s32 %s13, %s20
      %p22 = scmp.eq.s32.totalorder %s21, 0
      %s24 = sadd.s32 %s23, 1
      %s25 = scalar_select %p22, %s23, %s24
      %p28 = pneg %p22
      %p29 = scmp.eq.s32.totalorder %s13, 1
      %p30 = por %p28, %p29
      %p31 = scmp.ne.s32.totalorder %s23, %s26
      %p32 = scmp.eq.s32.totalorder %s13, 0
      %p33 = por %p31, %p32
      %p34 = scmp.ne.s32.totalorder %s23, %s26
      %p35 = scmp.eq.s32.totalorder %s18, 1
      %p36 = por %p34, %p35
      %p37 = scmp.ne.s32.totalorder %s26, %s27
      %p38 = scmp.eq.s32.totalorder %s18, 0
      %p39 = por %p37, %p38
      %p40 = scmp.ne.s32.totalorder %s26, %s27
      %p41 = scmp.eq.s32.totalorder %s19, 1
      %p42 = por %p40, %p41
      %p44 = scmp.ne.s32.totalorder %s27, %s43
      %p45 = scmp.eq.s32.totalorder %s19, 0
      %p46 = por %p44, %p45
      %s48 = sadd.s32 %s47, 1
      %p51 = scmp.eq.s32.totalorder %s13, 1
      %p52 = scmp.ne.s32.totalorder %s47, %s49
      %p53 = scmp.eq.s32.totalorder %s13, 0
      %p54 = por %p52, %p53
      %p55 = scmp.ne.s32.totalorder %s47, %s49
      %p56 = scmp.eq.s32.totalorder %s18, 1
      %p57 = por %p55, %p56
      %p58 = scmp.ne.s32.totalorder %s49, %s50
      %p59 = scmp.eq.s32.totalorder %s18, 0
      %p60 = por %p58, %p59
      %p61 = scmp.ne.s32.totalorder %s49, %s50
      %p62 = scmp.eq.s32.totalorder %s19, 1
      %p63 = por %p61, %p62
      %p65 = scmp.ne.s32.totalorder %s50, %s64
      %p66 = scmp.eq.s32.totalorder %s19, 0
      %p67 = por %p65, %p66
      %s69 = sadd.s32 %s68, 1
      %p72 = scmp.eq.s32.totalorder %s13, 1
      %p73 = scmp.ne.s32.totalorder %s68, %s70
      %p74 = scmp.eq.s32.totalorder %s13, 0
      %p75 = por %p73, %p74
      %p76 = scmp.ne.s32.totalorder %s68, %s70
      %p77 = scmp.eq.s32.totalorder %s18, 1
      %p78 = por %p76, %p77
      %p79 = scmp.ne.s32.totalorder %s70, %s71
      %p80 = scmp.eq.s32.totalorder %s18, 0
      %p81 = por %p79, %p80
      %p82 = scmp.ne.s32.totalorder %s70, %s71
      %p83 = scmp.eq.s32.totalorder %s19, 1
      %p84 = por %p82, %p83
      %p86 = scmp.ne.s32.totalorder %s71, %s85
      %p87 = scmp.eq.s32.totalorder %s19, 0
      %p88 = por %p86, %p87
      %s90 = sadd.s32 %s89, 1
      %p93 = scmp.eq.s32.totalorder %s13, 1
      %p94 = scmp.ne.s32.totalorder %s89, %s91
      %p95 = scmp.eq.s32.totalorder %s13, 0
      %p96 = por %p94, %p95
      %p97 = scmp.ne.s32.totalorder %s89, %s91
      %p98 = scmp.eq.s32.totalorder %s18, 1
      %p99 = por %p97, %p98
      %p100 = scmp.ne.s32.totalorder %s91, %s92
      %p101 = scmp.eq.s32.totalorder %s18, 0
      %p102 = por %p100, %p101
      %p103 = scmp.ne.s32.totalorder %s91, %s92
      %p104 = scmp.eq.s32.totalorder %s19, 1
      %p105 = por %p103, %p104
      %p107 = scmp.ne.s32.totalorder %s92, %s106
      %p108 = scmp.eq.s32.totalorder %s19, 0
      %p109 = por %p107, %p108
      %s111 = sadd.s32 %s110, 1
      %p114 = scmp.eq.s32.totalorder %s13, 1
      %p115 = scmp.ne.s32.totalorder %s110, %s112
      %p116 = scmp.eq.s32.totalorder %s13, 0
      %p117 = por %p115, %p116
      %p118 = scmp.ne.s32.totalorder %s110, %s112
      %p119 = scmp.eq.s32.totalorder %s18, 1
      %p120 = por %p118, %p119
      %p121 = scmp.ne.s32.totalorder %s112, %s113
      %p122 = scmp.eq.s32.totalorder %s18, 0
      %p123 = por %p121, %p122
      %p124 = scmp.ne.s32.totalorder %s112, %s113
      %p125 = scmp.eq.s32.totalorder %s19, 1
      %p126 = por %p124, %p125
      %p128 = scmp.ne.s32.totalorder %s113, %s127
      %p129 = scmp.eq.s32.totalorder %s19, 0
      %p130 = por %p128, %p129
      %s131 = ssub.s32 %s13, %s20
      %p132 = scmp.eq.s32.totalorder %s131, 0
      %s134 = sadd.s32 %s133, 1
      %s135 = scalar_select %p132, %s133, %s134
      %p138 = pneg %p132
      %p139 = scmp.eq.s32.totalorder %s13, 1
      %p140 = por %p138, %p139
      %p141 = scmp.ne.s32.totalorder %s133, %s136
      %p142 = scmp.eq.s32.totalorder %s13, 0
      %p143 = por %p141, %p142
      %p144 = scmp.ne.s32.totalorder %s133, %s136
      %p145 = scmp.eq.s32.totalorder %s18, 1
      %p146 = por %p144, %p145
      %p147 = scmp.ne.s32.totalorder %s136, %s137
      %p148 = scmp.eq.s32.totalorder %s18, 0
      %p149 = por %p147, %p148
      %p150 = scmp.ne.s32.totalorder %s136, %s137
      %p151 = scmp.eq.s32.totalorder %s19, 1
      %p152 = por %p150, %p151
      %p154 = scmp.ne.s32.totalorder %s137, %s153
      %p155 = scmp.eq.s32.totalorder %s19, 0
      %p156 = por %p154, %p155
      %p157 = scmp.le.s32.totalorder 1, %s13
      %p158 = scmp.lt.s32.totalorder %s13, 3
      %p159 = pnand %p157, %p158
      %p160 = pneg %p159
      // Predicated region
      $region9: #{_lambda_.2} parent=5 // pred_check
        _
      $region10: #{_lambda_.2} parent=5 // pred_check_branch
        %162 = sbr.rel (%p159) target = $region12
      $region11: #{_lambda_.2} parent=5 // pred_region
        %s163 = ssub.s32 %s13, 1
        // Predicated region
        $region13: #{_lambda_.2} parent=11 // pred_check
          %p164 = pneg %p60
        $region14: #{_lambda_.2} parent=11 // pred_check_branch
          %166 = sbr.rel (%p164) target = $region16
        $region15: #{_lambda_.2} parent=11 // pred_region
          %s168 = ssub.s32 6144, 6144
          %169 = vsyncadd [#allocation5], %s168
          %s170 = sshll.u32 [#allocation4], 4
          %s171 = int_to_ptr.vmem [resolvable:$true] %s170
          %176 = dma.hbm_to_vmem [thread:$0]  %s1, 6144, %s171, [#allocation5], 384, 384, 24
        $region16: #{_lambda_.2} parent=11 // pred_fallthru
          _
        // Predicated region
        $region17: #{_lambda_.2} parent=11 // pred_check
          %p177 = pneg %p81
        $region18: #{_lambda_.2} parent=11 // pred_check_branch
          %179 = sbr.rel (%p177) target = $region20
        $region19: #{_lambda_.2} parent=11 // pred_region
          %s181 = ssub.s32 6144, 6144
          %182 = vsyncadd [#allocation7], %s181
          %s183 = sshll.u32 [#allocation6], 4
          %s184 = int_to_ptr.vmem [resolvable:$true] %s183
          %189 = dma.hbm_to_vmem [thread:$0]  %s2, 6144, %s184, [#allocation7], 384, 384, 24
        $region20: #{_lambda_.2} parent=11 // pred_fallthru
          _
        // Predicated region
        $region21: #{_lambda_.2} parent=11 // pred_check
          %p190 = pneg %p102
        $region22: #{_lambda_.2} parent=11 // pred_check_branch
          %192 = sbr.rel (%p190) target = $region24
        $region23: #{_lambda_.2} parent=11 // pred_region
          _
        $region24: #{_lambda_.2} parent=11 // pred_fallthru
          _
        // Predicated region
        $region25: #{_lambda_.2} parent=11 // pred_check
          %p193 = pneg %p123
        $region26: #{_lambda_.2} parent=11 // pred_check_branch
          %195 = sbr.rel (%p193) target = $region28
        $region27: #{_lambda_.2} parent=11 // pred_region
          _
        $region28: #{_lambda_.2} parent=11 // pred_fallthru
          _
      $region12: #{_lambda_.2} parent=5 // pred_fallthru
        _
      %p196 = scmp.lt.s32.totalorder %s13, 2
      // Predicated region
      $region29: #{_lambda_.2} parent=5 // pred_check
        %p197 = pneg %p196
      $region30: #{_lambda_.2} parent=5 // pred_check_branch
        %199 = sbr.rel (%p197) target = $region32
      $region31: #{_lambda_.2} parent=5 // pred_region
        // Predicated region
        $region33: #{_lambda_.2} parent=31 // pred_check
          %p200 = pneg %p33
        $region34: #{_lambda_.2} parent=31 // pred_check_branch
          %202 = sbr.rel (%p200) target = $region36
        $region35: #{_lambda_.2} parent=31 // pred_region
          %s203 = smul.u32 4, %s13
          %p204 = scmp.lt.s32.totalorder %s203, 7
          %s205 = scalar_select %p204, %s203, 7
          %s206 = smul.addr %s205, 8
          %s207 = scalar_lea.vmem %s0, %s206
          %s208 = smul.u32 4, %s13
        $region36: #{_lambda_.2} parent=31 // pred_fallthru
          _
      $region32: #{_lambda_.2} parent=5 // pred_fallthru
        _
      %p209 = scmp.le.s32.totalorder 1, %s13
      %p210 = scmp.lt.s32.totalorder %s13, 3
      %p211 = pnand %p209, %p210
      %p212 = pneg %p211
      // Predicated region
      $region37: #{_lambda_.2} parent=5 // pred_check
        _
      $region38: #{_lambda_.2} parent=5 // pred_check_branch
        %214 = sbr.rel (%p211) target = $region40
      $region39: #{_lambda_.2} parent=5 // pred_region
        %s215 = ssub.s32 %s13, 1
        // Predicated region
        $region41: #{_lambda_.2} parent=39 // pred_check
          %p216 = pneg %p60
        $region42: #{_lambda_.2} parent=39 // pred_check_branch
          %218 = sbr.rel (%p216) target = $region44
        $region43: #{_lambda_.2} parent=39 // pred_region
          %219 = dma.done [#allocation5], 6144
        $region44: #{_lambda_.2} parent=39 // pred_fallthru
          _
        // Predicated region
        $region45: #{_lambda_.2} parent=39 // pred_check
          %p220 = pneg %p81
        $region46: #{_lambda_.2} parent=39 // pred_check_branch
          %222 = sbr.rel (%p220) target = $region48
        $region47: #{_lambda_.2} parent=39 // pred_region
          %223 = dma.done [#allocation7], 6144
        $region48: #{_lambda_.2} parent=39 // pred_fallthru
          _
        %s224 = smul.u32 4, %s18
        %p225 = scmp.lt.s32.totalorder %s224, 7
        %s226 = scalar_select %p225, %s224, 7
        %s227 = smul.addr %s226, 8
        %s228 = scalar_lea.vmem %s0, %s227
        %p229 = pneg %p39
        %p230 = pneg %p36
        %p231 = pneg %p60
        %p232 = pneg %p57
        %p233 = pneg %p81
        %p234 = pneg %p78
        %p235 = pneg %p102
        %p236 = pneg %p99
        %p237 = pneg %p123
        %p238 = pneg %p120
        %p239 = pneg %p149
        %p240 = pneg %p146
        %s241 = smul.u32 4, %s18
        %p242 = scmp.lt.s32.totalorder %s241, 7
        %s243 = scalar_select %p242, %s241, 7
        %s244 = smul.addr %s243, 8
        %s245 = scalar_lea.vmem %s5, %s244
        %s246 = smul.u32 4, %s18
        %p247 = scmp.lt.s32.totalorder %s246, 7
        %s248 = scalar_select %p247, %s246, 7
        %s249 = smul.addr %s248, 8
        %s250 = scalar_lea.vmem %s0, %s249
        %s251 = smul.u32 4, %s18
        %s252 = smul.u32 4, %s18
        %p253 = scmp.lt.s32.totalorder %s252, 7
        %s254 = scalar_select %p253, %s252, 7
        %s255 = smul.addr %s254, 8
        %s256 = scalar_lea.vmem %s5, %s255
        %s257 = smul.u32 4, %s18
        %p258 = scmp.eq.s32.totalorder %s18, 0
        // Predicated region
        $region49: #{_lambda_.2} parent=39 // pred_check
          %p259 = pneg %p258
        $region50: #{_lambda_.2} parent=39 // pred_check_branch
          %261 = sbr.rel (%p259) target = $region52
        $region51: #{_lambda_.2} parent=39 // pred_region
          %262 = vst [vmem:[#allocation2] sm:$0xff] 0.0
        $region52: #{_lambda_.2} parent=39 // pred_fallthru
          _
        %v263 = vld [vmem:[%s250] sm:$0xff]
        %v264 = vld [vmem:[%s250 + $0x8] sm:$0xff]
        %v265 = vld [vmem:[%s250 + $0x10] sm:$0xff]
        %v266 = vld [vmem:[%s250 + $0x18] sm:$0xff]
        %v267 = vld [vmem:[#allocation4] sm:$0xff]
        %v268 = vld [vmem:[#allocation4 + $0x8] sm:$0xff]
        %v269 = vld [vmem:[#allocation4 + $0x10] sm:$0xff]
        %v270 = vld [vmem:[#allocation4 + $0x18] sm:$0xff]
        %v271 = vld [vmem:[#allocation4 + $0x20] sm:$0xff]
        %v272 = vld [vmem:[#allocation4 + $0x28] sm:$0xff]
        %v273 = vld [vmem:[#allocation4 + $0x30] sm:$0xff]
        %v274 = vld [vmem:[#allocation4 + $0x38] sm:$0xff]
        %v275 = vld [vmem:[#allocation4 + $0x40] sm:$0xff]
        %v276 = vld [vmem:[#allocation4 + $0x48] sm:$0xff]
        %v277 = vld [vmem:[#allocation4 + $0x50] sm:$0xff]
        %v278 = vld [vmem:[#allocation4 + $0x58] sm:$0xff]
        %v279 = vld [vmem:[#allocation4 + $0x60] sm:$0xff]
        %v280 = vld [vmem:[#allocation4 + $0x68] sm:$0xff]
        %v281 = vld [vmem:[#allocation4 + $0x70] sm:$0xff]
        %v282 = vld [vmem:[#allocation4 + $0x78] sm:$0xff]
        %v283 = vld [vmem:[#allocation4 + $0x80] sm:$0xff]
        %v284 = vld [vmem:[#allocation4 + $0x88] sm:$0xff]
        %v285 = vld [vmem:[#allocation4 + $0x90] sm:$0xff]
        %v286 = vld [vmem:[#allocation4 + $0x98] sm:$0xff]
        %v287 = vld [vmem:[#allocation4 + $0xa0] sm:$0xff]
        %v288 = vld [vmem:[#allocation4 + $0xa8] sm:$0xff]
        %v289 = vld [vmem:[#allocation4 + $0xb0] sm:$0xff]
        %v290 = vld [vmem:[#allocation4 + $0xb8] sm:$0xff]
        %v291 = vld [vmem:[#allocation4 + $0xc0] sm:$0xff]
        %v292 = vld [vmem:[#allocation4 + $0xc8] sm:$0xff]
        %v293 = vld [vmem:[#allocation4 + $0xd0] sm:$0xff]
        %v294 = vld [vmem:[#allocation4 + $0xd8] sm:$0xff]
        %v295 = vld [vmem:[#allocation4 + $0xe0] sm:$0xff]
        %v296 = vld [vmem:[#allocation4 + $0xe8] sm:$0xff]
        %v297 = vld [vmem:[#allocation4 + $0xf0] sm:$0xff]
        %v298 = vld [vmem:[#allocation4 + $0xf8] sm:$0xff]
        %v299 = vld [vmem:[#allocation4 + $0x100] sm:$0xff]
        %v300 = vld [vmem:[#allocation4 + $0x108] sm:$0xff]
        %v301 = vld [vmem:[#allocation4 + $0x110] sm:$0xff]
        %v302 = vld [vmem:[#allocation4 + $0x118] sm:$0xff]
        %v303 = vld [vmem:[#allocation4 + $0x120] sm:$0xff]
        %v304 = vld [vmem:[#allocation4 + $0x128] sm:$0xff]
        %v305 = vld [vmem:[#allocation4 + $0x130] sm:$0xff]
        %v306 = vld [vmem:[#allocation4 + $0x138] sm:$0xff]
        %v307 = vld [vmem:[#allocation4 + $0x140] sm:$0xff]
        %v308 = vld [vmem:[#allocation4 + $0x148] sm:$0xff]
        %v309 = vld [vmem:[#allocation4 + $0x150] sm:$0xff]
        %v310 = vld [vmem:[#allocation4 + $0x158] sm:$0xff]
        %v311 = vld [vmem:[#allocation4 + $0x160] sm:$0xff]
        %v312 = vld [vmem:[#allocation4 + $0x168] sm:$0xff]
        %v313 = vld [vmem:[#allocation4 + $0x170] sm:$0xff]
        %v314 = vld [vmem:[#allocation4 + $0x178] sm:$0xff]
        %v315 = vld [vmem:[%s3] sm:$0x7]
        %v317 = vlaneseq
        %v318 = vshrl.u32 %v317, 7
        %v319 = vsub.s32 0, %v318
        %v320 = vrot.slane %v315, %v319
        %v321 = vlaneseq
        %v322 = vshrl.u32 %v321, 7
        %v323 = vsub.s32 1, %v322
        %v324 = vrot.slane %v315, %v323
        %v325 = vlaneseq
        %v326 = vshrl.u32 %v325, 7
        %v327 = vsub.s32 2, %v326
        %v328 = vrot.slane %v315, %v327
        %332 = vmatprep.subr.mxu0 %v268
        %333 = vmatpush1.msra.mxu0 %v267
        %334 = vmatprep.subr.mxu0 %v271
        %335 = vmatpush1.msra.mxu0 %v270
        %336 = vmatprep.subr.mxu0 %v274
        %337 = vmatpush1.msra.mxu0 %v273
        %338 = vmatprep.subr.mxu0 %v277
        %339 = vmatpush1.msra.mxu0 %v276
        %340 = vmatprep.subr.mxu0 %v280
        %341 = vmatpush1.msra.mxu0 %v279
        %342 = vmatprep.subr.mxu0 %v283
        %343 = vmatpush1.msra.mxu0 %v282
        %344 = vmatprep.subr.mxu0 %v286
        %345 = vmatpush1.msra.mxu0 %v285
        %346 = vmatprep.subr.mxu0 %v289
        %347 = vmatpush1.msra.mxu0 %v288
        %348 = vmatprep.subr.mxu0 %v292
        %349 = vmatpush1.msra.mxu0 %v291
        %350 = vmatprep.subr.mxu0 %v295
        %351 = vmatpush1.msra.mxu0 %v294
        %352 = vmatprep.subr.mxu0 %v298
        %353 = vmatpush1.msra.mxu0 %v297
        %354 = vmatprep.subr.mxu0 %v301
        %355 = vmatpush1.msra.mxu0 %v300
        %356 = vmatprep.subr.mxu0 %v304
        %357 = vmatpush1.msra.mxu0 %v303
        %358 = vmatprep.subr.mxu0 %v307
        %359 = vmatpush1.msra.mxu0 %v306
        %360 = vmatprep.subr.mxu0 %v310
        %361 = vmatpush1.msra.mxu0 %v309
        %362 = vmatprep.subr.mxu0 %v313
        %363 = vmatpush1.msra.mxu0 %v312
        %364 = vmatprep.subr.mxu0 0.0
        %365 = vmatpush1.msra.mxu0 0.0
        %366 = vmatprep.subr.mxu0 0.0
        %367 = vmatpush1.msra.mxu0 0.0
        %368 = vmatprep.subr.mxu0 0.0
        %369 = vmatpush1.msra.mxu0 0.0
        %370 = vmatprep.subr.mxu0 0.0
        %371 = vmatpush1.msra.mxu0 0.0
        %372 = vmatprep.subr.mxu0 0.0
        %373 = vmatpush1.msra.mxu0 0.0
        %374 = vmatprep.subr.mxu0 0.0
        %375 = vmatpush1.msra.mxu0 0.0
        %376 = vmatprep.subr.mxu0 0.0
        %377 = vmatpush1.msra.mxu0 0.0
        %378 = vmatprep.subr.mxu0 0.0
        %379 = vmatpush1.msra.mxu0 0.0
        %380 = vmatprep.subr.mxu0 0.0
        %381 = vmatpush1.msra.mxu0 0.0
        %382 = vmatprep.subr.mxu0 0.0
        %383 = vmatpush1.msra.mxu0 0.0
        %384 = vmatprep.subr.mxu0 0.0
        %385 = vmatpush1.msra.mxu0 0.0
        %386 = vmatprep.subr.mxu0 0.0
        %387 = vmatpush1.msra.mxu0 0.0
        %388 = vmatprep.subr.mxu0 0.0
        %389 = vmatpush1.msra.mxu0 0.0
        %390 = vmatprep.subr.mxu0 0.0
        %391 = vmatpush1.msra.mxu0 0.0
        %392 = vmatprep.subr.mxu0 0.0
        %393 = vmatpush1.msra.mxu0 0.0
        %394 = vmatprep.subr.mxu0 0.0
        %395 = vmatpush1.msra.mxu0 0.0
        %396 = vmatprep.mubr.f32.mxu0 0.0
        %397 = vmatmul.mubr.f32.gmra.mrb[0].mxu0 %v263
        %v398 = vpop.f32.mrb[0].mxu0
        %v399 = vadd.f32 %v320, %v398
        %v400 = vpop.f32.mrb[0].mxu0
        %v401 = vadd.f32 %v324, %v400
        %402 = vmatprep.mubr.f32.mxu0 0.0
        %403 = vmatmul.mubr.f32.gmra.mrb[0].mxu0 %v264
        %v404 = vpop.f32.mrb[0].mxu0
        %v405 = vadd.f32 %v320, %v404
        %v406 = vpop.f32.mrb[0].mxu0
        %v407 = vadd.f32 %v324, %v406
        %408 = vmatprep.mubr.f32.mxu0 0.0
        %409 = vmatmul.mubr.f32.gmra.mrb[0].mxu0 %v265
        %v410 = vpop.f32.mrb[0].mxu0
        %v411 = vadd.f32 %v320, %v410
        %v412 = vpop.f32.mrb[0].mxu0
        %v413 = vadd.f32 %v324, %v412
        %414 = vmatprep.mubr.f32.mxu0 0.0
        %415 = vmatmul.mubr.f32.gmra.mrb[0].mxu0 %v266
        %v416 = vpop.f32.mrb[0].mxu0
        %v417 = vadd.f32 %v320, %v416
        %v418 = vpop.f32.mrb[0].mxu0
        %v419 = vadd.f32 %v324, %v418
        %420 = vdwg.mxu0
        %421 = vmatprep.subr.mxu0 0.0
        %422 = vmatpush1.msra.mxu0 %v269
        %423 = vmatprep.subr.mxu0 0.0
        %424 = vmatpush1.msra.mxu0 %v272
        %425 = vmatprep.subr.mxu0 0.0
        %426 = vmatpush1.msra.mxu0 %v275
        %427 = vmatprep.subr.mxu0 0.0
        %428 = vmatpush1.msra.mxu0 %v278
        %429 = vmatprep.subr.mxu0 0.0
        %430 = vmatpush1.msra.mxu0 %v281
        %431 = vmatprep.subr.mxu0 0.0
        %432 = vmatpush1.msra.mxu0 %v284
        %433 = vmatprep.subr.mxu0 0.0
        %434 = vmatpush1.msra.mxu0 %v287
        %435 = vmatprep.subr.mxu0 0.0
        %436 = vmatpush1.msra.mxu0 %v290
        %437 = vmatprep.subr.mxu0 0.0
        %438 = vmatpush1.msra.mxu0 %v293
        %439 = vmatprep.subr.mxu0 0.0
        %440 = vmatpush1.msra.mxu0 %v296
        %441 = vmatprep.subr.mxu0 0.0
        %442 = vmatpush1.msra.mxu0 %v299
        %443 = vmatprep.subr.mxu0 0.0
        %444 = vmatpush1.msra.mxu0 %v302
        %445 = vmatprep.subr.mxu0 0.0
        %446 = vmatpush1.msra.mxu0 %v305
        %447 = vmatprep.subr.mxu0 0.0
        %448 = vmatpush1.msra.mxu0 %v308
        %449 = vmatprep.subr.mxu0 0.0
        %450 = vmatpush1.msra.mxu0 %v311
        %451 = vmatprep.subr.mxu0 0.0
        %452 = vmatpush1.msra.mxu0 %v314
        %453 = vmatprep.subr.mxu0 0.0
        %454 = vmatpush1.msra.mxu0 0.0
        %455 = vmatprep.subr.mxu0 0.0
        %456 = vmatpush1.msra.mxu0 0.0
        %457 = vmatprep.subr.mxu0 0.0
        %458 = vmatpush1.msra.mxu0 0.0
        %459 = vmatprep.subr.mxu0 0.0
        %460 = vmatpush1.msra.mxu0 0.0
        %461 = vmatprep.subr.mxu0 0.0
        %462 = vmatpush1.msra.mxu0 0.0
        %463 = vmatprep.subr.mxu0 0.0
        %464 = vmatpush1.msra.mxu0 0.0
        %465 = vmatprep.subr.mxu0 0.0
        %466 = vmatpush1.msra.mxu0 0.0
        %467 = vmatprep.subr.mxu0 0.0
        %468 = vmatpush1.msra.mxu0 0.0
        %469 = vmatprep.subr.mxu0 0.0
        %470 = vmatpush1.msra.mxu0 0.0
        %471 = vmatprep.subr.mxu0 0.0
        %472 = vmatpush1.msra.mxu0 0.0
        %473 = vmatprep.subr.mxu0 0.0
        %474 = vmatpush1.msra.mxu0 0.0
        %475 = vmatprep.subr.mxu0 0.0
        %476 = vmatpush1.msra.mxu0 0.0
        %477 = vmatprep.subr.mxu0 0.0
        %478 = vmatpush1.msra.mxu0 0.0
        %479 = vmatprep.subr.mxu0 0.0
        %480 = vmatpush1.msra.mxu0 0.0
        %481 = vmatprep.subr.mxu0 0.0
        %482 = vmatpush1.msra.mxu0 0.0
        %483 = vmatprep.subr.mxu0 0.0
        %484 = vmatpush1.msra.mxu0 0.0
        %485 = vmatprep.mubr.f32.mxu0 0.0
        %486 = vmatmul.mubr.f32.gmra.mrb[0].mxu0 %v263
        %v487 = vpop.f32.mrb[0].mxu0
        %v488 = vadd.f32 %v328, %v487
        %v489 = vpop.f32.mrb[0].mxu0
        %490 = vmatprep.mubr.f32.mxu0 0.0
        %491 = vmatmul.mubr.f32.gmra.mrb[0].mxu0 %v264
        %v492 = vpop.f32.mrb[0].mxu0
        %v493 = vadd.f32 %v328, %v492
        %v494 = vpop.f32.mrb[0].mxu0
        %495 = vmatprep.mubr.f32.mxu0 0.0
        %496 = vmatmul.mubr.f32.gmra.mrb[0].mxu0 %v265
        %v497 = vpop.f32.mrb[0].mxu0
        %v498 = vadd.f32 %v328, %v497
        %v499 = vpop.f32.mrb[0].mxu0
        %500 = vmatprep.mubr.f32.mxu0 0.0
        %501 = vmatmul.mubr.f32.gmra.mrb[0].mxu0 %v266
        %v502 = vpop.f32.mrb[0].mxu0
        %v503 = vadd.f32 %v328, %v502
        %v504 = vpop.f32.mrb[0].mxu0
        %505 = vdwg.mxu0
        %506 = vst [vmem:[#allocation3] sm:$0xff] %v399
        %507 = vst [vmem:[#allocation3 + $0x8] sm:$0xff] %v401
        %508 = vst [vmem:[#allocation3 + $0x10] sm:$0xff] %v488
        %509 = vst [vmem:[#allocation3 + $0x18] sm:$0xff] %v405
        %510 = vst [vmem:[#allocation3 + $0x20] sm:$0xff] %v407
        %511 = vst [vmem:[#allocation3 + $0x28] sm:$0xff] %v493
        %512 = vst [vmem:[#allocation3 + $0x30] sm:$0xff] %v411
        %513 = vst [vmem:[#allocation3 + $0x38] sm:$0xff] %v413
        %514 = vst [vmem:[#allocation3 + $0x40] sm:$0xff] %v498
        %515 = vst [vmem:[#allocation3 + $0x48] sm:$0xff] %v417
        %516 = vst [vmem:[#allocation3 + $0x50] sm:$0xff] %v419
        %517 = vst [vmem:[#allocation3 + $0x58] sm:$0xff] %v503
        %v518 = vld [vmem:[#allocation2] sm:$0xff]
        %v519 = vld [vmem:[#allocation6] sm:$0xff]
        %v520 = vld [vmem:[#allocation6 + $0x8] sm:$0xff]
        %v521 = vld [vmem:[#allocation6 + $0x10] sm:$0xff]
        %v522 = vld [vmem:[#allocation6 + $0x18] sm:$0xff]
        %v523 = vld [vmem:[#allocation6 + $0x20] sm:$0xff]
        %v524 = vld [vmem:[#allocation6 + $0x28] sm:$0xff]
        %v525 = vld [vmem:[#allocation6 + $0x30] sm:$0xff]
        %v526 = vld [vmem:[#allocation6 + $0x38] sm:$0xff]
        %v527 = vld [vmem:[#allocation6 + $0x40] sm:$0xff]
        %v528 = vld [vmem:[#allocation6 + $0x48] sm:$0xff]
        %v529 = vld [vmem:[#allocation6 + $0x50] sm:$0xff]
        %v530 = vld [vmem:[#allocation6 + $0x58] sm:$0xff]
        %v531 = vld [vmem:[#allocation6 + $0x60] sm:$0xff]
        %v532 = vld [vmem:[#allocation6 + $0x68] sm:$0xff]
        %v533 = vld [vmem:[#allocation6 + $0x70] sm:$0xff]
        %v534 = vld [vmem:[#allocation6 + $0x78] sm:$0xff]
        %v535 = vld [vmem:[#allocation6 + $0x80] sm:$0xff]
        %v536 = vld [vmem:[#allocation6 + $0x88] sm:$0xff]
        %v537 = vld [vmem:[#allocation6 + $0x90] sm:$0xff]
        %v538 = vld [vmem:[#allocation6 + $0x98] sm:$0xff]
        %v539 = vld [vmem:[#allocation6 + $0xa0] sm:$0xff]
        %v540 = vld [vmem:[#allocation6 + $0xa8] sm:$0xff]
        %v541 = vld [vmem:[#allocation6 + $0xb0] sm:$0xff]
        %v542 = vld [vmem:[#allocation6 + $0xb8] sm:$0xff]
        %v543 = vld [vmem:[#allocation6 + $0xc0] sm:$0xff]
        %v544 = vld [vmem:[#allocation6 + $0xc8] sm:$0xff]
        %v545 = vld [vmem:[#allocation6 + $0xd0] sm:$0xff]
        %v546 = vld [vmem:[#allocation6 + $0xd8] sm:$0xff]
        %v547 = vld [vmem:[#allocation6 + $0xe0] sm:$0xff]
        %v548 = vld [vmem:[#allocation6 + $0xe8] sm:$0xff]
        %v549 = vld [vmem:[#allocation6 + $0xf0] sm:$0xff]
        %v550 = vld [vmem:[#allocation6 + $0xf8] sm:$0xff]
        %v551 = vld [vmem:[#allocation6 + $0x100] sm:$0xff]
        %v552 = vld [vmem:[#allocation6 + $0x108] sm:$0xff]
        %v553 = vld [vmem:[#allocation6 + $0x110] sm:$0xff]
        %v554 = vld [vmem:[#allocation6 + $0x118] sm:$0xff]
        %v555 = vld [vmem:[#allocation6 + $0x120] sm:$0xff]
        %v556 = vld [vmem:[#allocation6 + $0x128] sm:$0xff]
        %v557 = vld [vmem:[#allocation6 + $0x130] sm:$0xff]
        %v558 = vld [vmem:[#allocation6 + $0x138] sm:$0xff]
        %v559 = vld [vmem:[#allocation6 + $0x140] sm:$0xff]
        %v560 = vld [vmem:[#allocation6 + $0x148] sm:$0xff]
        %v561 = vld [vmem:[#allocation6 + $0x150] sm:$0xff]
        %v562 = vld [vmem:[#allocation6 + $0x158] sm:$0xff]
        %v563 = vld [vmem:[#allocation6 + $0x160] sm:$0xff]
        %v564 = vld [vmem:[#allocation6 + $0x168] sm:$0xff]
        %v565 = vld [vmem:[#allocation6 + $0x170] sm:$0xff]
        %v566 = vld [vmem:[#allocation6 + $0x178] sm:$0xff]
        %567 = vmatprep.subr.mxu0 %v520
        %568 = vmatpush1.msra.mxu0 %v519
        %569 = vmatprep.subr.mxu0 %v523
        %570 = vmatpush1.msra.mxu0 %v522
        %571 = vmatprep.subr.mxu0 %v526
        %572 = vmatpush1.msra.mxu0 %v525
        %573 = vmatprep.subr.mxu0 %v529
        %574 = vmatpush1.msra.mxu0 %v528
        %575 = vmatprep.subr.mxu0 %v532
        %576 = vmatpush1.msra.mxu0 %v531
        %577 = vmatprep.subr.mxu0 %v535
        %578 = vmatpush1.msra.mxu0 %v534
        %579 = vmatprep.subr.mxu0 %v538
        %580 = vmatpush1.msra.mxu0 %v537
        %581 = vmatprep.subr.mxu0 %v541
        %582 = vmatpush1.msra.mxu0 %v540
        %583 = vmatprep.subr.mxu0 %v544
        %584 = vmatpush1.msra.mxu0 %v543
        %585 = vmatprep.subr.mxu0 %v547
        %586 = vmatpush1.msra.mxu0 %v546
        %587 = vmatprep.subr.mxu0 %v550
        %588 = vmatpush1.msra.mxu0 %v549
        %589 = vmatprep.subr.mxu0 %v553
        %590 = vmatpush1.msra.mxu0 %v552
        %591 = vmatprep.subr.mxu0 %v556
        %592 = vmatpush1.msra.mxu0 %v555
        %593 = vmatprep.subr.mxu0 %v559
        %594 = vmatpush1.msra.mxu0 %v558
        %595 = vmatprep.subr.mxu0 %v562
        %596 = vmatpush1.msra.mxu0 %v561
        %597 = vmatprep.subr.mxu0 %v565
        %598 = vmatpush1.msra.mxu0 %v564
        %599 = vmatprep.subr.mxu0 0.0
        %600 = vmatpush1.msra.mxu0 0.0
        %601 = vmatprep.subr.mxu0 0.0
        %602 = vmatpush1.msra.mxu0 0.0
        %603 = vmatprep.subr.mxu0 0.0
        %604 = vmatpush1.msra.mxu0 0.0
        %605 = vmatprep.subr.mxu0 0.0
        %606 = vmatpush1.msra.mxu0 0.0
        %607 = vmatprep.subr.mxu0 0.0
        %608 = vmatpush1.msra.mxu0 0.0
        %609 = vmatprep.subr.mxu0 0.0
        %610 = vmatpush1.msra.mxu0 0.0
        %611 = vmatprep.subr.mxu0 0.0
        %612 = vmatpush1.msra.mxu0 0.0
        %613 = vmatprep.subr.mxu0 0.0
        %614 = vmatpush1.msra.mxu0 0.0
        %615 = vmatprep.subr.mxu0 0.0
        %616 = vmatpush1.msra.mxu0 0.0
        %617 = vmatprep.subr.mxu0 0.0
        %618 = vmatpush1.msra.mxu0 0.0
        %619 = vmatprep.subr.mxu0 0.0
        %620 = vmatpush1.msra.mxu0 0.0
        %621 = vmatprep.subr.mxu0 0.0
        %622 = vmatpush1.msra.mxu0 0.0
        %623 = vmatprep.subr.mxu0 0.0
        %624 = vmatpush1.msra.mxu0 0.0
        %625 = vmatprep.subr.mxu0 0.0
        %626 = vmatpush1.msra.mxu0 0.0
        %627 = vmatprep.subr.mxu0 0.0
        %628 = vmatpush1.msra.mxu0 0.0
        %629 = vmatprep.subr.mxu0 0.0
        %630 = vmatpush1.msra.mxu0 0.0
        %631 = vmatprep.mubr.f32.mxu0 0.0
        %632 = vmatmul.mubr.f32.gmra.mrb[0].mxu0 %v518
        %v633 = vpop.f32.mrb[0].mxu0
        %v634 = vadd.f32 0.0, %v633
        %v635 = vpop.f32.mrb[0].mxu0
        %v636 = vadd.f32 0.0, %v635
        %637 = vdwg.mxu0
        %638 = vmatprep.subr.mxu0 0.0
        %639 = vmatpush1.msra.mxu0 %v521
        %640 = vmatprep.subr.mxu0 0.0
        %641 = vmatpush1.msra.mxu0 %v524
        %642 = vmatprep.subr.mxu0 0.0
        %643 = vmatpush1.msra.mxu0 %v527
        %644 = vmatprep.subr.mxu0 0.0
        %645 = vmatpush1.msra.mxu0 %v530
        %646 = vmatprep.subr.mxu0 0.0
        %647 = vmatpush1.msra.mxu0 %v533
        %648 = vmatprep.subr.mxu0 0.0
        %649 = vmatpush1.msra.mxu0 %v536
        %650 = vmatprep.subr.mxu0 0.0
        %651 = vmatpush1.msra.mxu0 %v539
        %652 = vmatprep.subr.mxu0 0.0
        %653 = vmatpush1.msra.mxu0 %v542
        %654 = vmatprep.subr.mxu0 0.0
        %655 = vmatpush1.msra.mxu0 %v545
        %656 = vmatprep.subr.mxu0 0.0
        %657 = vmatpush1.msra.mxu0 %v548
        %658 = vmatprep.subr.mxu0 0.0
        %659 = vmatpush1.msra.mxu0 %v551
        %660 = vmatprep.subr.mxu0 0.0
        %661 = vmatpush1.msra.mxu0 %v554
        %662 = vmatprep.subr.mxu0 0.0
        %663 = vmatpush1.msra.mxu0 %v557
        %664 = vmatprep.subr.mxu0 0.0
        %665 = vmatpush1.msra.mxu0 %v560
        %666 = vmatprep.subr.mxu0 0.0
        %667 = vmatpush1.msra.mxu0 %v563
        %668 = vmatprep.subr.mxu0 0.0
        %669 = vmatpush1.msra.mxu0 %v566
        %670 = vmatprep.subr.mxu0 0.0
        %671 = vmatpush1.msra.mxu0 0.0
        %672 = vmatprep.subr.mxu0 0.0
        %673 = vmatpush1.msra.mxu0 0.0
        %674 = vmatprep.subr.mxu0 0.0
        %675 = vmatpush1.msra.mxu0 0.0
        %676 = vmatprep.subr.mxu0 0.0
        %677 = vmatpush1.msra.mxu0 0.0
        %678 = vmatprep.subr.mxu0 0.0
        %679 = vmatpush1.msra.mxu0 0.0
        %680 = vmatprep.subr.mxu0 0.0
        %681 = vmatpush1.msra.mxu0 0.0
        %682 = vmatprep.subr.mxu0 0.0
        %683 = vmatpush1.msra.mxu0 0.0
        %684 = vmatprep.subr.mxu0 0.0
        %685 = vmatpush1.msra.mxu0 0.0
        %686 = vmatprep.subr.mxu0 0.0
        %687 = vmatpush1.msra.mxu0 0.0
        %688 = vmatprep.subr.mxu0 0.0
        %689 = vmatpush1.msra.mxu0 0.0
        %690 = vmatprep.subr.mxu0 0.0
        %691 = vmatpush1.msra.mxu0 0.0
        %692 = vmatprep.subr.mxu0 0.0
        %693 = vmatpush1.msra.mxu0 0.0
        %694 = vmatprep.subr.mxu0 0.0
        %695 = vmatpush1.msra.mxu0 0.0
        %696 = vmatprep.subr.mxu0 0.0
        %697 = vmatpush1.msra.mxu0 0.0
        %698 = vmatprep.subr.mxu0 0.0
        %699 = vmatpush1.msra.mxu0 0.0
        %700 = vmatprep.subr.mxu0 0.0
        %701 = vmatpush1.msra.mxu0 0.0
        %702 = vmatprep.mubr.f32.mxu0 0.0
        %703 = vmatmul.mubr.f32.gmra.mrb[0].mxu0 %v518
        %v704 = vpop.f32.mrb[0].mxu0
        %v705 = vadd.f32 0.0, %v704
        %v706 = vpop.f32.mrb[0].mxu0
        %707 = vdwg.mxu0
        %v708 = vld [vmem:[#allocation3] sm:$0xff]
        %v709 = vld [vmem:[#allocation3 + $0x8] sm:$0xff]
        %v710 = vld [vmem:[#allocation3 + $0x10] sm:$0xff]
        %v711 = vadd.f32 %v708, %v634
        %v712 = vxor.u32 %v711, 2147483648
        %v713 = vmul.f32 %v712, 1.442695
        %v714 = vpow.pop %v713
        %v715 = vadd.f32 %v714, 1.0
        %v716 = vrcp.pop %v715
        %v717 = vmul.f32 1.0, %v716
        %v718 = vadd.f32 %v709, %v636
        %v719 = vxor.u32 %v718, 2147483648
        %v720 = vmul.f32 %v719, 1.442695
        %v721 = vpow.pop %v720
        %v722 = vadd.f32 %v721, 1.0
        %v723 = vrcp.pop %v722
        %v724 = vmul.f32 1.0, %v723
        %v725 = vld [vmem:[%s4] sm:$0x1]
        %v727 = vlaneseq
        %v728 = vshrl.u32 %v727, 7
        %v729 = vsub.s32 0, %v728
        %v730 = vrot.slane %v725, %v729
        %v732 = vadd.f32 %v705, %v730
        %v733 = vmul.f32 %v717, %v732
        %v734 = vadd.f32 %v710, %v733
        %v735 = vtanh.pop %v734
        %v736 = vsub.f32 1.0, %v724
        %v737 = vmul.f32 %v736, %v735
        %v738 = vmul.f32 %v724, %v518
        %v739 = vadd.f32 %v737, %v738
        %740 = vst [vmem:[#allocation2] sm:$0xff] %v739
        %741 = vst [vmem:[%s256] sm:$0xff] %v739
        %v742 = vld [vmem:[#allocation2] sm:$0xff]
        %v743 = vld [vmem:[#allocation6] sm:$0xff]
        %v744 = vld [vmem:[#allocation6 + $0x8] sm:$0xff]
        %v745 = vld [vmem:[#allocation6 + $0x10] sm:$0xff]
        %v746 = vld [vmem:[#allocation6 + $0x18] sm:$0xff]
        %v747 = vld [vmem:[#allocation6 + $0x20] sm:$0xff]
        %v748 = vld [vmem:[#allocation6 + $0x28] sm:$0xff]
        %v749 = vld [vmem:[#allocation6 + $0x30] sm:$0xff]
        %v750 = vld [vmem:[#allocation6 + $0x38] sm:$0xff]
        %v751 = vld [vmem:[#allocation6 + $0x40] sm:$0xff]
        %v752 = vld [vmem:[#allocation6 + $0x48] sm:$0xff]
        %v753 = vld [vmem:[#allocation6 + $0x50] sm:$0xff]
        %v754 = vld [vmem:[#allocation6 + $0x58] sm:$0xff]
        %v755 = vld [vmem:[#allocation6 + $0x60] sm:$0xff]
        %v756 = vld [vmem:[#allocation6 + $0x68] sm:$0xff]
        %v757 = vld [vmem:[#allocation6 + $0x70] sm:$0xff]
        %v758 = vld [vmem:[#allocation6 + $0x78] sm:$0xff]
        %v759 = vld [vmem:[#allocation6 + $0x80] sm:$0xff]
        %v760 = vld [vmem:[#allocation6 + $0x88] sm:$0xff]
        %v761 = vld [vmem:[#allocation6 + $0x90] sm:$0xff]
        %v762 = vld [vmem:[#allocation6 + $0x98] sm:$0xff]
        %v763 = vld [vmem:[#allocation6 + $0xa0] sm:$0xff]
        %v764 = vld [vmem:[#allocation6 + $0xa8] sm:$0xff]
        %v765 = vld [vmem:[#allocation6 + $0xb0] sm:$0xff]
        %v766 = vld [vmem:[#allocation6 + $0xb8] sm:$0xff]
        %v767 = vld [vmem:[#allocation6 + $0xc0] sm:$0xff]
        %v768 = vld [vmem:[#allocation6 + $0xc8] sm:$0xff]
        %v769 = vld [vmem:[#allocation6 + $0xd0] sm:$0xff]
        %v770 = vld [vmem:[#allocation6 + $0xd8] sm:$0xff]
        %v771 = vld [vmem:[#allocation6 + $0xe0] sm:$0xff]
        %v772 = vld [vmem:[#allocation6 + $0xe8] sm:$0xff]
        %v773 = vld [vmem:[#allocation6 + $0xf0] sm:$0xff]
        %v774 = vld [vmem:[#allocation6 + $0xf8] sm:$0xff]
        %v775 = vld [vmem:[#allocation6 + $0x100] sm:$0xff]
        %v776 = vld [vmem:[#allocation6 + $0x108] sm:$0xff]
        %v777 = vld [vmem:[#allocation6 + $0x110] sm:$0xff]
        %v778 = vld [vmem:[#allocation6 + $0x118] sm:$0xff]
        %v779 = vld [vmem:[#allocation6 + $0x120] sm:$0xff]
        %v780 = vld [vmem:[#allocation6 + $0x128] sm:$0xff]
        %v781 = vld [vmem:[#allocation6 + $0x130] sm:$0xff]
        %v782 = vld [vmem:[#allocation6 + $0x138] sm:$0xff]
        %v783 = vld [vmem:[#allocation6 + $0x140] sm:$0xff]
        %v784 = vld [vmem:[#allocation6 + $0x148] sm:$0xff]
        %v785 = vld [vmem:[#allocation6 + $0x150] sm:$0xff]
        %v786 = vld [vmem:[#allocation6 + $0x158] sm:$0xff]
        %v787 = vld [vmem:[#allocation6 + $0x160] sm:$0xff]
        %v788 = vld [vmem:[#allocation6 + $0x168] sm:$0xff]
        %v789 = vld [vmem:[#allocation6 + $0x170] sm:$0xff]
        %v790 = vld [vmem:[#allocation6 + $0x178] sm:$0xff]
        %791 = vmatprep.subr.mxu0 %v744
        %792 = vmatpush1.msra.mxu0 %v743
        %793 = vmatprep.subr.mxu0 %v747
        %794 = vmatpush1.msra.mxu0 %v746
        %795 = vmatprep.subr.mxu0 %v750
        %796 = vmatpush1.msra.mxu0 %v749
        %797 = vmatprep.subr.mxu0 %v753
        %798 = vmatpush1.msra.mxu0 %v752
        %799 = vmatprep.subr.mxu0 %v756
        %800 = vmatpush1.msra.mxu0 %v755
        %801 = vmatprep.subr.mxu0 %v759
        %802 = vmatpush1.msra.mxu0 %v758
        %803 = vmatprep.subr.mxu0 %v762
        %804 = vmatpush1.msra.mxu0 %v761
        %805 = vmatprep.subr.mxu0 %v765
        %806 = vmatpush1.msra.mxu0 %v764
        %807 = vmatprep.subr.mxu0 %v768
        %808 = vmatpush1.msra.mxu0 %v767
        %809 = vmatprep.subr.mxu0 %v771
        %810 = vmatpush1.msra.mxu0 %v770
        %811 = vmatprep.subr.mxu0 %v774
        %812 = vmatpush1.msra.mxu0 %v773
        %813 = vmatprep.subr.mxu0 %v777
        %814 = vmatpush1.msra.mxu0 %v776
        %815 = vmatprep.subr.mxu0 %v780
        %816 = vmatpush1.msra.mxu0 %v779
        %817 = vmatprep.subr.mxu0 %v783
        %818 = vmatpush1.msra.mxu0 %v782
        %819 = vmatprep.subr.mxu0 %v786
        %820 = vmatpush1.msra.mxu0 %v785
        %821 = vmatprep.subr.mxu0 %v789
        %822 = vmatpush1.msra.mxu0 %v788
        %823 = vmatprep.subr.mxu0 0.0
        %824 = vmatpush1.msra.mxu0 0.0
        %825 = vmatprep.subr.mxu0 0.0
        %826 = vmatpush1.msra.mxu0 0.0
        %827 = vmatprep.subr.mxu0 0.0
        %828 = vmatpush1.msra.mxu0 0.0
        %829 = vmatprep.subr.mxu0 0.0
        %830 = vmatpush1.msra.mxu0 0.0
        %831 = vmatprep.subr.mxu0 0.0
        %832 = vmatpush1.msra.mxu0 0.0
        %833 = vmatprep.subr.mxu0 0.0
        %834 = vmatpush1.msra.mxu0 0.0
        %835 = vmatprep.subr.mxu0 0.0
        %836 = vmatpush1.msra.mxu0 0.0
        %837 = vmatprep.subr.mxu0 0.0
        %838 = vmatpush1.msra.mxu0 0.0
        %839 = vmatprep.subr.mxu0 0.0
        %840 = vmatpush1.msra.mxu0 0.0
        %841 = vmatprep.subr.mxu0 0.0
        %842 = vmatpush1.msra.mxu0 0.0
        %843 = vmatprep.subr.mxu0 0.0
        %844 = vmatpush1.msra.mxu0 0.0
        %845 = vmatprep.subr.mxu0 0.0
        %846 = vmatpush1.msra.mxu0 0.0
        %847 = vmatprep.subr.mxu0 0.0
        %848 = vmatpush1.msra.mxu0 0.0
        %849 = vmatprep.subr.mxu0 0.0
        %850 = vmatpush1.msra.mxu0 0.0
        %851 = vmatprep.subr.mxu0 0.0
        %852 = vmatpush1.msra.mxu0 0.0
        %853 = vmatprep.subr.mxu0 0.0
        %854 = vmatpush1.msra.mxu0 0.0
        %855 = vmatprep.mubr.f32.mxu0 0.0
        %856 = vmatmul.mubr.f32.gmra.mrb[0].mxu0 %v742
        %v857 = vpop.f32.mrb[0].mxu0
        %v858 = vadd.f32 0.0, %v857
        %v859 = vpop.f32.mrb[0].mxu0
        %v860 = vadd.f32 0.0, %v859
        %861 = vdwg.mxu0
        %862 = vmatprep.subr.mxu0 0.0
        %863 = vmatpush1.msra.mxu0 %v745
        %864 = vmatprep.subr.mxu0 0.0
        %865 = vmatpush1.msra.mxu0 %v748
        %866 = vmatprep.subr.mxu0 0.0
        %867 = vmatpush1.msra.mxu0 %v751
        %868 = vmatprep.subr.mxu0 0.0
        %869 = vmatpush1.msra.mxu0 %v754
        %870 = vmatprep.subr.mxu0 0.0
        %871 = vmatpush1.msra.mxu0 %v757
        %872 = vmatprep.subr.mxu0 0.0
        %873 = vmatpush1.msra.mxu0 %v760
        %874 = vmatprep.subr.mxu0 0.0
        %875 = vmatpush1.msra.mxu0 %v763
        %876 = vmatprep.subr.mxu0 0.0
        %877 = vmatpush1.msra.mxu0 %v766
        %878 = vmatprep.subr.mxu0 0.0
        %879 = vmatpush1.msra.mxu0 %v769
        %880 = vmatprep.subr.mxu0 0.0
        %881 = vmatpush1.msra.mxu0 %v772
        %882 = vmatprep.subr.mxu0 0.0
        %883 = vmatpush1.msra.mxu0 %v775
        %884 = vmatprep.subr.mxu0 0.0
        %885 = vmatpush1.msra.mxu0 %v778
        %886 = vmatprep.subr.mxu0 0.0
        %887 = vmatpush1.msra.mxu0 %v781
        %888 = vmatprep.subr.mxu0 0.0
        %889 = vmatpush1.msra.mxu0 %v784
        %890 = vmatprep.subr.mxu0 0.0
        %891 = vmatpush1.msra.mxu0 %v787
        %892 = vmatprep.subr.mxu0 0.0
        %893 = vmatpush1.msra.mxu0 %v790
        %894 = vmatprep.subr.mxu0 0.0
        %895 = vmatpush1.msra.mxu0 0.0
        %896 = vmatprep.subr.mxu0 0.0
        %897 = vmatpush1.msra.mxu0 0.0
        %898 = vmatprep.subr.mxu0 0.0
        %899 = vmatpush1.msra.mxu0 0.0
        %900 = vmatprep.subr.mxu0 0.0
        %901 = vmatpush1.msra.mxu0 0.0
        %902 = vmatprep.subr.mxu0 0.0
        %903 = vmatpush1.msra.mxu0 0.0
        %904 = vmatprep.subr.mxu0 0.0
        %905 = vmatpush1.msra.mxu0 0.0
        %906 = vmatprep.subr.mxu0 0.0
        %907 = vmatpush1.msra.mxu0 0.0
        %908 = vmatprep.subr.mxu0 0.0
        %909 = vmatpush1.msra.mxu0 0.0
        %910 = vmatprep.subr.mxu0 0.0
        %911 = vmatpush1.msra.mxu0 0.0
        %912 = vmatprep.subr.mxu0 0.0
        %913 = vmatpush1.msra.mxu0 0.0
        %914 = vmatprep.subr.mxu0 0.0
        %915 = vmatpush1.msra.mxu0 0.0
        %916 = vmatprep.subr.mxu0 0.0
        %917 = vmatpush1.msra.mxu0 0.0
        %918 = vmatprep.subr.mxu0 0.0
        %919 = vmatpush1.msra.mxu0 0.0
        %920 = vmatprep.subr.mxu0 0.0
        %921 = vmatpush1.msra.mxu0 0.0
        %922 = vmatprep.subr.mxu0 0.0
        %923 = vmatpush1.msra.mxu0 0.0
        %924 = vmatprep.subr.mxu0 0.0
        %925 = vmatpush1.msra.mxu0 0.0
        %926 = vmatprep.mubr.f32.mxu0 0.0
        %927 = vmatmul.mubr.f32.gmra.mrb[0].mxu0 %v742
        %v928 = vpop.f32.mrb[0].mxu0
        %v929 = vadd.f32 0.0, %v928
        %v930 = vpop.f32.mrb[0].mxu0
        %931 = vdwg.mxu0
        %s932 = scalar_lea.vmem [#allocation3], 24
        %v933 = vld [vmem:[%s932] sm:$0xff]
        %v934 = vld [vmem:[%s932 + $0x8] sm:$0xff]
        %v935 = vld [vmem:[%s932 + $0x10] sm:$0xff]
        %v936 = vadd.f32 %v933, %v858
        %v937 = vxor.u32 %v936, 2147483648
        %v938 = vmul.f32 %v937, 1.442695
        %v939 = vpow.pop %v938
        %v940 = vadd.f32 %v939, 1.0
        %v941 = vrcp.pop %v940
        %v942 = vmul.f32 1.0, %v941
        %v943 = vadd.f32 %v934, %v860
        %v944 = vxor.u32 %v943, 2147483648
        %v945 = vmul.f32 %v944, 1.442695
        %v946 = vpow.pop %v945
        %v947 = vadd.f32 %v946, 1.0
        %v948 = vrcp.pop %v947
        %v949 = vmul.f32 1.0, %v948
        %v950 = vld [vmem:[%s4] sm:$0x1]
        %v952 = vlaneseq
        %v953 = vshrl.u32 %v952, 7
        %v954 = vsub.s32 0, %v953
        %v955 = vrot.slane %v950, %v954
        %v957 = vadd.f32 %v929, %v955
        %v958 = vmul.f32 %v942, %v957
        %v959 = vadd.f32 %v935, %v958
        %v960 = vtanh.pop %v959
        %v961 = vsub.f32 1.0, %v949
        %v962 = vmul.f32 %v961, %v960
        %v963 = vmul.f32 %v949, %v742
        %v964 = vadd.f32 %v962, %v963
        %965 = vst [vmem:[#allocation2] sm:$0xff] %v964
        %s966 = scalar_lea.vmem %s256, 8
        %967 = vst [vmem:[%s966] sm:$0xff] %v964
        %v968 = vld [vmem:[#allocation2] sm:$0xff]
        %v969 = vld [vmem:[#allocation6] sm:$0xff]
        %v970 = vld [vmem:[#allocation6 + $0x8] sm:$0xff]
        %v971 = vld [vmem:[#allocation6 + $0x10] sm:$0xff]
        %v972 = vld [vmem:[#allocation6 + $0x18] sm:$0xff]
        %v973 = vld [vmem:[#allocation6 + $0x20] sm:$0xff]
        %v974 = vld [vmem:[#allocation6 + $0x28] sm:$0xff]
        %v975 = vld [vmem:[#allocation6 + $0x30] sm:$0xff]
        %v976 = vld [vmem:[#allocation6 + $0x38] sm:$0xff]
        %v977 = vld [vmem:[#allocation6 + $0x40] sm:$0xff]
        %v978 = vld [vmem:[#allocation6 + $0x48] sm:$0xff]
        %v979 = vld [vmem:[#allocation6 + $0x50] sm:$0xff]
        %v980 = vld [vmem:[#allocation6 + $0x58] sm:$0xff]
        %v981 = vld [vmem:[#allocation6 + $0x60] sm:$0xff]
        %v982 = vld [vmem:[#allocation6 + $0x68] sm:$0xff]
        %v983 = vld [vmem:[#allocation6 + $0x70] sm:$0xff]
        %v984 = vld [vmem:[#allocation6 + $0x78] sm:$0xff]
        %v985 = vld [vmem:[#allocation6 + $0x80] sm:$0xff]
        %v986 = vld [vmem:[#allocation6 + $0x88] sm:$0xff]
        %v987 = vld [vmem:[#allocation6 + $0x90] sm:$0xff]
        %v988 = vld [vmem:[#allocation6 + $0x98] sm:$0xff]
        %v989 = vld [vmem:[#allocation6 + $0xa0] sm:$0xff]
        %v990 = vld [vmem:[#allocation6 + $0xa8] sm:$0xff]
        %v991 = vld [vmem:[#allocation6 + $0xb0] sm:$0xff]
        %v992 = vld [vmem:[#allocation6 + $0xb8] sm:$0xff]
        %v993 = vld [vmem:[#allocation6 + $0xc0] sm:$0xff]
        %v994 = vld [vmem:[#allocation6 + $0xc8] sm:$0xff]
        %v995 = vld [vmem:[#allocation6 + $0xd0] sm:$0xff]
        %v996 = vld [vmem:[#allocation6 + $0xd8] sm:$0xff]
        %v997 = vld [vmem:[#allocation6 + $0xe0] sm:$0xff]
        %v998 = vld [vmem:[#allocation6 + $0xe8] sm:$0xff]
        %v999 = vld [vmem:[#allocation6 + $0xf0] sm:$0xff]
        %v1000 = vld [vmem:[#allocation6 + $0xf8] sm:$0xff]
        %v1001 = vld [vmem:[#allocation6 + $0x100] sm:$0xff]
        %v1002 = vld [vmem:[#allocation6 + $0x108] sm:$0xff]
        %v1003 = vld [vmem:[#allocation6 + $0x110] sm:$0xff]
        %v1004 = vld [vmem:[#allocation6 + $0x118] sm:$0xff]
        %v1005 = vld [vmem:[#allocation6 + $0x120] sm:$0xff]
        %v1006 = vld [vmem:[#allocation6 + $0x128] sm:$0xff]
        %v1007 = vld [vmem:[#allocation6 + $0x130] sm:$0xff]
        %v1008 = vld [vmem:[#allocation6 + $0x138] sm:$0xff]
        %v1009 = vld [vmem:[#allocation6 + $0x140] sm:$0xff]
        %v1010 = vld [vmem:[#allocation6 + $0x148] sm:$0xff]
        %v1011 = vld [vmem:[#allocation6 + $0x150] sm:$0xff]
        %v1012 = vld [vmem:[#allocation6 + $0x158] sm:$0xff]
        %v1013 = vld [vmem:[#allocation6 + $0x160] sm:$0xff]
        %v1014 = vld [vmem:[#allocation6 + $0x168] sm:$0xff]
        %v1015 = vld [vmem:[#allocation6 + $0x170] sm:$0xff]
        %v1016 = vld [vmem:[#allocation6 + $0x178] sm:$0xff]
        %1017 = vmatprep.subr.mxu0 %v970
        %1018 = vmatpush1.msra.mxu0 %v969
        %1019 = vmatprep.subr.mxu0 %v973
        %1020 = vmatpush1.msra.mxu0 %v972
        %1021 = vmatprep.subr.mxu0 %v976
        %1022 = vmatpush1.msra.mxu0 %v975
        %1023 = vmatprep.subr.mxu0 %v979
        %1024 = vmatpush1.msra.mxu0 %v978
        %1025 = vmatprep.subr.mxu0 %v982
        %1026 = vmatpush1.msra.mxu0 %v981
        %1027 = vmatprep.subr.mxu0 %v985
        %1028 = vmatpush1.msra.mxu0 %v984
        %1029 = vmatprep.subr.mxu0 %v988
        %1030 = vmatpush1.msra.mxu0 %v987
        %1031 = vmatprep.subr.mxu0 %v991
        %1032 = vmatpush1.msra.mxu0 %v990
        %1033 = vmatprep.subr.mxu0 %v994
        %1034 = vmatpush1.msra.mxu0 %v993
        %1035 = vmatprep.subr.mxu0 %v997
        %1036 = vmatpush1.msra.mxu0 %v996
        %1037 = vmatprep.subr.mxu0 %v1000
        %1038 = vmatpush1.msra.mxu0 %v999
        %1039 = vmatprep.subr.mxu0 %v1003
        %1040 = vmatpush1.msra.mxu0 %v1002
        %1041 = vmatprep.subr.mxu0 %v1006
        %1042 = vmatpush1.msra.mxu0 %v1005
        %1043 = vmatprep.subr.mxu0 %v1009
        %1044 = vmatpush1.msra.mxu0 %v1008
        %1045 = vmatprep.subr.mxu0 %v1012
        %1046 = vmatpush1.msra.mxu0 %v1011
        %1047 = vmatprep.subr.mxu0 %v1015
        %1048 = vmatpush1.msra.mxu0 %v1014
        %1049 = vmatprep.subr.mxu0 0.0
        %1050 = vmatpush1.msra.mxu0 0.0
        %1051 = vmatprep.subr.mxu0 0.0
        %1052 = vmatpush1.msra.mxu0 0.0
        %1053 = vmatprep.subr.mxu0 0.0
        %1054 = vmatpush1.msra.mxu0 0.0
        %1055 = vmatprep.subr.mxu0 0.0
        %1056 = vmatpush1.msra.mxu0 0.0
        %1057 = vmatprep.subr.mxu0 0.0
        %1058 = vmatpush1.msra.mxu0 0.0
        %1059 = vmatprep.subr.mxu0 0.0
        %1060 = vmatpush1.msra.mxu0 0.0
        %1061 = vmatprep.subr.mxu0 0.0
        %1062 = vmatpush1.msra.mxu0 0.0
        %1063 = vmatprep.subr.mxu0 0.0
        %1064 = vmatpush1.msra.mxu0 0.0
        %1065 = vmatprep.subr.mxu0 0.0
        %1066 = vmatpush1.msra.mxu0 0.0
        %1067 = vmatprep.subr.mxu0 0.0
        %1068 = vmatpush1.msra.mxu0 0.0
        %1069 = vmatprep.subr.mxu0 0.0
        %1070 = vmatpush1.msra.mxu0 0.0
        %1071 = vmatprep.subr.mxu0 0.0
        %1072 = vmatpush1.msra.mxu0 0.0
        %1073 = vmatprep.subr.mxu0 0.0
        %1074 = vmatpush1.msra.mxu0 0.0
        %1075 = vmatprep.subr.mxu0 0.0
        %1076 = vmatpush1.msra.mxu0 0.0
        %1077 = vmatprep.subr.mxu0 0.0
        %1078 = vmatpush1.msra.mxu0 0.0
        %1079 = vmatprep.subr.mxu0 0.0
        %1080 = vmatpush1.msra.mxu0 0.0
        %1081 = vmatprep.mubr.f32.mxu0 0.0
        %1082 = vmatmul.mubr.f32.gmra.mrb[0].mxu0 %v968
        %v1083 = vpop.f32.mrb[0].mxu0
        %v1084 = vadd.f32 0.0, %v1083
        %v1085 = vpop.f32.mrb[0].mxu0
        %v1086 = vadd.f32 0.0, %v1085
        %1087 = vdwg.mxu0
        %1088 = vmatprep.subr.mxu0 0.0
        %1089 = vmatpush1.msra.mxu0 %v971
        %1090 = vmatprep.subr.mxu0 0.0
        %1091 = vmatpush1.msra.mxu0 %v974
        %1092 = vmatprep.subr.mxu0 0.0
        %1093 = vmatpush1.msra.mxu0 %v977
        %1094 = vmatprep.subr.mxu0 0.0
        %1095 = vmatpush1.msra.mxu0 %v980
        %1096 = vmatprep.subr.mxu0 0.0
        %1097 = vmatpush1.msra.mxu0 %v983
        %1098 = vmatprep.subr.mxu0 0.0
        %1099 = vmatpush1.msra.mxu0 %v986
        %1100 = vmatprep.subr.mxu0 0.0
        %1101 = vmatpush1.msra.mxu0 %v989
        %1102 = vmatprep.subr.mxu0 0.0
        %1103 = vmatpush1.msra.mxu0 %v992
        %1104 = vmatprep.subr.mxu0 0.0
        %1105 = vmatpush1.msra.mxu0 %v995
        %1106 = vmatprep.subr.mxu0 0.0
        %1107 = vmatpush1.msra.mxu0 %v998
        %1108 = vmatprep.subr.mxu0 0.0
        %1109 = vmatpush1.msra.mxu0 %v1001
        %1110 = vmatprep.subr.mxu0 0.0
        %1111 = vmatpush1.msra.mxu0 %v1004
        %1112 = vmatprep.subr.mxu0 0.0
        %1113 = vmatpush1.msra.mxu0 %v1007
        %1114 = vmatprep.subr.mxu0 0.0
        %1115 = vmatpush1.msra.mxu0 %v1010
        %1116 = vmatprep.subr.mxu0 0.0
        %1117 = vmatpush1.msra.mxu0 %v1013
        %1118 = vmatprep.subr.mxu0 0.0
        %1119 = vmatpush1.msra.mxu0 %v1016
        %1120 = vmatprep.subr.mxu0 0.0
        %1121 = vmatpush1.msra.mxu0 0.0
        %1122 = vmatprep.subr.mxu0 0.0
        %1123 = vmatpush1.msra.mxu0 0.0
        %1124 = vmatprep.subr.mxu0 0.0
        %1125 = vmatpush1.msra.mxu0 0.0
        %1126 = vmatprep.subr.mxu0 0.0
        %1127 = vmatpush1.msra.mxu0 0.0
        %1128 = vmatprep.subr.mxu0 0.0
        %1129 = vmatpush1.msra.mxu0 0.0
        %1130 = vmatprep.subr.mxu0 0.0
        %1131 = vmatpush1.msra.mxu0 0.0
        %1132 = vmatprep.subr.mxu0 0.0
        %1133 = vmatpush1.msra.mxu0 0.0
        %1134 = vmatprep.subr.mxu0 0.0
        %1135 = vmatpush1.msra.mxu0 0.0
        %1136 = vmatprep.subr.mxu0 0.0
        %1137 = vmatpush1.msra.mxu0 0.0
        %1138 = vmatprep.subr.mxu0 0.0
        %1139 = vmatpush1.msra.mxu0 0.0
        %1140 = vmatprep.subr.mxu0 0.0
        %1141 = vmatpush1.msra.mxu0 0.0
        %1142 = vmatprep.subr.mxu0 0.0
        %1143 = vmatpush1.msra.mxu0 0.0
        %1144 = vmatprep.subr.mxu0 0.0
        %1145 = vmatpush1.msra.mxu0 0.0
        %1146 = vmatprep.subr.mxu0 0.0
        %1147 = vmatpush1.msra.mxu0 0.0
        %1148 = vmatprep.subr.mxu0 0.0
        %1149 = vmatpush1.msra.mxu0 0.0
        %1150 = vmatprep.subr.mxu0 0.0
        %1151 = vmatpush1.msra.mxu0 0.0
        %1152 = vmatprep.mubr.f32.mxu0 0.0
        %1153 = vmatmul.mubr.f32.gmra.mrb[0].mxu0 %v968
        %v1154 = vpop.f32.mrb[0].mxu0
        %v1155 = vadd.f32 0.0, %v1154
        %v1156 = vpop.f32.mrb[0].mxu0
        %1157 = vdwg.mxu0
        %s1158 = scalar_lea.vmem [#allocation3], 48
        %v1159 = vld [vmem:[%s1158] sm:$0xff]
        %v1160 = vld [vmem:[%s1158 + $0x8] sm:$0xff]
        %v1161 = vld [vmem:[%s1158 + $0x10] sm:$0xff]
        %v1162 = vadd.f32 %v1159, %v1084
        %v1163 = vxor.u32 %v1162, 2147483648
        %v1164 = vmul.f32 %v1163, 1.442695
        %v1165 = vpow.pop %v1164
        %v1166 = vadd.f32 %v1165, 1.0
        %v1167 = vrcp.pop %v1166
        %v1168 = vmul.f32 1.0, %v1167
        %v1169 = vadd.f32 %v1160, %v1086
        %v1170 = vxor.u32 %v1169, 2147483648
        %v1171 = vmul.f32 %v1170, 1.442695
        %v1172 = vpow.pop %v1171
        %v1173 = vadd.f32 %v1172, 1.0
        %v1174 = vrcp.pop %v1173
        %v1175 = vmul.f32 1.0, %v1174
        %v1176 = vld [vmem:[%s4] sm:$0x1]
        %v1178 = vlaneseq
        %v1179 = vshrl.u32 %v1178, 7
        %v1180 = vsub.s32 0, %v1179
        %v1181 = vrot.slane %v1176, %v1180
        %v1183 = vadd.f32 %v1155, %v1181
        %v1184 = vmul.f32 %v1168, %v1183
        %v1185 = vadd.f32 %v1161, %v1184
        %v1186 = vtanh.pop %v1185
        %v1187 = vsub.f32 1.0, %v1175
        %v1188 = vmul.f32 %v1187, %v1186
        %v1189 = vmul.f32 %v1175, %v968
        %v1190 = vadd.f32 %v1188, %v1189
        %1191 = vst [vmem:[#allocation2] sm:$0xff] %v1190
        %s1192 = scalar_lea.vmem %s256, 16
        %1193 = vst [vmem:[%s1192] sm:$0xff] %v1190
        %v1194 = vld [vmem:[#allocation2] sm:$0xff]
        %v1195 = vld [vmem:[#allocation6] sm:$0xff]
        %v1196 = vld [vmem:[#allocation6 + $0x8] sm:$0xff]
        %v1197 = vld [vmem:[#allocation6 + $0x10] sm:$0xff]
        %v1198 = vld [vmem:[#allocation6 + $0x18] sm:$0xff]
        %v1199 = vld [vmem:[#allocation6 + $0x20] sm:$0xff]
        %v1200 = vld [vmem:[#allocation6 + $0x28] sm:$0xff]
        %v1201 = vld [vmem:[#allocation6 + $0x30] sm:$0xff]
        %v1202 = vld [vmem:[#allocation6 + $0x38] sm:$0xff]
        %v1203 = vld [vmem:[#allocation6 + $0x40] sm:$0xff]
        %v1204 = vld [vmem:[#allocation6 + $0x48] sm:$0xff]
        %v1205 = vld [vmem:[#allocation6 + $0x50] sm:$0xff]
        %v1206 = vld [vmem:[#allocation6 + $0x58] sm:$0xff]
        %v1207 = vld [vmem:[#allocation6 + $0x60] sm:$0xff]
        %v1208 = vld [vmem:[#allocation6 + $0x68] sm:$0xff]
        %v1209 = vld [vmem:[#allocation6 + $0x70] sm:$0xff]
        %v1210 = vld [vmem:[#allocation6 + $0x78] sm:$0xff]
        %v1211 = vld [vmem:[#allocation6 + $0x80] sm:$0xff]
        %v1212 = vld [vmem:[#allocation6 + $0x88] sm:$0xff]
        %v1213 = vld [vmem:[#allocation6 + $0x90] sm:$0xff]
        %v1214 = vld [vmem:[#allocation6 + $0x98] sm:$0xff]
        %v1215 = vld [vmem:[#allocation6 + $0xa0] sm:$0xff]
        %v1216 = vld [vmem:[#allocation6 + $0xa8] sm:$0xff]
        %v1217 = vld [vmem:[#allocation6 + $0xb0] sm:$0xff]
        %v1218 = vld [vmem:[#allocation6 + $0xb8] sm:$0xff]
        %v1219 = vld [vmem:[#allocation6 + $0xc0] sm:$0xff]
        %v1220 = vld [vmem:[#allocation6 + $0xc8] sm:$0xff]
        %v1221 = vld [vmem:[#allocation6 + $0xd0] sm:$0xff]
        %v1222 = vld [vmem:[#allocation6 + $0xd8] sm:$0xff]
        %v1223 = vld [vmem:[#allocation6 + $0xe0] sm:$0xff]
        %v1224 = vld [vmem:[#allocation6 + $0xe8] sm:$0xff]
        %v1225 = vld [vmem:[#allocation6 + $0xf0] sm:$0xff]
        %v1226 = vld [vmem:[#allocation6 + $0xf8] sm:$0xff]
        %v1227 = vld [vmem:[#allocation6 + $0x100] sm:$0xff]
        %v1228 = vld [vmem:[#allocation6 + $0x108] sm:$0xff]
        %v1229 = vld [vmem:[#allocation6 + $0x110] sm:$0xff]
        %v1230 = vld [vmem:[#allocation6 + $0x118] sm:$0xff]
        %v1231 = vld [vmem:[#allocation6 + $0x120] sm:$0xff]
        %v1232 = vld [vmem:[#allocation6 + $0x128] sm:$0xff]
        %v1233 = vld [vmem:[#allocation6 + $0x130] sm:$0xff]
        %v1234 = vld [vmem:[#allocation6 + $0x138] sm:$0xff]
        %v1235 = vld [vmem:[#allocation6 + $0x140] sm:$0xff]
        %v1236 = vld [vmem:[#allocation6 + $0x148] sm:$0xff]
        %v1237 = vld [vmem:[#allocation6 + $0x150] sm:$0xff]
        %v1238 = vld [vmem:[#allocation6 + $0x158] sm:$0xff]
        %v1239 = vld [vmem:[#allocation6 + $0x160] sm:$0xff]
        %v1240 = vld [vmem:[#allocation6 + $0x168] sm:$0xff]
        %v1241 = vld [vmem:[#allocation6 + $0x170] sm:$0xff]
        %v1242 = vld [vmem:[#allocation6 + $0x178] sm:$0xff]
        %1243 = vmatprep.subr.mxu0 %v1196
        %1244 = vmatpush1.msra.mxu0 %v1195
        %1245 = vmatprep.subr.mxu0 %v1199
        %1246 = vmatpush1.msra.mxu0 %v1198
        %1247 = vmatprep.subr.mxu0 %v1202
        %1248 = vmatpush1.msra.mxu0 %v1201
        %1249 = vmatprep.subr.mxu0 %v1205
        %1250 = vmatpush1.msra.mxu0 %v1204
        %1251 = vmatprep.subr.mxu0 %v1208
        %1252 = vmatpush1.msra.mxu0 %v1207
        %1253 = vmatprep.subr.mxu0 %v1211
        %1254 = vmatpush1.msra.mxu0 %v1210
        %1255 = vmatprep.subr.mxu0 %v1214
        %1256 = vmatpush1.msra.mxu0 %v1213
        %1257 = vmatprep.subr.mxu0 %v1217
        %1258 = vmatpush1.msra.mxu0 %v1216
        %1259 = vmatprep.subr.mxu0 %v1220
        %1260 = vmatpush1.msra.mxu0 %v1219
        %1261 = vmatprep.subr.mxu0 %v1223
        %1262 = vmatpush1.msra.mxu0 %v1222
        %1263 = vmatprep.subr.mxu0 %v1226
        %1264 = vmatpush1.msra.mxu0 %v1225
        %1265 = vmatprep.subr.mxu0 %v1229
        %1266 = vmatpush1.msra.mxu0 %v1228
        %1267 = vmatprep.subr.mxu0 %v1232
        %1268 = vmatpush1.msra.mxu0 %v1231
        %1269 = vmatprep.subr.mxu0 %v1235
        %1270 = vmatpush1.msra.mxu0 %v1234
        %1271 = vmatprep.subr.mxu0 %v1238
        %1272 = vmatpush1.msra.mxu0 %v1237
        %1273 = vmatprep.subr.mxu0 %v1241
        %1274 = vmatpush1.msra.mxu0 %v1240
        %1275 = vmatprep.subr.mxu0 0.0
        %1276 = vmatpush1.msra.mxu0 0.0
        %1277 = vmatprep.subr.mxu0 0.0
        %1278 = vmatpush1.msra.mxu0 0.0
        %1279 = vmatprep.subr.mxu0 0.0
        %1280 = vmatpush1.msra.mxu0 0.0
        %1281 = vmatprep.subr.mxu0 0.0
        %1282 = vmatpush1.msra.mxu0 0.0
        %1283 = vmatprep.subr.mxu0 0.0
        %1284 = vmatpush1.msra.mxu0 0.0
        %1285 = vmatprep.subr.mxu0 0.0
        %1286 = vmatpush1.msra.mxu0 0.0
        %1287 = vmatprep.subr.mxu0 0.0
        %1288 = vmatpush1.msra.mxu0 0.0
        %1289 = vmatprep.subr.mxu0 0.0
        %1290 = vmatpush1.msra.mxu0 0.0
        %1291 = vmatprep.subr.mxu0 0.0
        %1292 = vmatpush1.msra.mxu0 0.0
        %1293 = vmatprep.subr.mxu0 0.0
        %1294 = vmatpush1.msra.mxu0 0.0
        %1295 = vmatprep.subr.mxu0 0.0
        %1296 = vmatpush1.msra.mxu0 0.0
        %1297 = vmatprep.subr.mxu0 0.0
        %1298 = vmatpush1.msra.mxu0 0.0
        %1299 = vmatprep.subr.mxu0 0.0
        %1300 = vmatpush1.msra.mxu0 0.0
        %1301 = vmatprep.subr.mxu0 0.0
        %1302 = vmatpush1.msra.mxu0 0.0
        %1303 = vmatprep.subr.mxu0 0.0
        %1304 = vmatpush1.msra.mxu0 0.0
        %1305 = vmatprep.subr.mxu0 0.0
        %1306 = vmatpush1.msra.mxu0 0.0
        %1307 = vmatprep.mubr.f32.mxu0 0.0
        %1308 = vmatmul.mubr.f32.gmra.mrb[0].mxu0 %v1194
        %v1309 = vpop.f32.mrb[0].mxu0
        %v1310 = vadd.f32 0.0, %v1309
        %v1311 = vpop.f32.mrb[0].mxu0
        %v1312 = vadd.f32 0.0, %v1311
        %1313 = vdwg.mxu0
        %1314 = vmatprep.subr.mxu0 0.0
        %1315 = vmatpush1.msra.mxu0 %v1197
        %1316 = vmatprep.subr.mxu0 0.0
        %1317 = vmatpush1.msra.mxu0 %v1200
        %1318 = vmatprep.subr.mxu0 0.0
        %1319 = vmatpush1.msra.mxu0 %v1203
        %1320 = vmatprep.subr.mxu0 0.0
        %1321 = vmatpush1.msra.mxu0 %v1206
        %1322 = vmatprep.subr.mxu0 0.0
        %1323 = vmatpush1.msra.mxu0 %v1209
        %1324 = vmatprep.subr.mxu0 0.0
        %1325 = vmatpush1.msra.mxu0 %v1212
        %1326 = vmatprep.subr.mxu0 0.0
        %1327 = vmatpush1.msra.mxu0 %v1215
        %1328 = vmatprep.subr.mxu0 0.0
        %1329 = vmatpush1.msra.mxu0 %v1218
        %1330 = vmatprep.subr.mxu0 0.0
        %1331 = vmatpush1.msra.mxu0 %v1221
        %1332 = vmatprep.subr.mxu0 0.0
        %1333 = vmatpush1.msra.mxu0 %v1224
        %1334 = vmatprep.subr.mxu0 0.0
        %1335 = vmatpush1.msra.mxu0 %v1227
        %1336 = vmatprep.subr.mxu0 0.0
        %1337 = vmatpush1.msra.mxu0 %v1230
        %1338 = vmatprep.subr.mxu0 0.0
        %1339 = vmatpush1.msra.mxu0 %v1233
        %1340 = vmatprep.subr.mxu0 0.0
        %1341 = vmatpush1.msra.mxu0 %v1236
        %1342 = vmatprep.subr.mxu0 0.0
        %1343 = vmatpush1.msra.mxu0 %v1239
        %1344 = vmatprep.subr.mxu0 0.0
        %1345 = vmatpush1.msra.mxu0 %v1242
        %1346 = vmatprep.subr.mxu0 0.0
        %1347 = vmatpush1.msra.mxu0 0.0
        %1348 = vmatprep.subr.mxu0 0.0
        %1349 = vmatpush1.msra.mxu0 0.0
        %1350 = vmatprep.subr.mxu0 0.0
        %1351 = vmatpush1.msra.mxu0 0.0
        %1352 = vmatprep.subr.mxu0 0.0
        %1353 = vmatpush1.msra.mxu0 0.0
        %1354 = vmatprep.subr.mxu0 0.0
        %1355 = vmatpush1.msra.mxu0 0.0
        %1356 = vmatprep.subr.mxu0 0.0
        %1357 = vmatpush1.msra.mxu0 0.0
        %1358 = vmatprep.subr.mxu0 0.0
        %1359 = vmatpush1.msra.mxu0 0.0
        %1360 = vmatprep.subr.mxu0 0.0
        %1361 = vmatpush1.msra.mxu0 0.0
        %1362 = vmatprep.subr.mxu0 0.0
        %1363 = vmatpush1.msra.mxu0 0.0
        %1364 = vmatprep.subr.mxu0 0.0
        %1365 = vmatpush1.msra.mxu0 0.0
        %1366 = vmatprep.subr.mxu0 0.0
        %1367 = vmatpush1.msra.mxu0 0.0
        %1368 = vmatprep.subr.mxu0 0.0
        %1369 = vmatpush1.msra.mxu0 0.0
        %1370 = vmatprep.subr.mxu0 0.0
        %1371 = vmatpush1.msra.mxu0 0.0
        %1372 = vmatprep.subr.mxu0 0.0
        %1373 = vmatpush1.msra.mxu0 0.0
        %1374 = vmatprep.subr.mxu0 0.0
        %1375 = vmatpush1.msra.mxu0 0.0
        %1376 = vmatprep.subr.mxu0 0.0
        %1377 = vmatpush1.msra.mxu0 0.0
        %1378 = vmatprep.mubr.f32.mxu0 0.0
        %1379 = vmatmul.mubr.f32.gmra.mrb[0].mxu0 %v1194
        %v1380 = vpop.f32.mrb[0].mxu0
        %v1381 = vadd.f32 0.0, %v1380
        %v1382 = vpop.f32.mrb[0].mxu0
        %1383 = vdwg.mxu0
        %s1384 = scalar_lea.vmem [#allocation3], 72
        %v1385 = vld [vmem:[%s1384] sm:$0xff]
        %v1386 = vld [vmem:[%s1384 + $0x8] sm:$0xff]
        %v1387 = vld [vmem:[%s1384 + $0x10] sm:$0xff]
        %v1388 = vadd.f32 %v1385, %v1310
        %v1389 = vxor.u32 %v1388, 2147483648
        %v1390 = vmul.f32 %v1389, 1.442695
        %v1391 = vpow.pop %v1390
        %v1392 = vadd.f32 %v1391, 1.0
        %v1393 = vrcp.pop %v1392
        %v1394 = vmul.f32 1.0, %v1393
        %v1395 = vadd.f32 %v1386, %v1312
        %v1396 = vxor.u32 %v1395, 2147483648
        %v1397 = vmul.f32 %v1396, 1.442695
        %v1398 = vpow.pop %v1397
        %v1399 = vadd.f32 %v1398, 1.0
        %v1400 = vrcp.pop %v1399
        %v1401 = vmul.f32 1.0, %v1400
        %v1402 = vld [vmem:[%s4] sm:$0x1]
        %v1404 = vlaneseq
        %v1405 = vshrl.u32 %v1404, 7
        %v1406 = vsub.s32 0, %v1405
        %v1407 = vrot.slane %v1402, %v1406
        %v1409 = vadd.f32 %v1381, %v1407
        %v1410 = vmul.f32 %v1394, %v1409
        %v1411 = vadd.f32 %v1387, %v1410
        %v1412 = vtanh.pop %v1411
        %v1413 = vsub.f32 1.0, %v1401
        %v1414 = vmul.f32 %v1413, %v1412
        %v1415 = vmul.f32 %v1401, %v1194
        %v1416 = vadd.f32 %v1414, %v1415
        %1417 = vst [vmem:[#allocation2] sm:$0xff] %v1416
        %s1418 = scalar_lea.vmem %s256, 24
        %1419 = vst [vmem:[%s1418] sm:$0xff] %v1416
        %s1420 = smul.u32 4, %s18
        %p1421 = scmp.lt.s32.totalorder %s1420, 7
        %s1422 = scalar_select %p1421, %s1420, 7
        %s1423 = smul.addr %s1422, 8
        %s1424 = scalar_lea.vmem %s5, %s1423
        // Predicated region
        $region53: #{_lambda_.2} parent=39 // pred_check
          %p1425 = pneg %p146
        $region54: #{_lambda_.2} parent=39 // pred_check_branch
          %1427 = sbr.rel (%p1425) target = $region56
        $region55: #{_lambda_.2} parent=39 // pred_region
          %s1428 = smul.u32 4, %s18
        $region56: #{_lambda_.2} parent=39 // pred_fallthru
          _
      $region40: #{_lambda_.2} parent=5 // pred_fallthru
        _
      %p1429 = scmp.le.s32.totalorder 2, %s13
      // Predicated region
      $region57: #{_lambda_.2} parent=5 // pred_check
        %p1430 = pneg %p1429
      $region58: #{_lambda_.2} parent=5 // pred_check_branch
        %1432 = sbr.rel (%p1430) target = $region60
      $region59: #{_lambda_.2} parent=5 // pred_region
        %s1433 = ssub.s32 %s13, 2
        // Predicated region
        $region61: #{_lambda_.2} parent=59 // pred_check
          %p1434 = pneg %p152
        $region62: #{_lambda_.2} parent=59 // pred_check_branch
          %1436 = sbr.rel (%p1434) target = $region64
        $region63: #{_lambda_.2} parent=59 // pred_region
          %s1437 = smul.u32 4, %s19
          %p1438 = scmp.lt.s32.totalorder %s1437, 7
          %s1439 = scalar_select %p1438, %s1437, 7
          %s1440 = smul.addr %s1439, 8
          %s1441 = scalar_lea.vmem %s5, %s1440
        $region64: #{_lambda_.2} parent=59 // pred_fallthru
          _
      $region60: #{_lambda_.2} parent=5 // pred_fallthru
        _
    $region6: #{_lambda_.2} parent=1 // loop_footer
      %s17 = sadd.s32 1, %s13
    $region7: #{_lambda_.2} parent=1 // loop_footer_branch
      %12 = sbr.rel target = $region3
    $region8: #{_lambda_.2} parent=1 // loop_exit
      _
    %1442 = vsyncpa [#allocation5], 1
    %s1443 = scalar_lea.sflag [#allocation5], 1
    %1444 = vsyncpa %s1443, 1
    %1445 = vsyncpa [#allocation7], 1

// kernel: _lambda_.3
$region0: #{_lambda_.3}
  #allocation0 [shape = 'u32[]', space=smem, size = 0x4, offset = 0x4, fixed_abs, tag = 'smem constant byte address 0x4 - core index']
  #allocation1 [shape = 'u32[144,128]{1,0:T(1,128)}', space=vmem, size = 0x12000, scoped, tag = 'internal scratch']
  #allocation2 [shape = 'f32[8,128]{1,0:T(8,128)}', space=vmem, size = 0x1000, scoped, tag = 'scratch operand']
  #allocation3 [shape = 'f32[4,8,384]{2,1,0:T(8,128)}', space=vmem, size = 0xc000, scoped, tag = 'scratch operand']
  %s0 = inlined_call_operand.vmem [shape: f32[8,8,128], index: 0, kind: input, shape index: {}]
  %s1 = inlined_call_operand.vmem [shape: f32[128,384], index: 1, kind: input, shape index: {}]
  %s2 = inlined_call_operand.vmem [shape: f32[128,384], index: 2, kind: input, shape index: {}]
  %s3 = inlined_call_operand.vmem [shape: f32[1,384], index: 3, kind: input, shape index: {}]
  %s4 = inlined_call_operand.vmem [shape: f32[1,128], index: 4, kind: input, shape index: {}]
  %s5 = inlined_call_operand.vmem [shape: f32[128,128], index: 5, kind: input, shape index: {}]
  %s6 = inlined_call_operand.vmem [shape: f32[1,128], index: 6, kind: input, shape index: {}]
  %s7 = inlined_call_operand.vmem [shape: f32[8,128], index: 7, kind: output, shape index: {}]
  %s8 = sld [smem:[#allocation0]]
  $region69: #{_lambda_.3} parent=0
    _
  %s10 = ssub.s32 1, %s8
  %s11 = scalar_select 0, %s10, %s8
  loop: start=0, step=1, limit=4
  $region2: #{_lambda_.3} parent=0 // loop_pre_header
    _
  $region3: #{_lambda_.3} parent=0 // loop_header
    %s13 = sphi 0, %s17
    %p14 = scmp.ge.s32.totalorder %s13, 4
    %s23 = sphi 0, %s25
    %s26 = sphi 0, %s23
    %s27 = sphi 0, %s26
    %s43 = sphi 0, %s27
    %s47 = sphi 0, %s47
    %s49 = sphi 0, %s47
    %s50 = sphi 0, %s49
    %s64 = sphi 0, %s50
    %s68 = sphi 0, %s68
    %s70 = sphi 0, %s68
    %s71 = sphi 0, %s70
    %s85 = sphi 0, %s71
    %s89 = sphi 0, %s89
    %s91 = sphi 0, %s89
    %s92 = sphi 0, %s91
    %s106 = sphi 0, %s92
    %s110 = sphi 0, %s110
    %s112 = sphi 0, %s110
    %s113 = sphi 0, %s112
    %s127 = sphi 0, %s113
    %s131 = sphi 0, %s131
    %s133 = sphi 0, %s131
    %s134 = sphi 0, %s133
    %s148 = sphi 0, %s134
    %s152 = sphi 0, %s152
    %s154 = sphi 0, %s152
    %s155 = sphi 0, %s154
    %s169 = sphi 0, %s155
    %s173 = sphi 0, %s173
    %s175 = sphi 0, %s173
    %s176 = sphi 0, %s175
    %s190 = sphi 0, %s176
  $region4: #{_lambda_.3} parent=0 // loop_header_branch
    %16 = sbr.rel (%p14) target = $region8
  $region5: #{_lambda_.3} parent=0 // loop_body
    %s18 = ssub.s32 %s13, 1
    %s19 = ssub.s32 %s13, 2
    %s20 = sadd.s32 %s13, 1
    %s21 = ssub.s32 %s13, %s20
    %p22 = scmp.eq.s32.totalorder %s21, 0
    %s24 = sadd.s32 %s23, 1
    %s25 = scalar_select %p22, %s23, %s24
    %p28 = pneg %p22
    %p29 = scmp.eq.s32.totalorder %s13, 1
    %p30 = por %p28, %p29
    %p31 = scmp.ne.s32.totalorder %s23, %s26
    %p32 = scmp.eq.s32.totalorder %s13, 0
    %p33 = por %p31, %p32
    %p34 = scmp.ne.s32.totalorder %s23, %s26
    %p35 = scmp.eq.s32.totalorder %s18, 1
    %p36 = por %p34, %p35
    %p37 = scmp.ne.s32.totalorder %s26, %s27
    %p38 = scmp.eq.s32.totalorder %s18, 0
    %p39 = por %p37, %p38
    %p40 = scmp.ne.s32.totalorder %s26, %s27
    %p41 = scmp.eq.s32.totalorder %s19, 1
    %p42 = por %p40, %p41
    %p44 = scmp.ne.s32.totalorder %s27, %s43
    %p45 = scmp.eq.s32.totalorder %s19, 0
    %p46 = por %p44, %p45
    %s48 = sadd.s32 %s47, 1
    %p51 = scmp.eq.s32.totalorder %s13, 1
    %p52 = scmp.ne.s32.totalorder %s47, %s49
    %p53 = scmp.eq.s32.totalorder %s13, 0
    %p54 = por %p52, %p53
    %p55 = scmp.ne.s32.totalorder %s47, %s49
    %p56 = scmp.eq.s32.totalorder %s18, 1
    %p57 = por %p55, %p56
    %p58 = scmp.ne.s32.totalorder %s49, %s50
    %p59 = scmp.eq.s32.totalorder %s18, 0
    %p60 = por %p58, %p59
    %p61 = scmp.ne.s32.totalorder %s49, %s50
    %p62 = scmp.eq.s32.totalorder %s19, 1
    %p63 = por %p61, %p62
    %p65 = scmp.ne.s32.totalorder %s50, %s64
    %p66 = scmp.eq.s32.totalorder %s19, 0
    %p67 = por %p65, %p66
    %s69 = sadd.s32 %s68, 1
    %p72 = scmp.eq.s32.totalorder %s13, 1
    %p73 = scmp.ne.s32.totalorder %s68, %s70
    %p74 = scmp.eq.s32.totalorder %s13, 0
    %p75 = por %p73, %p74
    %p76 = scmp.ne.s32.totalorder %s68, %s70
    %p77 = scmp.eq.s32.totalorder %s18, 1
    %p78 = por %p76, %p77
    %p79 = scmp.ne.s32.totalorder %s70, %s71
    %p80 = scmp.eq.s32.totalorder %s18, 0
    %p81 = por %p79, %p80
    %p82 = scmp.ne.s32.totalorder %s70, %s71
    %p83 = scmp.eq.s32.totalorder %s19, 1
    %p84 = por %p82, %p83
    %p86 = scmp.ne.s32.totalorder %s71, %s85
    %p87 = scmp.eq.s32.totalorder %s19, 0
    %p88 = por %p86, %p87
    %s90 = sadd.s32 %s89, 1
    %p93 = scmp.eq.s32.totalorder %s13, 1
    %p94 = scmp.ne.s32.totalorder %s89, %s91
    %p95 = scmp.eq.s32.totalorder %s13, 0
    %p96 = por %p94, %p95
    %p97 = scmp.ne.s32.totalorder %s89, %s91
    %p98 = scmp.eq.s32.totalorder %s18, 1
    %p99 = por %p97, %p98
    %p100 = scmp.ne.s32.totalorder %s91, %s92
    %p101 = scmp.eq.s32.totalorder %s18, 0
    %p102 = por %p100, %p101
    %p103 = scmp.ne.s32.totalorder %s91, %s92
    %p104 = scmp.eq.s32.totalorder %s19, 1
    %p105 = por %p103, %p104
    %p107 = scmp.ne.s32.totalorder %s92, %s106
    %p108 = scmp.eq.s32.totalorder %s19, 0
    %p109 = por %p107, %p108
    %s111 = sadd.s32 %s110, 1
    %p114 = scmp.eq.s32.totalorder %s13, 1
    %p115 = scmp.ne.s32.totalorder %s110, %s112
    %p116 = scmp.eq.s32.totalorder %s13, 0
    %p117 = por %p115, %p116
    %p118 = scmp.ne.s32.totalorder %s110, %s112
    %p119 = scmp.eq.s32.totalorder %s18, 1
    %p120 = por %p118, %p119
    %p121 = scmp.ne.s32.totalorder %s112, %s113
    %p122 = scmp.eq.s32.totalorder %s18, 0
    %p123 = por %p121, %p122
    %p124 = scmp.ne.s32.totalorder %s112, %s113
    %p125 = scmp.eq.s32.totalorder %s19, 1
    %p126 = por %p124, %p125
    %p128 = scmp.ne.s32.totalorder %s113, %s127
    %p129 = scmp.eq.s32.totalorder %s19, 0
    %p130 = por %p128, %p129
    %s132 = sadd.s32 %s131, 1
    %p135 = scmp.eq.s32.totalorder %s13, 1
    %p136 = scmp.ne.s32.totalorder %s131, %s133
    %p137 = scmp.eq.s32.totalorder %s13, 0
    %p138 = por %p136, %p137
    %p139 = scmp.ne.s32.totalorder %s131, %s133
    %p140 = scmp.eq.s32.totalorder %s18, 1
    %p141 = por %p139, %p140
    %p142 = scmp.ne.s32.totalorder %s133, %s134
    %p143 = scmp.eq.s32.totalorder %s18, 0
    %p144 = por %p142, %p143
    %p145 = scmp.ne.s32.totalorder %s133, %s134
    %p146 = scmp.eq.s32.totalorder %s19, 1
    %p147 = por %p145, %p146
    %p149 = scmp.ne.s32.totalorder %s134, %s148
    %p150 = scmp.eq.s32.totalorder %s19, 0
    %p151 = por %p149, %p150
    %s153 = sadd.s32 %s152, 1
    %p156 = scmp.eq.s32.totalorder %s13, 1
    %p157 = scmp.ne.s32.totalorder %s152, %s154
    %p158 = scmp.eq.s32.totalorder %s13, 0
    %p159 = por %p157, %p158
    %p160 = scmp.ne.s32.totalorder %s152, %s154
    %p161 = scmp.eq.s32.totalorder %s18, 1
    %p162 = por %p160, %p161
    %p163 = scmp.ne.s32.totalorder %s154, %s155
    %p164 = scmp.eq.s32.totalorder %s18, 0
    %p165 = por %p163, %p164
    %p166 = scmp.ne.s32.totalorder %s154, %s155
    %p167 = scmp.eq.s32.totalorder %s19, 1
    %p168 = por %p166, %p167
    %p170 = scmp.ne.s32.totalorder %s155, %s169
    %p171 = scmp.eq.s32.totalorder %s19, 0
    %p172 = por %p170, %p171
    %s174 = sadd.s32 %s173, 1
    %p177 = scmp.eq.s32.totalorder %s13, 1
    %p178 = scmp.ne.s32.totalorder %s173, %s175
    %p179 = scmp.eq.s32.totalorder %s13, 0
    %p180 = por %p178, %p179
    %p181 = scmp.ne.s32.totalorder %s173, %s175
    %p182 = scmp.eq.s32.totalorder %s18, 1
    %p183 = por %p181, %p182
    %p184 = scmp.ne.s32.totalorder %s175, %s176
    %p185 = scmp.eq.s32.totalorder %s18, 0
    %p186 = por %p184, %p185
    %p187 = scmp.ne.s32.totalorder %s175, %s176
    %p188 = scmp.eq.s32.totalorder %s19, 1
    %p189 = por %p187, %p188
    %p191 = scmp.ne.s32.totalorder %s176, %s190
    %p192 = scmp.eq.s32.totalorder %s19, 0
    %p193 = por %p191, %p192
    %p194 = scmp.le.s32.totalorder 1, %s13
    %p195 = scmp.lt.s32.totalorder %s13, 3
    %p196 = pnand %p194, %p195
    %p197 = pneg %p196
    // Predicated region
    $region9: #{_lambda_.3} parent=5 // pred_check
      _
    $region10: #{_lambda_.3} parent=5 // pred_check_branch
      %199 = sbr.rel (%p196) target = $region12
    $region11: #{_lambda_.3} parent=5 // pred_region
      %s200 = ssub.s32 %s13, 1
      // Predicated region
      $region13: #{_lambda_.3} parent=11 // pred_check
        %p201 = pneg %p60
      $region14: #{_lambda_.3} parent=11 // pred_check_branch
        %203 = sbr.rel (%p201) target = $region16
      $region15: #{_lambda_.3} parent=11 // pred_region
        _
      $region16: #{_lambda_.3} parent=11 // pred_fallthru
        _
      // Predicated region
      $region17: #{_lambda_.3} parent=11 // pred_check
        %p204 = pneg %p81
      $region18: #{_lambda_.3} parent=11 // pred_check_branch
        %206 = sbr.rel (%p204) target = $region20
      $region19: #{_lambda_.3} parent=11 // pred_region
        _
      $region20: #{_lambda_.3} parent=11 // pred_fallthru
        _
      // Predicated region
      $region21: #{_lambda_.3} parent=11 // pred_check
        %p207 = pneg %p102
      $region22: #{_lambda_.3} parent=11 // pred_check_branch
        %209 = sbr.rel (%p207) target = $region24
      $region23: #{_lambda_.3} parent=11 // pred_region
        _
      $region24: #{_lambda_.3} parent=11 // pred_fallthru
        _
      // Predicated region
      $region25: #{_lambda_.3} parent=11 // pred_check
        %p210 = pneg %p123
      $region26: #{_lambda_.3} parent=11 // pred_check_branch
        %212 = sbr.rel (%p210) target = $region28
      $region27: #{_lambda_.3} parent=11 // pred_region
        _
      $region28: #{_lambda_.3} parent=11 // pred_fallthru
        _
      // Predicated region
      $region29: #{_lambda_.3} parent=11 // pred_check
        %p213 = pneg %p144
      $region30: #{_lambda_.3} parent=11 // pred_check_branch
        %215 = sbr.rel (%p213) target = $region32
      $region31: #{_lambda_.3} parent=11 // pred_region
        _
      $region32: #{_lambda_.3} parent=11 // pred_fallthru
        _
      // Predicated region
      $region33: #{_lambda_.3} parent=11 // pred_check
        %p216 = pneg %p165
      $region34: #{_lambda_.3} parent=11 // pred_check_branch
        %218 = sbr.rel (%p216) target = $region36
      $region35: #{_lambda_.3} parent=11 // pred_region
        _
      $region36: #{_lambda_.3} parent=11 // pred_fallthru
        _
    $region12: #{_lambda_.3} parent=5 // pred_fallthru
      _
    %p219 = scmp.lt.s32.totalorder %s13, 2
    // Predicated region
    $region37: #{_lambda_.3} parent=5 // pred_check
      %p220 = pneg %p219
    $region38: #{_lambda_.3} parent=5 // pred_check_branch
      %222 = sbr.rel (%p220) target = $region40
    $region39: #{_lambda_.3} parent=5 // pred_region
      // Predicated region
      $region41: #{_lambda_.3} parent=39 // pred_check
        %p223 = pneg %p33
      $region42: #{_lambda_.3} parent=39 // pred_check_branch
        %225 = sbr.rel (%p223) target = $region44
      $region43: #{_lambda_.3} parent=39 // pred_region
        %s226 = smul.u32 4, %s13
        %p227 = scmp.lt.s32.totalorder %s226, 7
        %s228 = scalar_select %p227, %s226, 7
        %s229 = smul.addr %s228, 8
        %s230 = scalar_lea.vmem %s0, %s229
        %s231 = smul.u32 4, %s13
      $region44: #{_lambda_.3} parent=39 // pred_fallthru
        _
    $region40: #{_lambda_.3} parent=5 // pred_fallthru
      _
    %p232 = scmp.le.s32.totalorder 1, %s13
    %p233 = scmp.lt.s32.totalorder %s13, 3
    %p234 = pnand %p232, %p233
    %p235 = pneg %p234
    // Predicated region
    $region45: #{_lambda_.3} parent=5 // pred_check
      _
    $region46: #{_lambda_.3} parent=5 // pred_check_branch
      %237 = sbr.rel (%p234) target = $region48
    $region47: #{_lambda_.3} parent=5 // pred_region
      %s238 = ssub.s32 %s13, 1
      %s239 = smul.u32 4, %s18
      %p240 = scmp.lt.s32.totalorder %s239, 7
      %s241 = scalar_select %p240, %s239, 7
      %s242 = smul.addr %s241, 8
      %s243 = scalar_lea.vmem %s0, %s242
      %p244 = pneg %p39
      %p245 = pneg %p36
      %p246 = pneg %p60
      %p247 = pneg %p57
      %p248 = pneg %p81
      %p249 = pneg %p78
      %p250 = pneg %p102
      %p251 = pneg %p99
      %p252 = pneg %p123
      %p253 = pneg %p120
      %p254 = pneg %p144
      %p255 = pneg %p141
      %p256 = pneg %p165
      %p257 = pneg %p162
      %p258 = pneg %p186
      %p259 = pneg %p183
      %s260 = smul.u32 4, %s18
      %p261 = scmp.lt.s32.totalorder %s260, 7
      %s262 = scalar_select %p261, %s260, 7
      %s263 = smul.addr %s262, 8
      %s264 = scalar_lea.vmem %s0, %s263
      %s265 = smul.u32 4, %s18
      %p266 = scmp.eq.s32.totalorder %s18, 0
      // Predicated region
      $region49: #{_lambda_.3} parent=47 // pred_check
        %p267 = pneg %p266
      $region50: #{_lambda_.3} parent=47 // pred_check_branch
        %269 = sbr.rel (%p267) target = $region52
      $region51: #{_lambda_.3} parent=47 // pred_region
        %270 = vst [vmem:[#allocation2] sm:$0xff] 0.0
      $region52: #{_lambda_.3} parent=47 // pred_fallthru
        _
      %v271 = vld [vmem:[%s264] sm:$0xff]
      %v272 = vld [vmem:[%s264 + $0x8] sm:$0xff]
      %v273 = vld [vmem:[%s264 + $0x10] sm:$0xff]
      %v274 = vld [vmem:[%s264 + $0x18] sm:$0xff]
      %v275 = vld [vmem:[%s1] sm:$0xff]
      %v276 = vld [vmem:[%s1 + $0x8] sm:$0xff]
      %v277 = vld [vmem:[%s1 + $0x10] sm:$0xff]
      %v278 = vld [vmem:[%s1 + $0x18] sm:$0xff]
      %v279 = vld [vmem:[%s1 + $0x20] sm:$0xff]
      %v280 = vld [vmem:[%s1 + $0x28] sm:$0xff]
      %v281 = vld [vmem:[%s1 + $0x30] sm:$0xff]
      %v282 = vld [vmem:[%s1 + $0x38] sm:$0xff]
      %v283 = vld [vmem:[%s1 + $0x40] sm:$0xff]
      %v284 = vld [vmem:[%s1 + $0x48] sm:$0xff]
      %v285 = vld [vmem:[%s1 + $0x50] sm:$0xff]
      %v286 = vld [vmem:[%s1 + $0x58] sm:$0xff]
      %v287 = vld [vmem:[%s1 + $0x60] sm:$0xff]
      %v288 = vld [vmem:[%s1 + $0x68] sm:$0xff]
      %v289 = vld [vmem:[%s1 + $0x70] sm:$0xff]
      %v290 = vld [vmem:[%s1 + $0x78] sm:$0xff]
      %v291 = vld [vmem:[%s1 + $0x80] sm:$0xff]
      %v292 = vld [vmem:[%s1 + $0x88] sm:$0xff]
      %v293 = vld [vmem:[%s1 + $0x90] sm:$0xff]
      %v294 = vld [vmem:[%s1 + $0x98] sm:$0xff]
      %v295 = vld [vmem:[%s1 + $0xa0] sm:$0xff]
      %v296 = vld [vmem:[%s1 + $0xa8] sm:$0xff]
      %v297 = vld [vmem:[%s1 + $0xb0] sm:$0xff]
      %v298 = vld [vmem:[%s1 + $0xb8] sm:$0xff]
      %v299 = vld [vmem:[%s1 + $0xc0] sm:$0xff]
      %v300 = vld [vmem:[%s1 + $0xc8] sm:$0xff]
      %v301 = vld [vmem:[%s1 + $0xd0] sm:$0xff]
      %v302 = vld [vmem:[%s1 + $0xd8] sm:$0xff]
      %v303 = vld [vmem:[%s1 + $0xe0] sm:$0xff]
      %v304 = vld [vmem:[%s1 + $0xe8] sm:$0xff]
      %v305 = vld [vmem:[%s1 + $0xf0] sm:$0xff]
      %v306 = vld [vmem:[%s1 + $0xf8] sm:$0xff]
      %v307 = vld [vmem:[%s1 + $0x100] sm:$0xff]
      %v308 = vld [vmem:[%s1 + $0x108] sm:$0xff]
      %v309 = vld [vmem:[%s1 + $0x110] sm:$0xff]
      %v310 = vld [vmem:[%s1 + $0x118] sm:$0xff]
      %v311 = vld [vmem:[%s1 + $0x120] sm:$0xff]
      %v312 = vld [vmem:[%s1 + $0x128] sm:$0xff]
      %v313 = vld [vmem:[%s1 + $0x130] sm:$0xff]
      %v314 = vld [vmem:[%s1 + $0x138] sm:$0xff]
      %v315 = vld [vmem:[%s1 + $0x140] sm:$0xff]
      %v316 = vld [vmem:[%s1 + $0x148] sm:$0xff]
      %v317 = vld [vmem:[%s1 + $0x150] sm:$0xff]
      %v318 = vld [vmem:[%s1 + $0x158] sm:$0xff]
      %v319 = vld [vmem:[%s1 + $0x160] sm:$0xff]
      %v320 = vld [vmem:[%s1 + $0x168] sm:$0xff]
      %v321 = vld [vmem:[%s1 + $0x170] sm:$0xff]
      %v322 = vld [vmem:[%s1 + $0x178] sm:$0xff]
      %v323 = vld [vmem:[%s3] sm:$0x7]
      %v325 = vlaneseq
      %v326 = vshrl.u32 %v325, 7
      %v327 = vsub.s32 0, %v326
      %v328 = vrot.slane %v323, %v327
      %v329 = vlaneseq
      %v330 = vshrl.u32 %v329, 7
      %v331 = vsub.s32 1, %v330
      %v332 = vrot.slane %v323, %v331
      %v333 = vlaneseq
      %v334 = vshrl.u32 %v333, 7
      %v335 = vsub.s32 2, %v334
      %v336 = vrot.slane %v323, %v335
      %340 = vmatprep.subr.mxu0 %v276
      %341 = vmatpush1.msra.mxu0 %v275
      %342 = vmatprep.subr.mxu0 %v279
      %343 = vmatpush1.msra.mxu0 %v278
      %344 = vmatprep.subr.mxu0 %v282
      %345 = vmatpush1.msra.mxu0 %v281
      %346 = vmatprep.subr.mxu0 %v285
      %347 = vmatpush1.msra.mxu0 %v284
      %348 = vmatprep.subr.mxu0 %v288
      %349 = vmatpush1.msra.mxu0 %v287
      %350 = vmatprep.subr.mxu0 %v291
      %351 = vmatpush1.msra.mxu0 %v290
      %352 = vmatprep.subr.mxu0 %v294
      %353 = vmatpush1.msra.mxu0 %v293
      %354 = vmatprep.subr.mxu0 %v297
      %355 = vmatpush1.msra.mxu0 %v296
      %356 = vmatprep.subr.mxu0 %v300
      %357 = vmatpush1.msra.mxu0 %v299
      %358 = vmatprep.subr.mxu0 %v303
      %359 = vmatpush1.msra.mxu0 %v302
      %360 = vmatprep.subr.mxu0 %v306
      %361 = vmatpush1.msra.mxu0 %v305
      %362 = vmatprep.subr.mxu0 %v309
      %363 = vmatpush1.msra.mxu0 %v308
      %364 = vmatprep.subr.mxu0 %v312
      %365 = vmatpush1.msra.mxu0 %v311
      %366 = vmatprep.subr.mxu0 %v315
      %367 = vmatpush1.msra.mxu0 %v314
      %368 = vmatprep.subr.mxu0 %v318
      %369 = vmatpush1.msra.mxu0 %v317
      %370 = vmatprep.subr.mxu0 %v321
      %371 = vmatpush1.msra.mxu0 %v320
      %372 = vmatprep.subr.mxu0 0.0
      %373 = vmatpush1.msra.mxu0 0.0
      %374 = vmatprep.subr.mxu0 0.0
      %375 = vmatpush1.msra.mxu0 0.0
      %376 = vmatprep.subr.mxu0 0.0
      %377 = vmatpush1.msra.mxu0 0.0
      %378 = vmatprep.subr.mxu0 0.0
      %379 = vmatpush1.msra.mxu0 0.0
      %380 = vmatprep.subr.mxu0 0.0
      %381 = vmatpush1.msra.mxu0 0.0
      %382 = vmatprep.subr.mxu0 0.0
      %383 = vmatpush1.msra.mxu0 0.0
      %384 = vmatprep.subr.mxu0 0.0
      %385 = vmatpush1.msra.mxu0 0.0
      %386 = vmatprep.subr.mxu0 0.0
      %387 = vmatpush1.msra.mxu0 0.0
      %388 = vmatprep.subr.mxu0 0.0
      %389 = vmatpush1.msra.mxu0 0.0
      %390 = vmatprep.subr.mxu0 0.0
      %391 = vmatpush1.msra.mxu0 0.0
      %392 = vmatprep.subr.mxu0 0.0
      %393 = vmatpush1.msra.mxu0 0.0
      %394 = vmatprep.subr.mxu0 0.0
      %395 = vmatpush1.msra.mxu0 0.0
      %396 = vmatprep.subr.mxu0 0.0
      %397 = vmatpush1.msra.mxu0 0.0
      %398 = vmatprep.subr.mxu0 0.0
      %399 = vmatpush1.msra.mxu0 0.0
      %400 = vmatprep.subr.mxu0 0.0
      %401 = vmatpush1.msra.mxu0 0.0
      %402 = vmatprep.subr.mxu0 0.0
      %403 = vmatpush1.msra.mxu0 0.0
      %404 = vmatprep.mubr.f32.mxu0 0.0
      %405 = vmatmul.mubr.f32.gmra.mrb[0].mxu0 %v271
      %v406 = vpop.f32.mrb[0].mxu0
      %v407 = vadd.f32 %v328, %v406
      %v408 = vpop.f32.mrb[0].mxu0
      %v409 = vadd.f32 %v332, %v408
      %410 = vmatprep.mubr.f32.mxu0 0.0
      %411 = vmatmul.mubr.f32.gmra.mrb[0].mxu0 %v272
      %v412 = vpop.f32.mrb[0].mxu0
      %v413 = vadd.f32 %v328, %v412
      %v414 = vpop.f32.mrb[0].mxu0
      %v415 = vadd.f32 %v332, %v414
      %416 = vmatprep.mubr.f32.mxu0 0.0
      %417 = vmatmul.mubr.f32.gmra.mrb[0].mxu0 %v273
      %v418 = vpop.f32.mrb[0].mxu0
      %v419 = vadd.f32 %v328, %v418
      %v420 = vpop.f32.mrb[0].mxu0
      %v421 = vadd.f32 %v332, %v420
      %422 = vmatprep.mubr.f32.mxu0 0.0
      %423 = vmatmul.mubr.f32.gmra.mrb[0].mxu0 %v274
      %v424 = vpop.f32.mrb[0].mxu0
      %v425 = vadd.f32 %v328, %v424
      %v426 = vpop.f32.mrb[0].mxu0
      %v427 = vadd.f32 %v332, %v426
      %428 = vdwg.mxu0
      %429 = vmatprep.subr.mxu0 0.0
      %430 = vmatpush1.msra.mxu0 %v277
      %431 = vmatprep.subr.mxu0 0.0
      %432 = vmatpush1.msra.mxu0 %v280
      %433 = vmatprep.subr.mxu0 0.0
      %434 = vmatpush1.msra.mxu0 %v283
      %435 = vmatprep.subr.mxu0 0.0
      %436 = vmatpush1.msra.mxu0 %v286
      %437 = vmatprep.subr.mxu0 0.0
      %438 = vmatpush1.msra.mxu0 %v289
      %439 = vmatprep.subr.mxu0 0.0
      %440 = vmatpush1.msra.mxu0 %v292
      %441 = vmatprep.subr.mxu0 0.0
      %442 = vmatpush1.msra.mxu0 %v295
      %443 = vmatprep.subr.mxu0 0.0
      %444 = vmatpush1.msra.mxu0 %v298
      %445 = vmatprep.subr.mxu0 0.0
      %446 = vmatpush1.msra.mxu0 %v301
      %447 = vmatprep.subr.mxu0 0.0
      %448 = vmatpush1.msra.mxu0 %v304
      %449 = vmatprep.subr.mxu0 0.0
      %450 = vmatpush1.msra.mxu0 %v307
      %451 = vmatprep.subr.mxu0 0.0
      %452 = vmatpush1.msra.mxu0 %v310
      %453 = vmatprep.subr.mxu0 0.0
      %454 = vmatpush1.msra.mxu0 %v313
      %455 = vmatprep.subr.mxu0 0.0
      %456 = vmatpush1.msra.mxu0 %v316
      %457 = vmatprep.subr.mxu0 0.0
      %458 = vmatpush1.msra.mxu0 %v319
      %459 = vmatprep.subr.mxu0 0.0
      %460 = vmatpush1.msra.mxu0 %v322
      %461 = vmatprep.subr.mxu0 0.0
      %462 = vmatpush1.msra.mxu0 0.0
      %463 = vmatprep.subr.mxu0 0.0
      %464 = vmatpush1.msra.mxu0 0.0
      %465 = vmatprep.subr.mxu0 0.0
      %466 = vmatpush1.msra.mxu0 0.0
      %467 = vmatprep.subr.mxu0 0.0
      %468 = vmatpush1.msra.mxu0 0.0
      %469 = vmatprep.subr.mxu0 0.0
      %470 = vmatpush1.msra.mxu0 0.0
      %471 = vmatprep.subr.mxu0 0.0
      %472 = vmatpush1.msra.mxu0 0.0
      %473 = vmatprep.subr.mxu0 0.0
      %474 = vmatpush1.msra.mxu0 0.0
      %475 = vmatprep.subr.mxu0 0.0
      %476 = vmatpush1.msra.mxu0 0.0
      %477 = vmatprep.subr.mxu0 0.0
      %478 = vmatpush1.msra.mxu0 0.0
      %479 = vmatprep.subr.mxu0 0.0
      %480 = vmatpush1.msra.mxu0 0.0
      %481 = vmatprep.subr.mxu0 0.0
      %482 = vmatpush1.msra.mxu0 0.0
      %483 = vmatprep.subr.mxu0 0.0
      %484 = vmatpush1.msra.mxu0 0.0
      %485 = vmatprep.subr.mxu0 0.0
      %486 = vmatpush1.msra.mxu0 0.0
      %487 = vmatprep.subr.mxu0 0.0
      %488 = vmatpush1.msra.mxu0 0.0
      %489 = vmatprep.subr.mxu0 0.0
      %490 = vmatpush1.msra.mxu0 0.0
      %491 = vmatprep.subr.mxu0 0.0
      %492 = vmatpush1.msra.mxu0 0.0
      %493 = vmatprep.mubr.f32.mxu0 0.0
      %494 = vmatmul.mubr.f32.gmra.mrb[0].mxu0 %v271
      %v495 = vpop.f32.mrb[0].mxu0
      %v496 = vadd.f32 %v336, %v495
      %v497 = vpop.f32.mrb[0].mxu0
      %498 = vmatprep.mubr.f32.mxu0 0.0
      %499 = vmatmul.mubr.f32.gmra.mrb[0].mxu0 %v272
      %v500 = vpop.f32.mrb[0].mxu0
      %v501 = vadd.f32 %v336, %v500
      %v502 = vpop.f32.mrb[0].mxu0
      %503 = vmatprep.mubr.f32.mxu0 0.0
      %504 = vmatmul.mubr.f32.gmra.mrb[0].mxu0 %v273
      %v505 = vpop.f32.mrb[0].mxu0
      %v506 = vadd.f32 %v336, %v505
      %v507 = vpop.f32.mrb[0].mxu0
      %508 = vmatprep.mubr.f32.mxu0 0.0
      %509 = vmatmul.mubr.f32.gmra.mrb[0].mxu0 %v274
      %v510 = vpop.f32.mrb[0].mxu0
      %v511 = vadd.f32 %v336, %v510
      %v512 = vpop.f32.mrb[0].mxu0
      %513 = vdwg.mxu0
      %514 = vst [vmem:[#allocation3] sm:$0xff] %v407
      %515 = vst [vmem:[#allocation3 + $0x8] sm:$0xff] %v409
      %516 = vst [vmem:[#allocation3 + $0x10] sm:$0xff] %v496
      %517 = vst [vmem:[#allocation3 + $0x18] sm:$0xff] %v413
      %518 = vst [vmem:[#allocation3 + $0x20] sm:$0xff] %v415
      %519 = vst [vmem:[#allocation3 + $0x28] sm:$0xff] %v501
      %520 = vst [vmem:[#allocation3 + $0x30] sm:$0xff] %v419
      %521 = vst [vmem:[#allocation3 + $0x38] sm:$0xff] %v421
      %522 = vst [vmem:[#allocation3 + $0x40] sm:$0xff] %v506
      %523 = vst [vmem:[#allocation3 + $0x48] sm:$0xff] %v425
      %524 = vst [vmem:[#allocation3 + $0x50] sm:$0xff] %v427
      %525 = vst [vmem:[#allocation3 + $0x58] sm:$0xff] %v511
      %v526 = vld [vmem:[#allocation2] sm:$0xff]
      %v527 = vld [vmem:[%s2] sm:$0xff]
      %v528 = vld [vmem:[%s2 + $0x8] sm:$0xff]
      %v529 = vld [vmem:[%s2 + $0x10] sm:$0xff]
      %v530 = vld [vmem:[%s2 + $0x18] sm:$0xff]
      %v531 = vld [vmem:[%s2 + $0x20] sm:$0xff]
      %v532 = vld [vmem:[%s2 + $0x28] sm:$0xff]
      %v533 = vld [vmem:[%s2 + $0x30] sm:$0xff]
      %v534 = vld [vmem:[%s2 + $0x38] sm:$0xff]
      %v535 = vld [vmem:[%s2 + $0x40] sm:$0xff]
      %v536 = vld [vmem:[%s2 + $0x48] sm:$0xff]
      %v537 = vld [vmem:[%s2 + $0x50] sm:$0xff]
      %v538 = vld [vmem:[%s2 + $0x58] sm:$0xff]
      %v539 = vld [vmem:[%s2 + $0x60] sm:$0xff]
      %v540 = vld [vmem:[%s2 + $0x68] sm:$0xff]
      %v541 = vld [vmem:[%s2 + $0x70] sm:$0xff]
      %v542 = vld [vmem:[%s2 + $0x78] sm:$0xff]
      %v543 = vld [vmem:[%s2 + $0x80] sm:$0xff]
      %v544 = vld [vmem:[%s2 + $0x88] sm:$0xff]
      %v545 = vld [vmem:[%s2 + $0x90] sm:$0xff]
      %v546 = vld [vmem:[%s2 + $0x98] sm:$0xff]
      %v547 = vld [vmem:[%s2 + $0xa0] sm:$0xff]
      %v548 = vld [vmem:[%s2 + $0xa8] sm:$0xff]
      %v549 = vld [vmem:[%s2 + $0xb0] sm:$0xff]
      %v550 = vld [vmem:[%s2 + $0xb8] sm:$0xff]
      %v551 = vld [vmem:[%s2 + $0xc0] sm:$0xff]
      %v552 = vld [vmem:[%s2 + $0xc8] sm:$0xff]
      %v553 = vld [vmem:[%s2 + $0xd0] sm:$0xff]
      %v554 = vld [vmem:[%s2 + $0xd8] sm:$0xff]
      %v555 = vld [vmem:[%s2 + $0xe0] sm:$0xff]
      %v556 = vld [vmem:[%s2 + $0xe8] sm:$0xff]
      %v557 = vld [vmem:[%s2 + $0xf0] sm:$0xff]
      %v558 = vld [vmem:[%s2 + $0xf8] sm:$0xff]
      %v559 = vld [vmem:[%s2 + $0x100] sm:$0xff]
      %v560 = vld [vmem:[%s2 + $0x108] sm:$0xff]
      %v561 = vld [vmem:[%s2 + $0x110] sm:$0xff]
      %v562 = vld [vmem:[%s2 + $0x118] sm:$0xff]
      %v563 = vld [vmem:[%s2 + $0x120] sm:$0xff]
      %v564 = vld [vmem:[%s2 + $0x128] sm:$0xff]
      %v565 = vld [vmem:[%s2 + $0x130] sm:$0xff]
      %v566 = vld [vmem:[%s2 + $0x138] sm:$0xff]
      %v567 = vld [vmem:[%s2 + $0x140] sm:$0xff]
      %v568 = vld [vmem:[%s2 + $0x148] sm:$0xff]
      %v569 = vld [vmem:[%s2 + $0x150] sm:$0xff]
      %v570 = vld [vmem:[%s2 + $0x158] sm:$0xff]
      %v571 = vld [vmem:[%s2 + $0x160] sm:$0xff]
      %v572 = vld [vmem:[%s2 + $0x168] sm:$0xff]
      %v573 = vld [vmem:[%s2 + $0x170] sm:$0xff]
      %v574 = vld [vmem:[%s2 + $0x178] sm:$0xff]
      %575 = vmatprep.subr.mxu0 %v528
      %576 = vmatpush1.msra.mxu0 %v527
      %577 = vmatprep.subr.mxu0 %v531
      %578 = vmatpush1.msra.mxu0 %v530
      %579 = vmatprep.subr.mxu0 %v534
      %580 = vmatpush1.msra.mxu0 %v533
      %581 = vmatprep.subr.mxu0 %v537
      %582 = vmatpush1.msra.mxu0 %v536
      %583 = vmatprep.subr.mxu0 %v540
      %584 = vmatpush1.msra.mxu0 %v539
      %585 = vmatprep.subr.mxu0 %v543
      %586 = vmatpush1.msra.mxu0 %v542
      %587 = vmatprep.subr.mxu0 %v546
      %588 = vmatpush1.msra.mxu0 %v545
      %589 = vmatprep.subr.mxu0 %v549
      %590 = vmatpush1.msra.mxu0 %v548
      %591 = vmatprep.subr.mxu0 %v552
      %592 = vmatpush1.msra.mxu0 %v551
      %593 = vmatprep.subr.mxu0 %v555
      %594 = vmatpush1.msra.mxu0 %v554
      %595 = vmatprep.subr.mxu0 %v558
      %596 = vmatpush1.msra.mxu0 %v557
      %597 = vmatprep.subr.mxu0 %v561
      %598 = vmatpush1.msra.mxu0 %v560
      %599 = vmatprep.subr.mxu0 %v564
      %600 = vmatpush1.msra.mxu0 %v563
      %601 = vmatprep.subr.mxu0 %v567
      %602 = vmatpush1.msra.mxu0 %v566
      %603 = vmatprep.subr.mxu0 %v570
      %604 = vmatpush1.msra.mxu0 %v569
      %605 = vmatprep.subr.mxu0 %v573
      %606 = vmatpush1.msra.mxu0 %v572
      %607 = vmatprep.subr.mxu0 0.0
      %608 = vmatpush1.msra.mxu0 0.0
      %609 = vmatprep.subr.mxu0 0.0
      %610 = vmatpush1.msra.mxu0 0.0
      %611 = vmatprep.subr.mxu0 0.0
      %612 = vmatpush1.msra.mxu0 0.0
      %613 = vmatprep.subr.mxu0 0.0
      %614 = vmatpush1.msra.mxu0 0.0
      %615 = vmatprep.subr.mxu0 0.0
      %616 = vmatpush1.msra.mxu0 0.0
      %617 = vmatprep.subr.mxu0 0.0
      %618 = vmatpush1.msra.mxu0 0.0
      %619 = vmatprep.subr.mxu0 0.0
      %620 = vmatpush1.msra.mxu0 0.0
      %621 = vmatprep.subr.mxu0 0.0
      %622 = vmatpush1.msra.mxu0 0.0
      %623 = vmatprep.subr.mxu0 0.0
      %624 = vmatpush1.msra.mxu0 0.0
      %625 = vmatprep.subr.mxu0 0.0
      %626 = vmatpush1.msra.mxu0 0.0
      %627 = vmatprep.subr.mxu0 0.0
      %628 = vmatpush1.msra.mxu0 0.0
      %629 = vmatprep.subr.mxu0 0.0
      %630 = vmatpush1.msra.mxu0 0.0
      %631 = vmatprep.subr.mxu0 0.0
      %632 = vmatpush1.msra.mxu0 0.0
      %633 = vmatprep.subr.mxu0 0.0
      %634 = vmatpush1.msra.mxu0 0.0
      %635 = vmatprep.subr.mxu0 0.0
      %636 = vmatpush1.msra.mxu0 0.0
      %637 = vmatprep.subr.mxu0 0.0
      %638 = vmatpush1.msra.mxu0 0.0
      %639 = vmatprep.mubr.f32.mxu0 0.0
      %640 = vmatmul.mubr.f32.gmra.mrb[0].mxu0 %v526
      %v641 = vpop.f32.mrb[0].mxu0
      %v642 = vadd.f32 0.0, %v641
      %v643 = vpop.f32.mrb[0].mxu0
      %v644 = vadd.f32 0.0, %v643
      %645 = vdwg.mxu0
      %646 = vmatprep.subr.mxu0 0.0
      %647 = vmatpush1.msra.mxu0 %v529
      %648 = vmatprep.subr.mxu0 0.0
      %649 = vmatpush1.msra.mxu0 %v532
      %650 = vmatprep.subr.mxu0 0.0
      %651 = vmatpush1.msra.mxu0 %v535
      %652 = vmatprep.subr.mxu0 0.0
      %653 = vmatpush1.msra.mxu0 %v538
      %654 = vmatprep.subr.mxu0 0.0
      %655 = vmatpush1.msra.mxu0 %v541
      %656 = vmatprep.subr.mxu0 0.0
      %657 = vmatpush1.msra.mxu0 %v544
      %658 = vmatprep.subr.mxu0 0.0
      %659 = vmatpush1.msra.mxu0 %v547
      %660 = vmatprep.subr.mxu0 0.0
      %661 = vmatpush1.msra.mxu0 %v550
      %662 = vmatprep.subr.mxu0 0.0
      %663 = vmatpush1.msra.mxu0 %v553
      %664 = vmatprep.subr.mxu0 0.0
      %665 = vmatpush1.msra.mxu0 %v556
      %666 = vmatprep.subr.mxu0 0.0
      %667 = vmatpush1.msra.mxu0 %v559
      %668 = vmatprep.subr.mxu0 0.0
      %669 = vmatpush1.msra.mxu0 %v562
      %670 = vmatprep.subr.mxu0 0.0
      %671 = vmatpush1.msra.mxu0 %v565
      %672 = vmatprep.subr.mxu0 0.0
      %673 = vmatpush1.msra.mxu0 %v568
      %674 = vmatprep.subr.mxu0 0.0
      %675 = vmatpush1.msra.mxu0 %v571
      %676 = vmatprep.subr.mxu0 0.0
      %677 = vmatpush1.msra.mxu0 %v574
      %678 = vmatprep.subr.mxu0 0.0
      %679 = vmatpush1.msra.mxu0 0.0
      %680 = vmatprep.subr.mxu0 0.0
      %681 = vmatpush1.msra.mxu0 0.0
      %682 = vmatprep.subr.mxu0 0.0
      %683 = vmatpush1.msra.mxu0 0.0
      %684 = vmatprep.subr.mxu0 0.0
      %685 = vmatpush1.msra.mxu0 0.0
      %686 = vmatprep.subr.mxu0 0.0
      %687 = vmatpush1.msra.mxu0 0.0
      %688 = vmatprep.subr.mxu0 0.0
      %689 = vmatpush1.msra.mxu0 0.0
      %690 = vmatprep.subr.mxu0 0.0
      %691 = vmatpush1.msra.mxu0 0.0
      %692 = vmatprep.subr.mxu0 0.0
      %693 = vmatpush1.msra.mxu0 0.0
      %694 = vmatprep.subr.mxu0 0.0
      %695 = vmatpush1.msra.mxu0 0.0
      %696 = vmatprep.subr.mxu0 0.0
      %697 = vmatpush1.msra.mxu0 0.0
      %698 = vmatprep.subr.mxu0 0.0
      %699 = vmatpush1.msra.mxu0 0.0
      %700 = vmatprep.subr.mxu0 0.0
      %701 = vmatpush1.msra.mxu0 0.0
      %702 = vmatprep.subr.mxu0 0.0
      %703 = vmatpush1.msra.mxu0 0.0
      %704 = vmatprep.subr.mxu0 0.0
      %705 = vmatpush1.msra.mxu0 0.0
      %706 = vmatprep.subr.mxu0 0.0
      %707 = vmatpush1.msra.mxu0 0.0
      %708 = vmatprep.subr.mxu0 0.0
      %709 = vmatpush1.msra.mxu0 0.0
      %710 = vmatprep.mubr.f32.mxu0 0.0
      %711 = vmatmul.mubr.f32.gmra.mrb[0].mxu0 %v526
      %v712 = vpop.f32.mrb[0].mxu0
      %v713 = vadd.f32 0.0, %v712
      %v714 = vpop.f32.mrb[0].mxu0
      %715 = vdwg.mxu0
      %v716 = vld [vmem:[#allocation3] sm:$0xff]
      %v717 = vld [vmem:[#allocation3 + $0x8] sm:$0xff]
      %v718 = vld [vmem:[#allocation3 + $0x10] sm:$0xff]
      %v719 = vadd.f32 %v716, %v642
      %v720 = vxor.u32 %v719, 2147483648
      %v721 = vmul.f32 %v720, 1.442695
      %v722 = vpow.pop %v721
      %v723 = vadd.f32 %v722, 1.0
      %v724 = vrcp.pop %v723
      %v725 = vmul.f32 1.0, %v724
      %v726 = vadd.f32 %v717, %v644
      %v727 = vxor.u32 %v726, 2147483648
      %v728 = vmul.f32 %v727, 1.442695
      %v729 = vpow.pop %v728
      %v730 = vadd.f32 %v729, 1.0
      %v731 = vrcp.pop %v730
      %v732 = vmul.f32 1.0, %v731
      %v733 = vld [vmem:[%s4] sm:$0x1]
      %v735 = vlaneseq
      %v736 = vshrl.u32 %v735, 7
      %v737 = vsub.s32 0, %v736
      %v738 = vrot.slane %v733, %v737
      %v740 = vadd.f32 %v713, %v738
      %v741 = vmul.f32 %v725, %v740
      %v742 = vadd.f32 %v718, %v741
      %v743 = vtanh.pop %v742
      %v744 = vsub.f32 1.0, %v732
      %v745 = vmul.f32 %v744, %v743
      %v746 = vmul.f32 %v732, %v526
      %v747 = vadd.f32 %v745, %v746
      %748 = vst [vmem:[#allocation2] sm:$0xff] %v747
      %v749 = vld [vmem:[#allocation2] sm:$0xff]
      %v750 = vld [vmem:[%s2] sm:$0xff]
      %v751 = vld [vmem:[%s2 + $0x8] sm:$0xff]
      %v752 = vld [vmem:[%s2 + $0x10] sm:$0xff]
      %v753 = vld [vmem:[%s2 + $0x18] sm:$0xff]
      %v754 = vld [vmem:[%s2 + $0x20] sm:$0xff]
      %v755 = vld [vmem:[%s2 + $0x28] sm:$0xff]
      %v756 = vld [vmem:[%s2 + $0x30] sm:$0xff]
      %v757 = vld [vmem:[%s2 + $0x38] sm:$0xff]
      %v758 = vld [vmem:[%s2 + $0x40] sm:$0xff]
      %v759 = vld [vmem:[%s2 + $0x48] sm:$0xff]
      %v760 = vld [vmem:[%s2 + $0x50] sm:$0xff]
      %v761 = vld [vmem:[%s2 + $0x58] sm:$0xff]
      %v762 = vld [vmem:[%s2 + $0x60] sm:$0xff]
      %v763 = vld [vmem:[%s2 + $0x68] sm:$0xff]
      %v764 = vld [vmem:[%s2 + $0x70] sm:$0xff]
      %v765 = vld [vmem:[%s2 + $0x78] sm:$0xff]
      %v766 = vld [vmem:[%s2 + $0x80] sm:$0xff]
      %v767 = vld [vmem:[%s2 + $0x88] sm:$0xff]
      %v768 = vld [vmem:[%s2 + $0x90] sm:$0xff]
      %v769 = vld [vmem:[%s2 + $0x98] sm:$0xff]
      %v770 = vld [vmem:[%s2 + $0xa0] sm:$0xff]
      %v771 = vld [vmem:[%s2 + $0xa8] sm:$0xff]
      %v772 = vld [vmem:[%s2 + $0xb0] sm:$0xff]
      %v773 = vld [vmem:[%s2 + $0xb8] sm:$0xff]
      %v774 = vld [vmem:[%s2 + $0xc0] sm:$0xff]
      %v775 = vld [vmem:[%s2 + $0xc8] sm:$0xff]
      %v776 = vld [vmem:[%s2 + $0xd0] sm:$0xff]
      %v777 = vld [vmem:[%s2 + $0xd8] sm:$0xff]
      %v778 = vld [vmem:[%s2 + $0xe0] sm:$0xff]
      %v779 = vld [vmem:[%s2 + $0xe8] sm:$0xff]
      %v780 = vld [vmem:[%s2 + $0xf0] sm:$0xff]
      %v781 = vld [vmem:[%s2 + $0xf8] sm:$0xff]
      %v782 = vld [vmem:[%s2 + $0x100] sm:$0xff]
      %v783 = vld [vmem:[%s2 + $0x108] sm:$0xff]
      %v784 = vld [vmem:[%s2 + $0x110] sm:$0xff]
      %v785 = vld [vmem:[%s2 + $0x118] sm:$0xff]
      %v786 = vld [vmem:[%s2 + $0x120] sm:$0xff]
      %v787 = vld [vmem:[%s2 + $0x128] sm:$0xff]
      %v788 = vld [vmem:[%s2 + $0x130] sm:$0xff]
      %v789 = vld [vmem:[%s2 + $0x138] sm:$0xff]
      %v790 = vld [vmem:[%s2 + $0x140] sm:$0xff]
      %v791 = vld [vmem:[%s2 + $0x148] sm:$0xff]
      %v792 = vld [vmem:[%s2 + $0x150] sm:$0xff]
      %v793 = vld [vmem:[%s2 + $0x158] sm:$0xff]
      %v794 = vld [vmem:[%s2 + $0x160] sm:$0xff]
      %v795 = vld [vmem:[%s2 + $0x168] sm:$0xff]
      %v796 = vld [vmem:[%s2 + $0x170] sm:$0xff]
      %v797 = vld [vmem:[%s2 + $0x178] sm:$0xff]
      %798 = vmatprep.subr.mxu0 %v751
      %799 = vmatpush1.msra.mxu0 %v750
      %800 = vmatprep.subr.mxu0 %v754
      %801 = vmatpush1.msra.mxu0 %v753
      %802 = vmatprep.subr.mxu0 %v757
      %803 = vmatpush1.msra.mxu0 %v756
      %804 = vmatprep.subr.mxu0 %v760
      %805 = vmatpush1.msra.mxu0 %v759
      %806 = vmatprep.subr.mxu0 %v763
      %807 = vmatpush1.msra.mxu0 %v762
      %808 = vmatprep.subr.mxu0 %v766
      %809 = vmatpush1.msra.mxu0 %v765
      %810 = vmatprep.subr.mxu0 %v769
      %811 = vmatpush1.msra.mxu0 %v768
      %812 = vmatprep.subr.mxu0 %v772
      %813 = vmatpush1.msra.mxu0 %v771
      %814 = vmatprep.subr.mxu0 %v775
      %815 = vmatpush1.msra.mxu0 %v774
      %816 = vmatprep.subr.mxu0 %v778
      %817 = vmatpush1.msra.mxu0 %v777
      %818 = vmatprep.subr.mxu0 %v781
      %819 = vmatpush1.msra.mxu0 %v780
      %820 = vmatprep.subr.mxu0 %v784
      %821 = vmatpush1.msra.mxu0 %v783
      %822 = vmatprep.subr.mxu0 %v787
      %823 = vmatpush1.msra.mxu0 %v786
      %824 = vmatprep.subr.mxu0 %v790
      %825 = vmatpush1.msra.mxu0 %v789
      %826 = vmatprep.subr.mxu0 %v793
      %827 = vmatpush1.msra.mxu0 %v792
      %828 = vmatprep.subr.mxu0 %v796
      %829 = vmatpush1.msra.mxu0 %v795
      %830 = vmatprep.subr.mxu0 0.0
      %831 = vmatpush1.msra.mxu0 0.0
      %832 = vmatprep.subr.mxu0 0.0
      %833 = vmatpush1.msra.mxu0 0.0
      %834 = vmatprep.subr.mxu0 0.0
      %835 = vmatpush1.msra.mxu0 0.0
      %836 = vmatprep.subr.mxu0 0.0
      %837 = vmatpush1.msra.mxu0 0.0
      %838 = vmatprep.subr.mxu0 0.0
      %839 = vmatpush1.msra.mxu0 0.0
      %840 = vmatprep.subr.mxu0 0.0
      %841 = vmatpush1.msra.mxu0 0.0
      %842 = vmatprep.subr.mxu0 0.0
      %843 = vmatpush1.msra.mxu0 0.0
      %844 = vmatprep.subr.mxu0 0.0
      %845 = vmatpush1.msra.mxu0 0.0
      %846 = vmatprep.subr.mxu0 0.0
      %847 = vmatpush1.msra.mxu0 0.0
      %848 = vmatprep.subr.mxu0 0.0
      %849 = vmatpush1.msra.mxu0 0.0
      %850 = vmatprep.subr.mxu0 0.0
      %851 = vmatpush1.msra.mxu0 0.0
      %852 = vmatprep.subr.mxu0 0.0
      %853 = vmatpush1.msra.mxu0 0.0
      %854 = vmatprep.subr.mxu0 0.0
      %855 = vmatpush1.msra.mxu0 0.0
      %856 = vmatprep.subr.mxu0 0.0
      %857 = vmatpush1.msra.mxu0 0.0
      %858 = vmatprep.subr.mxu0 0.0
      %859 = vmatpush1.msra.mxu0 0.0
      %860 = vmatprep.subr.mxu0 0.0
      %861 = vmatpush1.msra.mxu0 0.0
      %862 = vmatprep.mubr.f32.mxu0 0.0
      %863 = vmatmul.mubr.f32.gmra.mrb[0].mxu0 %v749
      %v864 = vpop.f32.mrb[0].mxu0
      %v865 = vadd.f32 0.0, %v864
      %v866 = vpop.f32.mrb[0].mxu0
      %v867 = vadd.f32 0.0, %v866
      %868 = vdwg.mxu0
      %869 = vmatprep.subr.mxu0 0.0
      %870 = vmatpush1.msra.mxu0 %v752
      %871 = vmatprep.subr.mxu0 0.0
      %872 = vmatpush1.msra.mxu0 %v755
      %873 = vmatprep.subr.mxu0 0.0
      %874 = vmatpush1.msra.mxu0 %v758
      %875 = vmatprep.subr.mxu0 0.0
      %876 = vmatpush1.msra.mxu0 %v761
      %877 = vmatprep.subr.mxu0 0.0
      %878 = vmatpush1.msra.mxu0 %v764
      %879 = vmatprep.subr.mxu0 0.0
      %880 = vmatpush1.msra.mxu0 %v767
      %881 = vmatprep.subr.mxu0 0.0
      %882 = vmatpush1.msra.mxu0 %v770
      %883 = vmatprep.subr.mxu0 0.0
      %884 = vmatpush1.msra.mxu0 %v773
      %885 = vmatprep.subr.mxu0 0.0
      %886 = vmatpush1.msra.mxu0 %v776
      %887 = vmatprep.subr.mxu0 0.0
      %888 = vmatpush1.msra.mxu0 %v779
      %889 = vmatprep.subr.mxu0 0.0
      %890 = vmatpush1.msra.mxu0 %v782
      %891 = vmatprep.subr.mxu0 0.0
      %892 = vmatpush1.msra.mxu0 %v785
      %893 = vmatprep.subr.mxu0 0.0
      %894 = vmatpush1.msra.mxu0 %v788
      %895 = vmatprep.subr.mxu0 0.0
      %896 = vmatpush1.msra.mxu0 %v791
      %897 = vmatprep.subr.mxu0 0.0
      %898 = vmatpush1.msra.mxu0 %v794
      %899 = vmatprep.subr.mxu0 0.0
      %900 = vmatpush1.msra.mxu0 %v797
      %901 = vmatprep.subr.mxu0 0.0
      %902 = vmatpush1.msra.mxu0 0.0
      %903 = vmatprep.subr.mxu0 0.0
      %904 = vmatpush1.msra.mxu0 0.0
      %905 = vmatprep.subr.mxu0 0.0
      %906 = vmatpush1.msra.mxu0 0.0
      %907 = vmatprep.subr.mxu0 0.0
      %908 = vmatpush1.msra.mxu0 0.0
      %909 = vmatprep.subr.mxu0 0.0
      %910 = vmatpush1.msra.mxu0 0.0
      %911 = vmatprep.subr.mxu0 0.0
      %912 = vmatpush1.msra.mxu0 0.0
      %913 = vmatprep.subr.mxu0 0.0
      %914 = vmatpush1.msra.mxu0 0.0
      %915 = vmatprep.subr.mxu0 0.0
      %916 = vmatpush1.msra.mxu0 0.0
      %917 = vmatprep.subr.mxu0 0.0
      %918 = vmatpush1.msra.mxu0 0.0
      %919 = vmatprep.subr.mxu0 0.0
      %920 = vmatpush1.msra.mxu0 0.0
      %921 = vmatprep.subr.mxu0 0.0
      %922 = vmatpush1.msra.mxu0 0.0
      %923 = vmatprep.subr.mxu0 0.0
      %924 = vmatpush1.msra.mxu0 0.0
      %925 = vmatprep.subr.mxu0 0.0
      %926 = vmatpush1.msra.mxu0 0.0
      %927 = vmatprep.subr.mxu0 0.0
      %928 = vmatpush1.msra.mxu0 0.0
      %929 = vmatprep.subr.mxu0 0.0
      %930 = vmatpush1.msra.mxu0 0.0
      %931 = vmatprep.subr.mxu0 0.0
      %932 = vmatpush1.msra.mxu0 0.0
      %933 = vmatprep.mubr.f32.mxu0 0.0
      %934 = vmatmul.mubr.f32.gmra.mrb[0].mxu0 %v749
      %v935 = vpop.f32.mrb[0].mxu0
      %v936 = vadd.f32 0.0, %v935
      %v937 = vpop.f32.mrb[0].mxu0
      %938 = vdwg.mxu0
      %s939 = scalar_lea.vmem [#allocation3], 24
      %v940 = vld [vmem:[%s939] sm:$0xff]
      %v941 = vld [vmem:[%s939 + $0x8] sm:$0xff]
      %v942 = vld [vmem:[%s939 + $0x10] sm:$0xff]
      %v943 = vadd.f32 %v940, %v865
      %v944 = vxor.u32 %v943, 2147483648
      %v945 = vmul.f32 %v944, 1.442695
      %v946 = vpow.pop %v945
      %v947 = vadd.f32 %v946, 1.0
      %v948 = vrcp.pop %v947
      %v949 = vmul.f32 1.0, %v948
      %v950 = vadd.f32 %v941, %v867
      %v951 = vxor.u32 %v950, 2147483648
      %v952 = vmul.f32 %v951, 1.442695
      %v953 = vpow.pop %v952
      %v954 = vadd.f32 %v953, 1.0
      %v955 = vrcp.pop %v954
      %v956 = vmul.f32 1.0, %v955
      %v957 = vld [vmem:[%s4] sm:$0x1]
      %v959 = vlaneseq
      %v960 = vshrl.u32 %v959, 7
      %v961 = vsub.s32 0, %v960
      %v962 = vrot.slane %v957, %v961
      %v964 = vadd.f32 %v936, %v962
      %v965 = vmul.f32 %v949, %v964
      %v966 = vadd.f32 %v942, %v965
      %v967 = vtanh.pop %v966
      %v968 = vsub.f32 1.0, %v956
      %v969 = vmul.f32 %v968, %v967
      %v970 = vmul.f32 %v956, %v749
      %v971 = vadd.f32 %v969, %v970
      %972 = vst [vmem:[#allocation2] sm:$0xff] %v971
      %v973 = vld [vmem:[#allocation2] sm:$0xff]
      %v974 = vld [vmem:[%s2] sm:$0xff]
      %v975 = vld [vmem:[%s2 + $0x8] sm:$0xff]
      %v976 = vld [vmem:[%s2 + $0x10] sm:$0xff]
      %v977 = vld [vmem:[%s2 + $0x18] sm:$0xff]
      %v978 = vld [vmem:[%s2 + $0x20] sm:$0xff]
      %v979 = vld [vmem:[%s2 + $0x28] sm:$0xff]
      %v980 = vld [vmem:[%s2 + $0x30] sm:$0xff]
      %v981 = vld [vmem:[%s2 + $0x38] sm:$0xff]
      %v982 = vld [vmem:[%s2 + $0x40] sm:$0xff]
      %v983 = vld [vmem:[%s2 + $0x48] sm:$0xff]
      %v984 = vld [vmem:[%s2 + $0x50] sm:$0xff]
      %v985 = vld [vmem:[%s2 + $0x58] sm:$0xff]
      %v986 = vld [vmem:[%s2 + $0x60] sm:$0xff]
      %v987 = vld [vmem:[%s2 + $0x68] sm:$0xff]
      %v988 = vld [vmem:[%s2 + $0x70] sm:$0xff]
      %v989 = vld [vmem:[%s2 + $0x78] sm:$0xff]
      %v990 = vld [vmem:[%s2 + $0x80] sm:$0xff]
      %v991 = vld [vmem:[%s2 + $0x88] sm:$0xff]
      %v992 = vld [vmem:[%s2 + $0x90] sm:$0xff]
      %v993 = vld [vmem:[%s2 + $0x98] sm:$0xff]
      %v994 = vld [vmem:[%s2 + $0xa0] sm:$0xff]
      %v995 = vld [vmem:[%s2 + $0xa8] sm:$0xff]
      %v996 = vld [vmem:[%s2 + $0xb0] sm:$0xff]
      %v997 = vld [vmem:[%s2 + $0xb8] sm:$0xff]
      %v998 = vld [vmem:[%s2 + $0xc0] sm:$0xff]
      %v999 = vld [vmem:[%s2 + $0xc8] sm:$0xff]
      %v1000 = vld [vmem:[%s2 + $0xd0] sm:$0xff]
      %v1001 = vld [vmem:[%s2 + $0xd8] sm:$0xff]
      %v1002 = vld [vmem:[%s2 + $0xe0] sm:$0xff]
      %v1003 = vld [vmem:[%s2 + $0xe8] sm:$0xff]
      %v1004 = vld [vmem:[%s2 + $0xf0] sm:$0xff]
      %v1005 = vld [vmem:[%s2 + $0xf8] sm:$0xff]
      %v1006 = vld [vmem:[%s2 + $0x100] sm:$0xff]
      %v1007 = vld [vmem:[%s2 + $0x108] sm:$0xff]
      %v1008 = vld [vmem:[%s2 + $0x110] sm:$0xff]
      %v1009 = vld [vmem:[%s2 + $0x118] sm:$0xff]
      %v1010 = vld [vmem:[%s2 + $0x120] sm:$0xff]
      %v1011 = vld [vmem:[%s2 + $0x128] sm:$0xff]
      %v1012 = vld [vmem:[%s2 + $0x130] sm:$0xff]
      %v1013 = vld [vmem:[%s2 + $0x138] sm:$0xff]
      %v1014 = vld [vmem:[%s2 + $0x140] sm:$0xff]
      %v1015 = vld [vmem:[%s2 + $0x148] sm:$0xff]
      %v1016 = vld [vmem:[%s2 + $0x150] sm:$0xff]
      %v1017 = vld [vmem:[%s2 + $0x158] sm:$0xff]
      %v1018 = vld [vmem:[%s2 + $0x160] sm:$0xff]
      %v1019 = vld [vmem:[%s2 + $0x168] sm:$0xff]
      %v1020 = vld [vmem:[%s2 + $0x170] sm:$0xff]
      %v1021 = vld [vmem:[%s2 + $0x178] sm:$0xff]
      %1022 = vmatprep.subr.mxu0 %v975
      %1023 = vmatpush1.msra.mxu0 %v974
      %1024 = vmatprep.subr.mxu0 %v978
      %1025 = vmatpush1.msra.mxu0 %v977
      %1026 = vmatprep.subr.mxu0 %v981
      %1027 = vmatpush1.msra.mxu0 %v980
      %1028 = vmatprep.subr.mxu0 %v984
      %1029 = vmatpush1.msra.mxu0 %v983
      %1030 = vmatprep.subr.mxu0 %v987
      %1031 = vmatpush1.msra.mxu0 %v986
      %1032 = vmatprep.subr.mxu0 %v990
      %1033 = vmatpush1.msra.mxu0 %v989
      %1034 = vmatprep.subr.mxu0 %v993
      %1035 = vmatpush1.msra.mxu0 %v992
      %1036 = vmatprep.subr.mxu0 %v996
      %1037 = vmatpush1.msra.mxu0 %v995
      %1038 = vmatprep.subr.mxu0 %v999
      %1039 = vmatpush1.msra.mxu0 %v998
      %1040 = vmatprep.subr.mxu0 %v1002
      %1041 = vmatpush1.msra.mxu0 %v1001
      %1042 = vmatprep.subr.mxu0 %v1005
      %1043 = vmatpush1.msra.mxu0 %v1004
      %1044 = vmatprep.subr.mxu0 %v1008
      %1045 = vmatpush1.msra.mxu0 %v1007
      %1046 = vmatprep.subr.mxu0 %v1011
      %1047 = vmatpush1.msra.mxu0 %v1010
      %1048 = vmatprep.subr.mxu0 %v1014
      %1049 = vmatpush1.msra.mxu0 %v1013
      %1050 = vmatprep.subr.mxu0 %v1017
      %1051 = vmatpush1.msra.mxu0 %v1016
      %1052 = vmatprep.subr.mxu0 %v1020
      %1053 = vmatpush1.msra.mxu0 %v1019
      %1054 = vmatprep.subr.mxu0 0.0
      %1055 = vmatpush1.msra.mxu0 0.0
      %1056 = vmatprep.subr.mxu0 0.0
      %1057 = vmatpush1.msra.mxu0 0.0
      %1058 = vmatprep.subr.mxu0 0.0
      %1059 = vmatpush1.msra.mxu0 0.0
      %1060 = vmatprep.subr.mxu0 0.0
      %1061 = vmatpush1.msra.mxu0 0.0
      %1062 = vmatprep.subr.mxu0 0.0
      %1063 = vmatpush1.msra.mxu0 0.0
      %1064 = vmatprep.subr.mxu0 0.0
      %1065 = vmatpush1.msra.mxu0 0.0
      %1066 = vmatprep.subr.mxu0 0.0
      %1067 = vmatpush1.msra.mxu0 0.0
      %1068 = vmatprep.subr.mxu0 0.0
      %1069 = vmatpush1.msra.mxu0 0.0
      %1070 = vmatprep.subr.mxu0 0.0
      %1071 = vmatpush1.msra.mxu0 0.0
      %1072 = vmatprep.subr.mxu0 0.0
      %1073 = vmatpush1.msra.mxu0 0.0
      %1074 = vmatprep.subr.mxu0 0.0
      %1075 = vmatpush1.msra.mxu0 0.0
      %1076 = vmatprep.subr.mxu0 0.0
      %1077 = vmatpush1.msra.mxu0 0.0
      %1078 = vmatprep.subr.mxu0 0.0
      %1079 = vmatpush1.msra.mxu0 0.0
      %1080 = vmatprep.subr.mxu0 0.0
      %1081 = vmatpush1.msra.mxu0 0.0
      %1082 = vmatprep.subr.mxu0 0.0
      %1083 = vmatpush1.msra.mxu0 0.0
      %1084 = vmatprep.subr.mxu0 0.0
      %1085 = vmatpush1.msra.mxu0 0.0
      %1086 = vmatprep.mubr.f32.mxu0 0.0
      %1087 = vmatmul.mubr.f32.gmra.mrb[0].mxu0 %v973
      %v1088 = vpop.f32.mrb[0].mxu0
      %v1089 = vadd.f32 0.0, %v1088
      %v1090 = vpop.f32.mrb[0].mxu0
      %v1091 = vadd.f32 0.0, %v1090
      %1092 = vdwg.mxu0
      %1093 = vmatprep.subr.mxu0 0.0
      %1094 = vmatpush1.msra.mxu0 %v976
      %1095 = vmatprep.subr.mxu0 0.0
      %1096 = vmatpush1.msra.mxu0 %v979
      %1097 = vmatprep.subr.mxu0 0.0
      %1098 = vmatpush1.msra.mxu0 %v982
      %1099 = vmatprep.subr.mxu0 0.0
      %1100 = vmatpush1.msra.mxu0 %v985
      %1101 = vmatprep.subr.mxu0 0.0
      %1102 = vmatpush1.msra.mxu0 %v988
      %1103 = vmatprep.subr.mxu0 0.0
      %1104 = vmatpush1.msra.mxu0 %v991
      %1105 = vmatprep.subr.mxu0 0.0
      %1106 = vmatpush1.msra.mxu0 %v994
      %1107 = vmatprep.subr.mxu0 0.0
      %1108 = vmatpush1.msra.mxu0 %v997
      %1109 = vmatprep.subr.mxu0 0.0
      %1110 = vmatpush1.msra.mxu0 %v1000
      %1111 = vmatprep.subr.mxu0 0.0
      %1112 = vmatpush1.msra.mxu0 %v1003
      %1113 = vmatprep.subr.mxu0 0.0
      %1114 = vmatpush1.msra.mxu0 %v1006
      %1115 = vmatprep.subr.mxu0 0.0
      %1116 = vmatpush1.msra.mxu0 %v1009
      %1117 = vmatprep.subr.mxu0 0.0
      %1118 = vmatpush1.msra.mxu0 %v1012
      %1119 = vmatprep.subr.mxu0 0.0
      %1120 = vmatpush1.msra.mxu0 %v1015
      %1121 = vmatprep.subr.mxu0 0.0
      %1122 = vmatpush1.msra.mxu0 %v1018
      %1123 = vmatprep.subr.mxu0 0.0
      %1124 = vmatpush1.msra.mxu0 %v1021
      %1125 = vmatprep.subr.mxu0 0.0
      %1126 = vmatpush1.msra.mxu0 0.0
      %1127 = vmatprep.subr.mxu0 0.0
      %1128 = vmatpush1.msra.mxu0 0.0
      %1129 = vmatprep.subr.mxu0 0.0
      %1130 = vmatpush1.msra.mxu0 0.0
      %1131 = vmatprep.subr.mxu0 0.0
      %1132 = vmatpush1.msra.mxu0 0.0
      %1133 = vmatprep.subr.mxu0 0.0
      %1134 = vmatpush1.msra.mxu0 0.0
      %1135 = vmatprep.subr.mxu0 0.0
      %1136 = vmatpush1.msra.mxu0 0.0
      %1137 = vmatprep.subr.mxu0 0.0
      %1138 = vmatpush1.msra.mxu0 0.0
      %1139 = vmatprep.subr.mxu0 0.0
      %1140 = vmatpush1.msra.mxu0 0.0
      %1141 = vmatprep.subr.mxu0 0.0
      %1142 = vmatpush1.msra.mxu0 0.0
      %1143 = vmatprep.subr.mxu0 0.0
      %1144 = vmatpush1.msra.mxu0 0.0
      %1145 = vmatprep.subr.mxu0 0.0
      %1146 = vmatpush1.msra.mxu0 0.0
      %1147 = vmatprep.subr.mxu0 0.0
      %1148 = vmatpush1.msra.mxu0 0.0
      %1149 = vmatprep.subr.mxu0 0.0
      %1150 = vmatpush1.msra.mxu0 0.0
      %1151 = vmatprep.subr.mxu0 0.0
      %1152 = vmatpush1.msra.mxu0 0.0
      %1153 = vmatprep.subr.mxu0 0.0
      %1154 = vmatpush1.msra.mxu0 0.0
      %1155 = vmatprep.subr.mxu0 0.0
      %1156 = vmatpush1.msra.mxu0 0.0
      %1157 = vmatprep.mubr.f32.mxu0 0.0
      %1158 = vmatmul.mubr.f32.gmra.mrb[0].mxu0 %v973
      %v1159 = vpop.f32.mrb[0].mxu0
      %v1160 = vadd.f32 0.0, %v1159
      %v1161 = vpop.f32.mrb[0].mxu0
      %1162 = vdwg.mxu0
      %s1163 = scalar_lea.vmem [#allocation3], 48
      %v1164 = vld [vmem:[%s1163] sm:$0xff]
      %v1165 = vld [vmem:[%s1163 + $0x8] sm:$0xff]
      %v1166 = vld [vmem:[%s1163 + $0x10] sm:$0xff]
      %v1167 = vadd.f32 %v1164, %v1089
      %v1168 = vxor.u32 %v1167, 2147483648
      %v1169 = vmul.f32 %v1168, 1.442695
      %v1170 = vpow.pop %v1169
      %v1171 = vadd.f32 %v1170, 1.0
      %v1172 = vrcp.pop %v1171
      %v1173 = vmul.f32 1.0, %v1172
      %v1174 = vadd.f32 %v1165, %v1091
      %v1175 = vxor.u32 %v1174, 2147483648
      %v1176 = vmul.f32 %v1175, 1.442695
      %v1177 = vpow.pop %v1176
      %v1178 = vadd.f32 %v1177, 1.0
      %v1179 = vrcp.pop %v1178
      %v1180 = vmul.f32 1.0, %v1179
      %v1181 = vld [vmem:[%s4] sm:$0x1]
      %v1183 = vlaneseq
      %v1184 = vshrl.u32 %v1183, 7
      %v1185 = vsub.s32 0, %v1184
      %v1186 = vrot.slane %v1181, %v1185
      %v1188 = vadd.f32 %v1160, %v1186
      %v1189 = vmul.f32 %v1173, %v1188
      %v1190 = vadd.f32 %v1166, %v1189
      %v1191 = vtanh.pop %v1190
      %v1192 = vsub.f32 1.0, %v1180
      %v1193 = vmul.f32 %v1192, %v1191
      %v1194 = vmul.f32 %v1180, %v973
      %v1195 = vadd.f32 %v1193, %v1194
      %1196 = vst [vmem:[#allocation2] sm:$0xff] %v1195
      %v1197 = vld [vmem:[#allocation2] sm:$0xff]
      %v1198 = vld [vmem:[%s2] sm:$0xff]
      %v1199 = vld [vmem:[%s2 + $0x8] sm:$0xff]
      %v1200 = vld [vmem:[%s2 + $0x10] sm:$0xff]
      %v1201 = vld [vmem:[%s2 + $0x18] sm:$0xff]
      %v1202 = vld [vmem:[%s2 + $0x20] sm:$0xff]
      %v1203 = vld [vmem:[%s2 + $0x28] sm:$0xff]
      %v1204 = vld [vmem:[%s2 + $0x30] sm:$0xff]
      %v1205 = vld [vmem:[%s2 + $0x38] sm:$0xff]
      %v1206 = vld [vmem:[%s2 + $0x40] sm:$0xff]
      %v1207 = vld [vmem:[%s2 + $0x48] sm:$0xff]
      %v1208 = vld [vmem:[%s2 + $0x50] sm:$0xff]
      %v1209 = vld [vmem:[%s2 + $0x58] sm:$0xff]
      %v1210 = vld [vmem:[%s2 + $0x60] sm:$0xff]
      %v1211 = vld [vmem:[%s2 + $0x68] sm:$0xff]
      %v1212 = vld [vmem:[%s2 + $0x70] sm:$0xff]
      %v1213 = vld [vmem:[%s2 + $0x78] sm:$0xff]
      %v1214 = vld [vmem:[%s2 + $0x80] sm:$0xff]
      %v1215 = vld [vmem:[%s2 + $0x88] sm:$0xff]
      %v1216 = vld [vmem:[%s2 + $0x90] sm:$0xff]
      %v1217 = vld [vmem:[%s2 + $0x98] sm:$0xff]
      %v1218 = vld [vmem:[%s2 + $0xa0] sm:$0xff]
      %v1219 = vld [vmem:[%s2 + $0xa8] sm:$0xff]
      %v1220 = vld [vmem:[%s2 + $0xb0] sm:$0xff]
      %v1221 = vld [vmem:[%s2 + $0xb8] sm:$0xff]
      %v1222 = vld [vmem:[%s2 + $0xc0] sm:$0xff]
      %v1223 = vld [vmem:[%s2 + $0xc8] sm:$0xff]
      %v1224 = vld [vmem:[%s2 + $0xd0] sm:$0xff]
      %v1225 = vld [vmem:[%s2 + $0xd8] sm:$0xff]
      %v1226 = vld [vmem:[%s2 + $0xe0] sm:$0xff]
      %v1227 = vld [vmem:[%s2 + $0xe8] sm:$0xff]
      %v1228 = vld [vmem:[%s2 + $0xf0] sm:$0xff]
      %v1229 = vld [vmem:[%s2 + $0xf8] sm:$0xff]
      %v1230 = vld [vmem:[%s2 + $0x100] sm:$0xff]
      %v1231 = vld [vmem:[%s2 + $0x108] sm:$0xff]
      %v1232 = vld [vmem:[%s2 + $0x110] sm:$0xff]
      %v1233 = vld [vmem:[%s2 + $0x118] sm:$0xff]
      %v1234 = vld [vmem:[%s2 + $0x120] sm:$0xff]
      %v1235 = vld [vmem:[%s2 + $0x128] sm:$0xff]
      %v1236 = vld [vmem:[%s2 + $0x130] sm:$0xff]
      %v1237 = vld [vmem:[%s2 + $0x138] sm:$0xff]
      %v1238 = vld [vmem:[%s2 + $0x140] sm:$0xff]
      %v1239 = vld [vmem:[%s2 + $0x148] sm:$0xff]
      %v1240 = vld [vmem:[%s2 + $0x150] sm:$0xff]
      %v1241 = vld [vmem:[%s2 + $0x158] sm:$0xff]
      %v1242 = vld [vmem:[%s2 + $0x160] sm:$0xff]
      %v1243 = vld [vmem:[%s2 + $0x168] sm:$0xff]
      %v1244 = vld [vmem:[%s2 + $0x170] sm:$0xff]
      %v1245 = vld [vmem:[%s2 + $0x178] sm:$0xff]
      %1246 = vmatprep.subr.mxu0 %v1199
      %1247 = vmatpush1.msra.mxu0 %v1198
      %1248 = vmatprep.subr.mxu0 %v1202
      %1249 = vmatpush1.msra.mxu0 %v1201
      %1250 = vmatprep.subr.mxu0 %v1205
      %1251 = vmatpush1.msra.mxu0 %v1204
      %1252 = vmatprep.subr.mxu0 %v1208
      %1253 = vmatpush1.msra.mxu0 %v1207
      %1254 = vmatprep.subr.mxu0 %v1211
      %1255 = vmatpush1.msra.mxu0 %v1210
      %1256 = vmatprep.subr.mxu0 %v1214
      %1257 = vmatpush1.msra.mxu0 %v1213
      %1258 = vmatprep.subr.mxu0 %v1217
      %1259 = vmatpush1.msra.mxu0 %v1216
      %1260 = vmatprep.subr.mxu0 %v1220
      %1261 = vmatpush1.msra.mxu0 %v1219
      %1262 = vmatprep.subr.mxu0 %v1223
      %1263 = vmatpush1.msra.mxu0 %v1222
      %1264 = vmatprep.subr.mxu0 %v1226
      %1265 = vmatpush1.msra.mxu0 %v1225
      %1266 = vmatprep.subr.mxu0 %v1229
      %1267 = vmatpush1.msra.mxu0 %v1228
      %1268 = vmatprep.subr.mxu0 %v1232
      %1269 = vmatpush1.msra.mxu0 %v1231
      %1270 = vmatprep.subr.mxu0 %v1235
      %1271 = vmatpush1.msra.mxu0 %v1234
      %1272 = vmatprep.subr.mxu0 %v1238
      %1273 = vmatpush1.msra.mxu0 %v1237
      %1274 = vmatprep.subr.mxu0 %v1241
      %1275 = vmatpush1.msra.mxu0 %v1240
      %1276 = vmatprep.subr.mxu0 %v1244
      %1277 = vmatpush1.msra.mxu0 %v1243
      %1278 = vmatprep.subr.mxu0 0.0
      %1279 = vmatpush1.msra.mxu0 0.0
      %1280 = vmatprep.subr.mxu0 0.0
      %1281 = vmatpush1.msra.mxu0 0.0
      %1282 = vmatprep.subr.mxu0 0.0
      %1283 = vmatpush1.msra.mxu0 0.0
      %1284 = vmatprep.subr.mxu0 0.0
      %1285 = vmatpush1.msra.mxu0 0.0
      %1286 = vmatprep.subr.mxu0 0.0
      %1287 = vmatpush1.msra.mxu0 0.0
      %1288 = vmatprep.subr.mxu0 0.0
      %1289 = vmatpush1.msra.mxu0 0.0
      %1290 = vmatprep.subr.mxu0 0.0
      %1291 = vmatpush1.msra.mxu0 0.0
      %1292 = vmatprep.subr.mxu0 0.0
      %1293 = vmatpush1.msra.mxu0 0.0
      %1294 = vmatprep.subr.mxu0 0.0
      %1295 = vmatpush1.msra.mxu0 0.0
      %1296 = vmatprep.subr.mxu0 0.0
      %1297 = vmatpush1.msra.mxu0 0.0
      %1298 = vmatprep.subr.mxu0 0.0
      %1299 = vmatpush1.msra.mxu0 0.0
      %1300 = vmatprep.subr.mxu0 0.0
      %1301 = vmatpush1.msra.mxu0 0.0
      %1302 = vmatprep.subr.mxu0 0.0
      %1303 = vmatpush1.msra.mxu0 0.0
      %1304 = vmatprep.subr.mxu0 0.0
      %1305 = vmatpush1.msra.mxu0 0.0
      %1306 = vmatprep.subr.mxu0 0.0
      %1307 = vmatpush1.msra.mxu0 0.0
      %1308 = vmatprep.subr.mxu0 0.0
      %1309 = vmatpush1.msra.mxu0 0.0
      %1310 = vmatprep.mubr.f32.mxu0 0.0
      %1311 = vmatmul.mubr.f32.gmra.mrb[0].mxu0 %v1197
      %v1312 = vpop.f32.mrb[0].mxu0
      %v1313 = vadd.f32 0.0, %v1312
      %v1314 = vpop.f32.mrb[0].mxu0
      %v1315 = vadd.f32 0.0, %v1314
      %1316 = vdwg.mxu0
      %1317 = vmatprep.subr.mxu0 0.0
      %1318 = vmatpush1.msra.mxu0 %v1200
      %1319 = vmatprep.subr.mxu0 0.0
      %1320 = vmatpush1.msra.mxu0 %v1203
      %1321 = vmatprep.subr.mxu0 0.0
      %1322 = vmatpush1.msra.mxu0 %v1206
      %1323 = vmatprep.subr.mxu0 0.0
      %1324 = vmatpush1.msra.mxu0 %v1209
      %1325 = vmatprep.subr.mxu0 0.0
      %1326 = vmatpush1.msra.mxu0 %v1212
      %1327 = vmatprep.subr.mxu0 0.0
      %1328 = vmatpush1.msra.mxu0 %v1215
      %1329 = vmatprep.subr.mxu0 0.0
      %1330 = vmatpush1.msra.mxu0 %v1218
      %1331 = vmatprep.subr.mxu0 0.0
      %1332 = vmatpush1.msra.mxu0 %v1221
      %1333 = vmatprep.subr.mxu0 0.0
      %1334 = vmatpush1.msra.mxu0 %v1224
      %1335 = vmatprep.subr.mxu0 0.0
      %1336 = vmatpush1.msra.mxu0 %v1227
      %1337 = vmatprep.subr.mxu0 0.0
      %1338 = vmatpush1.msra.mxu0 %v1230
      %1339 = vmatprep.subr.mxu0 0.0
      %1340 = vmatpush1.msra.mxu0 %v1233
      %1341 = vmatprep.subr.mxu0 0.0
      %1342 = vmatpush1.msra.mxu0 %v1236
      %1343 = vmatprep.subr.mxu0 0.0
      %1344 = vmatpush1.msra.mxu0 %v1239
      %1345 = vmatprep.subr.mxu0 0.0
      %1346 = vmatpush1.msra.mxu0 %v1242
      %1347 = vmatprep.subr.mxu0 0.0
      %1348 = vmatpush1.msra.mxu0 %v1245
      %1349 = vmatprep.subr.mxu0 0.0
      %1350 = vmatpush1.msra.mxu0 0.0
      %1351 = vmatprep.subr.mxu0 0.0
      %1352 = vmatpush1.msra.mxu0 0.0
      %1353 = vmatprep.subr.mxu0 0.0
      %1354 = vmatpush1.msra.mxu0 0.0
      %1355 = vmatprep.subr.mxu0 0.0
      %1356 = vmatpush1.msra.mxu0 0.0
      %1357 = vmatprep.subr.mxu0 0.0
      %1358 = vmatpush1.msra.mxu0 0.0
      %1359 = vmatprep.subr.mxu0 0.0
      %1360 = vmatpush1.msra.mxu0 0.0
      %1361 = vmatprep.subr.mxu0 0.0
      %1362 = vmatpush1.msra.mxu0 0.0
      %1363 = vmatprep.subr.mxu0 0.0
      %1364 = vmatpush1.msra.mxu0 0.0
      %1365 = vmatprep.subr.mxu0 0.0
      %1366 = vmatpush1.msra.mxu0 0.0
      %1367 = vmatprep.subr.mxu0 0.0
      %1368 = vmatpush1.msra.mxu0 0.0
      %1369 = vmatprep.subr.mxu0 0.0
      %1370 = vmatpush1.msra.mxu0 0.0
      %1371 = vmatprep.subr.mxu0 0.0
      %1372 = vmatpush1.msra.mxu0 0.0
      %1373 = vmatprep.subr.mxu0 0.0
      %1374 = vmatpush1.msra.mxu0 0.0
      %1375 = vmatprep.subr.mxu0 0.0
      %1376 = vmatpush1.msra.mxu0 0.0
      %1377 = vmatprep.subr.mxu0 0.0
      %1378 = vmatpush1.msra.mxu0 0.0
      %1379 = vmatprep.subr.mxu0 0.0
      %1380 = vmatpush1.msra.mxu0 0.0
      %1381 = vmatprep.mubr.f32.mxu0 0.0
      %1382 = vmatmul.mubr.f32.gmra.mrb[0].mxu0 %v1197
      %v1383 = vpop.f32.mrb[0].mxu0
      %v1384 = vadd.f32 0.0, %v1383
      %v1385 = vpop.f32.mrb[0].mxu0
      %1386 = vdwg.mxu0
      %s1387 = scalar_lea.vmem [#allocation3], 72
      %v1388 = vld [vmem:[%s1387] sm:$0xff]
      %v1389 = vld [vmem:[%s1387 + $0x8] sm:$0xff]
      %v1390 = vld [vmem:[%s1387 + $0x10] sm:$0xff]
      %v1391 = vadd.f32 %v1388, %v1313
      %v1392 = vxor.u32 %v1391, 2147483648
      %v1393 = vmul.f32 %v1392, 1.442695
      %v1394 = vpow.pop %v1393
      %v1395 = vadd.f32 %v1394, 1.0
      %v1396 = vrcp.pop %v1395
      %v1397 = vmul.f32 1.0, %v1396
      %v1398 = vadd.f32 %v1389, %v1315
      %v1399 = vxor.u32 %v1398, 2147483648
      %v1400 = vmul.f32 %v1399, 1.442695
      %v1401 = vpow.pop %v1400
      %v1402 = vadd.f32 %v1401, 1.0
      %v1403 = vrcp.pop %v1402
      %v1404 = vmul.f32 1.0, %v1403
      %v1405 = vld [vmem:[%s4] sm:$0x1]
      %v1407 = vlaneseq
      %v1408 = vshrl.u32 %v1407, 7
      %v1409 = vsub.s32 0, %v1408
      %v1410 = vrot.slane %v1405, %v1409
      %v1412 = vadd.f32 %v1384, %v1410
      %v1413 = vmul.f32 %v1397, %v1412
      %v1414 = vadd.f32 %v1390, %v1413
      %v1415 = vtanh.pop %v1414
      %v1416 = vsub.f32 1.0, %v1404
      %v1417 = vmul.f32 %v1416, %v1415
      %v1418 = vmul.f32 %v1404, %v1197
      %v1419 = vadd.f32 %v1417, %v1418
      %1420 = vst [vmem:[#allocation2] sm:$0xff] %v1419
      %p1421 = scmp.eq.s32.totalorder %s18, 1
      // Predicated region
      $region53: #{_lambda_.3} parent=47 // pred_check
        %p1422 = pneg %p1421
      $region54: #{_lambda_.3} parent=47 // pred_check_branch
        %1424 = sbr.rel (%p1422) target = $region56
      $region55: #{_lambda_.3} parent=47 // pred_region
        %v1425 = vld [vmem:[#allocation2] sm:$0xff]
        %v1426 = vld [vmem:[%s5] sm:$0xff]
        %v1427 = vld [vmem:[%s5 + $0x8] sm:$0xff]
        %v1428 = vld [vmem:[%s5 + $0x10] sm:$0xff]
        %v1429 = vld [vmem:[%s5 + $0x18] sm:$0xff]
        %v1430 = vld [vmem:[%s5 + $0x20] sm:$0xff]
        %v1431 = vld [vmem:[%s5 + $0x28] sm:$0xff]
        %v1432 = vld [vmem:[%s5 + $0x30] sm:$0xff]
        %v1433 = vld [vmem:[%s5 + $0x38] sm:$0xff]
        %v1434 = vld [vmem:[%s5 + $0x40] sm:$0xff]
        %v1435 = vld [vmem:[%s5 + $0x48] sm:$0xff]
        %v1436 = vld [vmem:[%s5 + $0x50] sm:$0xff]
        %v1437 = vld [vmem:[%s5 + $0x58] sm:$0xff]
        %v1438 = vld [vmem:[%s5 + $0x60] sm:$0xff]
        %v1439 = vld [vmem:[%s5 + $0x68] sm:$0xff]
        %v1440 = vld [vmem:[%s5 + $0x70] sm:$0xff]
        %v1441 = vld [vmem:[%s5 + $0x78] sm:$0xff]
        %v1442 = vld [vmem:[%s6] sm:$0x1]
        %v1444 = vlaneseq
        %v1445 = vshrl.u32 %v1444, 7
        %v1446 = vsub.s32 0, %v1445
        %v1447 = vrot.slane %v1442, %v1446
        %1449 = vmatprep.subr.mxu0 0.0
        %1450 = vmatpush1.msra.mxu0 %v1426
        %1451 = vmatprep.subr.mxu0 0.0
        %1452 = vmatpush1.msra.mxu0 %v1427
        %1453 = vmatprep.subr.mxu0 0.0
        %1454 = vmatpush1.msra.mxu0 %v1428
        %1455 = vmatprep.subr.mxu0 0.0
        %1456 = vmatpush1.msra.mxu0 %v1429
        %1457 = vmatprep.subr.mxu0 0.0
        %1458 = vmatpush1.msra.mxu0 %v1430
        %1459 = vmatprep.subr.mxu0 0.0
        %1460 = vmatpush1.msra.mxu0 %v1431
        %1461 = vmatprep.subr.mxu0 0.0
        %1462 = vmatpush1.msra.mxu0 %v1432
        %1463 = vmatprep.subr.mxu0 0.0
        %1464 = vmatpush1.msra.mxu0 %v1433
        %1465 = vmatprep.subr.mxu0 0.0
        %1466 = vmatpush1.msra.mxu0 %v1434
        %1467 = vmatprep.subr.mxu0 0.0
        %1468 = vmatpush1.msra.mxu0 %v1435
        %1469 = vmatprep.subr.mxu0 0.0
        %1470 = vmatpush1.msra.mxu0 %v1436
        %1471 = vmatprep.subr.mxu0 0.0
        %1472 = vmatpush1.msra.mxu0 %v1437
        %1473 = vmatprep.subr.mxu0 0.0
        %1474 = vmatpush1.msra.mxu0 %v1438
        %1475 = vmatprep.subr.mxu0 0.0
        %1476 = vmatpush1.msra.mxu0 %v1439
        %1477 = vmatprep.subr.mxu0 0.0
        %1478 = vmatpush1.msra.mxu0 %v1440
        %1479 = vmatprep.subr.mxu0 0.0
        %1480 = vmatpush1.msra.mxu0 %v1441
        %1481 = vmatprep.subr.mxu0 0.0
        %1482 = vmatpush1.msra.mxu0 0.0
        %1483 = vmatprep.subr.mxu0 0.0
        %1484 = vmatpush1.msra.mxu0 0.0
        %1485 = vmatprep.subr.mxu0 0.0
        %1486 = vmatpush1.msra.mxu0 0.0
        %1487 = vmatprep.subr.mxu0 0.0
        %1488 = vmatpush1.msra.mxu0 0.0
        %1489 = vmatprep.subr.mxu0 0.0
        %1490 = vmatpush1.msra.mxu0 0.0
        %1491 = vmatprep.subr.mxu0 0.0
        %1492 = vmatpush1.msra.mxu0 0.0
        %1493 = vmatprep.subr.mxu0 0.0
        %1494 = vmatpush1.msra.mxu0 0.0
        %1495 = vmatprep.subr.mxu0 0.0
        %1496 = vmatpush1.msra.mxu0 0.0
        %1497 = vmatprep.subr.mxu0 0.0
        %1498 = vmatpush1.msra.mxu0 0.0
        %1499 = vmatprep.subr.mxu0 0.0
        %1500 = vmatpush1.msra.mxu0 0.0
        %1501 = vmatprep.subr.mxu0 0.0
        %1502 = vmatpush1.msra.mxu0 0.0
        %1503 = vmatprep.subr.mxu0 0.0
        %1504 = vmatpush1.msra.mxu0 0.0
        %1505 = vmatprep.subr.mxu0 0.0
        %1506 = vmatpush1.msra.mxu0 0.0
        %1507 = vmatprep.subr.mxu0 0.0
        %1508 = vmatpush1.msra.mxu0 0.0
        %1509 = vmatprep.subr.mxu0 0.0
        %1510 = vmatpush1.msra.mxu0 0.0
        %1511 = vmatprep.subr.mxu0 0.0
        %1512 = vmatpush1.msra.mxu0 0.0
        %1513 = vmatprep.mubr.f32.mxu0 0.0
        %1514 = vmatmul.mubr.f32.gmra.mrb[0].mxu0 %v1425
        %v1515 = vpop.f32.mrb[0].mxu0
        %v1516 = vadd.f32 %v1447, %v1515
        %v1517 = vpop.f32.mrb[0].mxu0
        %1518 = vdwg.mxu0
        %1519 = vst [vmem:[%s7] sm:$0xff] %v1516
      $region56: #{_lambda_.3} parent=47 // pred_fallthru
        _
      // Predicated region
      $region57: #{_lambda_.3} parent=47 // pred_check
        %p1520 = pneg %p183
      $region58: #{_lambda_.3} parent=47 // pred_check_branch
        %1522 = sbr.rel (%p1520) target = $region60
      $region59: #{_lambda_.3} parent=47 // pred_region
        _
      $region60: #{_lambda_.3} parent=47 // pred_fallthru
        _
      // Predicated region
      $region61: #{_lambda_.3} parent=47 // pred_check
        %p1523 = pneg %p183
      $region62: #{_lambda_.3} parent=47 // pred_check_branch
        %1525 = sbr.rel (%p1523) target = $region64
      $region63: #{_lambda_.3} parent=47 // pred_region
        _
      $region64: #{_lambda_.3} parent=47 // pred_fallthru
        _
    $region48: #{_lambda_.3} parent=5 // pred_fallthru
      _
    %p1526 = scmp.le.s32.totalorder 2, %s13
    // Predicated region
    $region65: #{_lambda_.3} parent=5 // pred_check
      %p1527 = pneg %p1526
    $region66: #{_lambda_.3} parent=5 // pred_check_branch
      %1529 = sbr.rel (%p1527) target = $region68
    $region67: #{_lambda_.3} parent=5 // pred_region
      %s1530 = ssub.s32 %s13, 2
    $region68: #{_lambda_.3} parent=5 // pred_fallthru
      _
  $region6: #{_lambda_.3} parent=0 // loop_footer
    %s17 = sadd.s32 1, %s13
  $region7: #{_lambda_.3} parent=0 // loop_footer_branch
    %12 = sbr.rel target = $region3
  $region8: #{_lambda_.3} parent=0 // loop_exit
    _

</llo_original>
